<compile_context>
chip_gen: v5e
topology: v5e:2x2
jax: 0.10.0
libtpu: 0.0.40
codegen_flags: <defaults>
</compile_context>

<pallas_src>
import math

import numpy as np

import jax
import jax.numpy as jnp
from jax.experimental import pallas as pl
from jax.experimental.pallas import tpu as pltpu

# ----------------------------- small model config -----------------------------
DIM = 256                     # model dim
N_HEADS = 2
N_KV_HEADS = 1                # GQA: n_rep = 2
HEAD_DIM = DIM // N_HEADS     # 128 -> per-head slices are lane aligned
KV_DIM = N_KV_HEADS * HEAD_DIM
N_REP = N_HEADS // N_KV_HEADS
N_LAYERS = 2
VOCAB = 256
MAX_SEQ = 16                  # KV-cache length
MULTIPLE_OF = 256
NORM_EPS = 1e-5
B = 2                         # batch (= max_batch_size)


def _ffn_hidden(dim):
    hidden = 4 * dim
    hidden = int(2 * hidden / 3)
    return MULTIPLE_OF * ((hidden + MULTIPLE_OF - 1) // MULTIPLE_OF)


HIDDEN = _ffn_hidden(DIM)     # 768


# --------------------------------- kernel -------------------------------------
def _rmsnorm(x, w):
    ms = jnp.mean(x * x, axis=-1, keepdims=True)
    return w * (x * jax.lax.rsqrt(ms + NORM_EPS))


def _rope_head(xh, cos_h, sin_h):
    # xh: (rows, HEAD_DIM) in de-interleaved per-head layout [evens | odds].
    # cos_h = [cos | cos], sin_h = [-sin | +sin] (per lane), so the pair rotation is
    #   out = xh * cos_h + swap_halves(xh) * sin_h
    # swap_halves == roll by HEAD_DIM//2 (direction independent), done on the XLU.
    return xh * cos_h + pltpu.roll(xh, HEAD_DIM // 2, 1) * sin_h


def llama_decode_kernel(
    # ---- inputs ----
    sp_ref,                         # SMEM (1,) int32 : start_pos
    x_ref,                          # (B, DIM) f32 token embeddings (layer-0 input)
    ck_hbm, cv_hbm,                 # (L, B, N_KV, MAX_SEQ, HEAD_DIM) f32, HBM (ANY)
    cos_ref, sin_ref,               # (1, HEAD_DIM) f32 RoPE vectors for start_pos
    anw_ref, fnw_ref,               # (1, DIM) f32 RMSNorm weights of layer l
    wq_ref, wk_ref, wv_ref, wo_ref, # bf16 attention projections of layer l
    w1_ref, w2_ref, w3_ref,         # bf16 SwiGLU FFN weights of layer l
    nw_ref, wout_ref,               # final norm (1, DIM) f32 / LM head (DIM, VOCAB) bf16
    # ---- outputs ----
    logits_ref,                     # (B, VOCAB) f32 (written on the last layer only)
    ck_out, cv_out,                 # HBM (ANY), aliased to ck_hbm/cv_hbm
    # ---- scratch ----
    h_scr,                          # VMEM (B, DIM) f32 : residual stream (carried)
    k_scr, v_scr,                   # VMEM (B, N_KV, MAX_SEQ, HEAD_DIM) f32
    read_sem,                       # DMA semaphores (2,)
    write_sem,                      # DMA semaphores (2, B * N_KV_HEADS)
):
    layer = pl.program_id(0)
    sp = sp_ref[0]

    # Kick off the (small) HBM->VMEM reads of this layer's KV cache early so they
    # overlap with the QKV projections below.
    k_read = pltpu.make_async_copy(ck_hbm.at[layer], k_scr, read_sem.at[0])
    v_read = pltpu.make_async_copy(cv_hbm.at[layer], v_scr, read_sem.at[1])
    k_read.start()
    v_read.start()

    @pl.when(layer == 0)
    def _():
        h_scr[...] = x_ref[...]

    x = h_scr[...]

    # ---- attention branch: RMSNorm -> QKV (bf16 weights, f32 accum) -> RoPE ----
    xn = _rmsnorm(x, anw_ref[...]).astype(jnp.bfloat16)
    q = jnp.dot(xn, wq_ref[...], preferred_element_type=jnp.float32)   # (B, DIM)
    k = jnp.dot(xn, wk_ref[...], preferred_element_type=jnp.float32)   # (B, KV_DIM)
    v = jnp.dot(xn, wv_ref[...], preferred_element_type=jnp.float32)   # (B, KV_DIM)

    cos_h = cos_ref[...]
    sin_h = sin_ref[...]
    q_heads = [_rope_head(q[:, h * HEAD_DIM:(h + 1) * HEAD_DIM], cos_h, sin_h)
               for h in range(N_HEADS)]                                 # (B, HEAD_DIM)
    k_heads = [_rope_head(k[:, g * HEAD_DIM:(g + 1) * HEAD_DIM], cos_h, sin_h)
               for g in range(N_KV_HEADS)]

    k_read.wait()
    v_read.wait()

    # ---- KV-cache update: store the new row into the VMEM copy (needed for the
    #      attention below) and DMA only that row back to the aliased HBM cache ----
    write_copies = []
    for b in range(B):
        for g in range(N_KV_HEADS):
            k_scr[b, g, pl.ds(sp, 1), :] = k_heads[g][b:b + 1, :]
            v_scr[b, g, pl.ds(sp, 1), :] = v[b:b + 1, g * HEAD_DIM:(g + 1) * HEAD_DIM]
            i = b * N_KV_HEADS + g
            ck_w = pltpu.make_async_copy(k_scr.at[b, g, pl.ds(sp, 1), :],
                                         ck_out.at[layer, b, g, pl.ds(sp, 1), :],
                                         write_sem.at[0, i])
            cv_w = pltpu.make_async_copy(v_scr.at[b, g, pl.ds(sp, 1), :],
                                         cv_out.at[layer, b, g, pl.ds(sp, 1), :],
                                         write_sem.at[1, i])
            ck_w.start()
            cv_w.start()
            write_copies += [ck_w, cv_w]

    # ---- attention over cache[0 : start_pos + 1]; all query heads of a KV group
    #      batched into one (N_REP, S) score matmul (masked softmax) ----
    scale = 1.0 / math.sqrt(HEAD_DIM)
    valid = sp + 1
    t_idx = jax.lax.broadcasted_iota(jnp.int32, (N_REP, MAX_SEQ), 1)
    out_rows = []
    for b in range(B):
        head_outs = []
        for g in range(N_KV_HEADS):
            qh = jnp.concatenate(
                [q_heads[h][b:b + 1, :] for h in range(g * N_REP, (g + 1) * N_REP)],
                axis=0)                                                 # (N_REP, HD)
            kc = k_scr[b, g, :, :]                                      # (S, HD)
            vc = v_scr[b, g, :, :]
            s = jax.lax.dot_general(qh, kc, (((1,), (1,)), ((), ())),
                                    preferred_element_type=jnp.float32) * scale
            s = jnp.where(t_idx < valid, s, -jnp.inf)
            m = jnp.max(s, axis=-1, keepdims=True)
            p = jnp.exp(s - m)
            p = p * pl.reciprocal(jnp.sum(p, axis=-1, keepdims=True), approx=True)
            o = jnp.dot(p, vc, preferred_element_type=jnp.float32)      # (N_REP, HD)
            head_outs += [o[r:r + 1, :] for r in range(N_REP)]
        out_rows.append(jnp.concatenate(head_outs, axis=1))             # (1, DIM)
    attn = jnp.concatenate(out_rows, axis=0)                            # (B, DIM)

    h_attn = x + jnp.dot(attn.astype(jnp.bfloat16), wo_ref[...],
                         preferred_element_type=jnp.float32)

    # ---- SwiGLU FFN (reference quirk: ffn_norm applied to x, not h_attn) ----
    xn2 = _rmsnorm(x, fnw_ref[...]).astype(jnp.bfloat16)
    g1 = jnp.dot(xn2, w1_ref[...], preferred_element_type=jnp.float32)
    g3 = jnp.dot(xn2, w3_ref[...], preferred_element_type=jnp.float32)
    swish = g1 * pl.reciprocal(1.0 + jnp.exp(-g1), approx=True)         # F.silu
    ff = jnp.dot((swish * g3).astype(jnp.bfloat16), w2_ref[...],
                 preferred_element_type=jnp.float32)

    h_new = h_attn + ff
    h_scr[...] = h_new

    # ---- final RMSNorm + LM head fused into the last grid step ----
    @pl.when(layer == pl.num_programs(0) - 1)
    def _():
        xo = _rmsnorm(h_new, nw_ref[...]).astype(jnp.bfloat16)
        logits_ref[...] = jnp.dot(xo, wout_ref[...],
                                  preferred_element_type=jnp.float32)

    for c in write_copies:
        c.wait()


# --------------------------------- wrappers ------------------------------------
def _stack(params, idx):
    return jnp.stack([params["layers"][li][idx] for li in range(N_LAYERS)])


def prepare_stacked_weights(params):
    # De-interleave ([evens | odds]) the per-head output columns of wq / wk so the
    # in-kernel RoPE is a half-rotation.  The same permutation is applied to Q and K,
    # so attention scores are unchanged; wv / wo stay in the original layout.
    perm = np.concatenate([np.arange(0, HEAD_DIM, 2), np.arange(1, HEAD_DIM, 2)])
    perm_q = np.concatenate([h * HEAD_DIM + perm for h in range(N_HEADS)])
    perm_k = np.concatenate([h * HEAD_DIM + perm for h in range(N_KV_HEADS)])
    return {
        "anw": _stack(params, 0), "fnw": _stack(params, 1),
        "wq": _stack(params, 2)[:, :, perm_q],
        "wk": _stack(params, 3)[:, :, perm_k],
        "wv": _stack(params, 4), "wo": _stack(params, 5),
        "w1": _stack(params, 6), "w2": _stack(params, 7), "w3": _stack(params, 8),
    }


def precompute_freqs(head_dim, seq_len, theta=10000.0):
    tn = jnp.arange(0, head_dim, 2, dtype=jnp.float32)
    inv = 1.0 / (theta ** (tn / head_dim))
    m = jnp.arange(seq_len, dtype=jnp.float32)
    freqs = jnp.outer(m, inv)
    return jnp.cos(freqs), jnp.sin(freqs)


def transformer_forward(params, stk, tokens, start_pos, cache_k, cache_v,
                        freqs_cos, freqs_sin):
    bsz, seq_len = tokens.shape
    assert seq_len == 1, "only one token at a time (decode)"
    h0 = params["tok_emb"][tokens[:, 0]]                 # (B, DIM) embedding gather (glue)
    cos = freqs_cos[start_pos]
    sin = freqs_sin[start_pos]
    cos_h = jnp.concatenate([cos, cos])[None, :].astype(jnp.float32)    # (1, HEAD_DIM)
    sin_h = jnp.concatenate([-sin, sin])[None, :].astype(jnp.float32)   # (1, HEAD_DIM)
    sp = jnp.asarray([start_pos], dtype=jnp.int32)

    cache_shape = jax.ShapeDtypeStruct(cache_k.shape, cache_k.dtype)
    logits, new_ck, new_cv = pl.pallas_call(
        llama_decode_kernel,
        out_shape=(jax.ShapeDtypeStruct((B, VOCAB), jnp.float32),
                   cache_shape, cache_shape),
        grid=(N_LAYERS,),
        in_specs=[
            pl.BlockSpec(memory_space=pltpu.MemorySpace.SMEM),          # start_pos
            pl.BlockSpec((B, DIM), lambda l: (0, 0)),                   # x (embeddings)
            pl.BlockSpec(memory_space=pl.ANY),                          # cache_k (HBM)
            pl.BlockSpec(memory_space=pl.ANY),                          # cache_v (HBM)
            pl.BlockSpec((1, HEAD_DIM), lambda l: (0, 0)),              # cos
            pl.BlockSpec((1, HEAD_DIM), lambda l: (0, 0)),              # sin
            pl.BlockSpec((None, 1, DIM), lambda l: (l, 0, 0)),          # attn_norm w
            pl.BlockSpec((None, 1, DIM), lambda l: (l, 0, 0)),          # ffn_norm w
            pl.BlockSpec((None, DIM, DIM), lambda l: (l, 0, 0)),        # wq
            pl.BlockSpec((None, DIM, KV_DIM), lambda l: (l, 0, 0)),     # wk
            pl.BlockSpec((None, DIM, KV_DIM), lambda l: (l, 0, 0)),     # wv
            pl.BlockSpec((None, DIM, DIM), lambda l: (l, 0, 0)),        # wo
            pl.BlockSpec((None, DIM, HIDDEN), lambda l: (l, 0, 0)),     # w1
            pl.BlockSpec((None, HIDDEN, DIM), lambda l: (l, 0, 0)),     # w2
            pl.BlockSpec((None, DIM, HIDDEN), lambda l: (l, 0, 0)),     # w3
            pl.BlockSpec((1, DIM), lambda l: (0, 0)),                   # final norm w
            pl.BlockSpec((DIM, VOCAB), lambda l: (0, 0)),               # LM head
        ],
        out_specs=(
            pl.BlockSpec((B, VOCAB), lambda l: (0, 0)),                 # logits
            pl.BlockSpec(memory_space=pl.ANY),                          # cache_k out
            pl.BlockSpec(memory_space=pl.ANY),                          # cache_v out
        ),
        scratch_shapes=[
            pltpu.VMEM((B, DIM), jnp.float32),                          # residual h
            pltpu.VMEM((B, N_KV_HEADS, MAX_SEQ, HEAD_DIM), jnp.float32),
            pltpu.VMEM((B, N_KV_HEADS, MAX_SEQ, HEAD_DIM), jnp.float32),
            pltpu.SemaphoreType.DMA((2,)),
            pltpu.SemaphoreType.DMA((2, B * N_KV_HEADS)),
        ],
        # KV caches updated in place: only the new row is written per layer.
        input_output_aliases={2: 1, 3: 2},
        compiler_params=pltpu.CompilerParams(
            dimension_semantics=("arbitrary",)),   # layer axis is sequential (carry)
        # NOTE: at real DIM/HIDDEN/MAX_SEQ sizes, set vmem_limit_bytes explicitly and
        # consider a "parallel" FFN split for v7x's two TensorCores.
    )(sp, h0, cache_k, cache_v, cos_h, sin_h,
      stk["anw"], stk["fnw"], stk["wq"], stk["wk"], stk["wv"], stk["wo"],
      stk["w1"], stk["w2"], stk["w3"], params["norm_w"], params["w_out"])
    return logits[:, None, :], new_ck, new_cv                 # (B, 1, VOCAB)


# ------------------------------ pure-JAX reference -----------------------------
def ref_forward(params, tokens, start_pos, caches_k, caches_v, freqs_cos, freqs_sin):
    def rmsn(x, w):
        return w * (x * jax.lax.rsqrt(jnp.mean(x * x, -1, keepdims=True) + NORM_EPS))

    cos = freqs_cos[start_pos]
    sin = freqs_sin[start_pos]

    def rope(x, nheads):
        xr = x.reshape(B, nheads, HEAD_DIM // 2, 2)
        x0, x1 = xr[..., 0], xr[..., 1]
        o0 = x0 * cos - x1 * sin
        o1 = x0 * sin + x1 * cos
        return jnp.stack([o0, o1], axis=-1).reshape(B, nheads * HEAD_DIM)

    h = params["tok_emb"][tokens[:, 0]]
    out_ck, out_cv = [], []
    for li in range(N_LAYERS):
        anw, fnw, wq, wk, wv, wo, w1, w2, w3 = params["layers"][li]
        xn = rmsn(h, anw)
        q = rope(xn @ wq, N_HEADS)
        k = rope(xn @ wk, N_KV_HEADS)
        v = xn @ wv
        ck = caches_k[li].at[:, :, start_pos, :].set(k.reshape(B, N_KV_HEADS, HEAD_DIM))
        cv = caches_v[li].at[:, :, start_pos, :].set(v.reshape(B, N_KV_HEADS, HEAD_DIM))
        out_ck.append(ck)
        out_cv.append(cv)
        qh = q.reshape(B, N_HEADS, HEAD_DIM)
        keys = jnp.repeat(ck[:, :, :start_pos + 1, :], N_REP, axis=1)
        vals = jnp.repeat(cv[:, :, :start_pos + 1, :], N_REP, axis=1)
        scores = jnp.einsum('bhd,bhtd->bht', qh, keys) / math.sqrt(HEAD_DIM)
        p = jax.nn.softmax(scores, axis=-1)
        attn = jnp.einsum('bht,bhtd->bhd', p, vals).reshape(B, DIM)
        h_res = h + attn @ wo
        xn2 = rmsn(h, fnw)                              # ffn_norm(x), matches reference
        ff = (jax.nn.silu(xn2 @ w1) * (xn2 @ w3)) @ w2
        h = h_res + ff
    logits = rmsn(h, params["norm_w"]) @ params["w_out"]
    return logits[:, None, :], out_ck, out_cv


# -------------------------------- parameters -----------------------------------
def init_params(key):
    keys = jax.random.split(key, 2 + N_LAYERS)

    def w(k, shape):
        return (jax.random.normal(k, shape, jnp.float32) * 0.02).astype(jnp.bfloat16)

    params = {
        "tok_emb": jax.random.normal(keys[0], (VOCAB, DIM), jnp.float32) * 0.02,
        "norm_w": jnp.ones((1, DIM), jnp.float32),
        "w_out": w(keys[1], (DIM, VOCAB)),
        "layers": [],
    }
    for li in range(N_LAYERS):
        lk = jax.random.split(keys[2 + li], 7)
        params["layers"].append((
            jnp.ones((1, DIM), jnp.float32),        # attn_norm
            jnp.ones((1, DIM), jnp.float32),        # ffn_norm
            w(lk[0], (DIM, DIM)),                   # wq
            w(lk[1], (DIM, KV_DIM)),                # wk
            w(lk[2], (DIM, KV_DIM)),                # wv
            w(lk[3], (DIM, DIM)),                   # wo
            w(lk[4], (DIM, HIDDEN)),                # w1
            w(lk[5], (HIDDEN, DIM)),                # w2
            w(lk[6], (DIM, HIDDEN)),                # w3
        ))
    return params


# ----------------------------------- main ---------------------------------------
if __name__ == "__main__":
    key = jax.random.PRNGKey(0)
    pkey, tkey = jax.random.split(key)
    params = init_params(pkey)
    stk = prepare_stacked_weights(params)
    freqs_cos, freqs_sin = precompute_freqs(HEAD_DIM, 2 * MAX_SEQ)

    # Pallas path keeps one stacked cache per K/V; reference keeps per-layer lists.
    cache_k = jnp.zeros((N_LAYERS, B, N_KV_HEADS, MAX_SEQ, HEAD_DIM), jnp.float32)
    cache_v = jnp.zeros((N_LAYERS, B, N_KV_HEADS, MAX_SEQ, HEAD_DIM), jnp.float32)
    rck = [jnp.zeros((B, N_KV_HEADS, MAX_SEQ, HEAD_DIM), jnp.float32)
           for _ in range(N_LAYERS)]
    rcv = [jnp.zeros((B, N_KV_HEADS, MAX_SEQ, HEAD_DIM), jnp.float32)
           for _ in range(N_LAYERS)]

    tokens_seq = jax.random.randint(tkey, (B, 3), 0, VOCAB)

    ok = True
    for step in range(3):                      # 3 decode steps, exercising the KV cache
        tok = tokens_seq[:, step:step + 1]     # (B, 1) tokens
        logits, cache_k, cache_v = transformer_forward(
            params, stk, tok, step, cache_k, cache_v, freqs_cos, freqs_sin)
        logits = jax.block_until_ready(logits)
        ref_logits, rck, rcv = ref_forward(
            params, tok, step, rck, rcv, freqs_cos, freqs_sin)
        if not bool(jnp.all(jnp.isfinite(logits))):
            ok = False
        if not bool(jnp.allclose(logits, ref_logits, atol=2e-2, rtol=2e-2)):
            ok = False

    if ok:
        print("KERNEL_OK")
    else:
        print("KERNEL_MISMATCH")
</pallas_src>

<mosaic_0001>
module attributes {stable_mosaic.version = 11 : i64} {
  func.func @llama_decode_kernel(%arg0: i32, %arg1: memref<1xi32, #tpu.memory_space<smem>>, %arg2: memref<2x256xf32, #tpu.memory_space<vmem>>, %arg3: memref<2x2x1x16x128xf32, #tpu.memory_space<any>>, %arg4: memref<2x2x1x16x128xf32, #tpu.memory_space<any>>, %arg5: memref<1x128xf32, #tpu.memory_space<vmem>>, %arg6: memref<1x128xf32, #tpu.memory_space<vmem>>, %arg7: memref<1x1x256xf32, #tpu.memory_space<vmem>>, %arg8: memref<1x1x256xf32, #tpu.memory_space<vmem>>, %arg9: memref<1x256x256xbf16, #tpu.memory_space<vmem>>, %arg10: memref<1x256x128xbf16, #tpu.memory_space<vmem>>, %arg11: memref<1x256x128xbf16, #tpu.memory_space<vmem>>, %arg12: memref<1x256x256xbf16, #tpu.memory_space<vmem>>, %arg13: memref<1x256x768xbf16, #tpu.memory_space<vmem>>, %arg14: memref<1x768x256xbf16, #tpu.memory_space<vmem>>, %arg15: memref<1x256x768xbf16, #tpu.memory_space<vmem>>, %arg16: memref<1x256xf32, #tpu.memory_space<vmem>>, %arg17: memref<256x256xbf16, #tpu.memory_space<vmem>>, %arg18: memref<2x256xf32, #tpu.memory_space<vmem>>, %arg19: memref<2x2x1x16x128xf32, #tpu.memory_space<any>>, %arg20: memref<2x2x1x16x128xf32, #tpu.memory_space<any>>, %arg21: memref<2x256xf32, #tpu.memory_space<vmem>>, %arg22: memref<2x1x16x128xf32, #tpu.memory_space<vmem>>, %arg23: memref<2x1x16x128xf32, #tpu.memory_space<vmem>>, %arg24: memref<2x!tpu.dma_semaphore, #tpu.memory_space<semaphore_mem>>, %arg25: memref<2x2x!tpu.dma_semaphore, #tpu.memory_space<semaphore_mem>>) attributes {dimension_semantics = [#tpu.dimension_semantics<arbitrary>], iteration_bounds = array<i64: 2>, scalar_prefetch = 0 : i64, scratch_operands = 5 : i64, tpu.core_type = #tpu.core_type<tc>, window_params = [{transform_indices = @transform_0, window_bounds = array<i64: 1>}, {pipeline_mode = #tpu.pipeline_mode<synchronous>, transform_indices = @transform_1, window_bounds = array<i64: 2, 256>}, {}, {}, {pipeline_mode = #tpu.pipeline_mode<synchronous>, transform_indices = @transform_4, window_bounds = array<i64: 1, 128>}, {pipeline_mode = #tpu.pipeline_mode<synchronous>, transform_indices = @transform_5, window_bounds = array<i64: 1, 128>}, {transform_indices = @transform_6, window_bounds = array<i64: 1, 1, 256>}, {transform_indices = @transform_7, window_bounds = array<i64: 1, 1, 256>}, {transform_indices = @transform_8, window_bounds = array<i64: 1, 256, 256>}, {transform_indices = @transform_9, window_bounds = array<i64: 1, 256, 128>}, {transform_indices = @transform_10, window_bounds = array<i64: 1, 256, 128>}, {transform_indices = @transform_11, window_bounds = array<i64: 1, 256, 256>}, {transform_indices = @transform_12, window_bounds = array<i64: 1, 256, 768>}, {transform_indices = @transform_13, window_bounds = array<i64: 1, 768, 256>}, {transform_indices = @transform_14, window_bounds = array<i64: 1, 256, 768>}, {pipeline_mode = #tpu.pipeline_mode<synchronous>, transform_indices = @transform_15, window_bounds = array<i64: 1, 256>}, {pipeline_mode = #tpu.pipeline_mode<synchronous>, transform_indices = @transform_16, window_bounds = array<i64: 256, 256>}, {pipeline_mode = #tpu.pipeline_mode<synchronous>, transform_indices = @transform_17, window_bounds = array<i64: 2, 256>}, {}, {}]} {
    %c0 = arith.constant 0 : index
    %0 = memref.load %arg1[%c0] : memref<1xi32, #tpu.memory_space<smem>>
    %c0_i32 = arith.constant 0 : i32
    %c0_i32_0 = arith.constant 0 : i32
    %c0_i32_1 = arith.constant 0 : i32
    %c0_i32_2 = arith.constant 0 : i32
    %c0_i32_3 = arith.constant 0 : i32
    %1 = tpu.memref_slice %arg3[%arg0, %c0_i32_0, %c0_i32_1, %c0_i32_2, %c0_i32_3] : memref<2x2x1x16x128xf32, #tpu.memory_space<any>> -> memref<1x2x1x16x128xf32, #tpu.memory_space<any>>
    %2 = tpu.memref_squeeze %1 : memref<1x2x1x16x128xf32, #tpu.memory_space<any>> -> memref<2x1x16x128xf32, #tpu.memory_space<any>>
    %3 = tpu.memref_slice %arg24[%c0_i32] : memref<2x!tpu.dma_semaphore, #tpu.memory_space<semaphore_mem>> -> memref<1x!tpu.dma_semaphore, #tpu.memory_space<semaphore_mem>>
    %4 = tpu.memref_squeeze %3 : memref<1x!tpu.dma_semaphore, #tpu.memory_space<semaphore_mem>> -> memref<!tpu.dma_semaphore, #tpu.memory_space<semaphore_mem>>
    tpu.enqueue_dma source(%2 : memref<2x1x16x128xf32, #tpu.memory_space<any>>) target(%arg22 : memref<2x1x16x128xf32, #tpu.memory_space<vmem>>) target_semaphore(%4 : memref<!tpu.dma_semaphore, #tpu.memory_space<semaphore_mem>>)
    %c1_i32 = arith.constant 1 : i32
    %c0_i32_4 = arith.constant 0 : i32
    %c0_i32_5 = arith.constant 0 : i32
    %c0_i32_6 = arith.constant 0 : i32
    %c0_i32_7 = arith.constant 0 : i32
    %5 = tpu.memref_slice %arg4[%arg0, %c0_i32_4, %c0_i32_5, %c0_i32_6, %c0_i32_7] : memref<2x2x1x16x128xf32, #tpu.memory_space<any>> -> memref<1x2x1x16x128xf32, #tpu.memory_space<any>>
    %6 = tpu.memref_squeeze %5 : memref<1x2x1x16x128xf32, #tpu.memory_space<any>> -> memref<2x1x16x128xf32, #tpu.memory_space<any>>
    %7 = tpu.memref_slice %arg24[%c1_i32] : memref<2x!tpu.dma_semaphore, #tpu.memory_space<semaphore_mem>> -> memref<1x!tpu.dma_semaphore, #tpu.memory_space<semaphore_mem>>
    %8 = tpu.memref_squeeze %7 : memref<1x!tpu.dma_semaphore, #tpu.memory_space<semaphore_mem>> -> memref<!tpu.dma_semaphore, #tpu.memory_space<semaphore_mem>>
    tpu.enqueue_dma source(%6 : memref<2x1x16x128xf32, #tpu.memory_space<any>>) target(%arg23 : memref<2x1x16x128xf32, #tpu.memory_space<vmem>>) target_semaphore(%8 : memref<!tpu.dma_semaphore, #tpu.memory_space<semaphore_mem>>)
    %c0_i32_8 = arith.constant 0 : i32
    %9 = arith.cmpi eq, %arg0, %c0_i32_8 : i32
    %10 = arith.extui %9 : i1 to i32
    %c0_i32_9 = arith.constant 0 : i32
    %11 = arith.cmpi ne, %10, %c0_i32_9 : i32
    scf.if %11 {
      %c0_177 = arith.constant 0 : index
      %c0_178 = arith.constant 0 : index
      %237 = vector.load %arg2[%c0_177, %c0_178] : memref<2x256xf32, #tpu.memory_space<vmem>>, vector<2x256xf32>
      %c0_179 = arith.constant 0 : index
      %c0_180 = arith.constant 0 : index
      %238 = vector.load %arg21[%c0_179, %c0_180] : memref<2x256xf32, #tpu.memory_space<vmem>>, vector<2x256xf32>
      tpu.vector_store %arg21[%c0_179, %c0_180], %237 {strides = array<i32>} : memref<2x256xf32, #tpu.memory_space<vmem>>, vector<2x256xf32>,
    } else {
    }
    %c0_10 = arith.constant 0 : index
    %c0_11 = arith.constant 0 : index
    %12 = vector.load %arg21[%c0_10, %c0_11] : memref<2x256xf32, #tpu.memory_space<vmem>>, vector<2x256xf32>
    %c0_12 = arith.constant 0 : index
    %c0_13 = arith.constant 0 : index
    %c0_14 = arith.constant 0 : index
    %13 = vector.load %arg7[%c0_12, %c0_13, %c0_14] : memref<1x1x256xf32, #tpu.memory_space<vmem>>, vector<1x1x256xf32>
    %14 = vector.shape_cast %13 : vector<1x1x256xf32> to vector<1x256xf32>
    %15 = arith.mulf %12, %12 : vector<2x256xf32>
    %cst = arith.constant dense<0.000000e+00> : vector<2xf32>
    %16 = vector.multi_reduction <add>, %15, %cst [1] : vector<2x256xf32> to vector<2xf32>
    %17 = vector.shape_cast %16 : vector<2xf32> to vector<2x1xf32>
    %cst_15 = arith.constant 2.560000e+02 : f32
    %18 = vector.broadcast %cst_15 : f32 to vector<2x1xf32>
    %19 = arith.divf %17, %18 : vector<2x1xf32>
    %cst_16 = arith.constant 9.99999974E-6 : f32
    %20 = vector.broadcast %cst_16 : f32 to vector<2x1xf32>
    %21 = arith.addf %19, %20 : vector<2x1xf32>
    %22 = math.rsqrt %21 : vector<2x1xf32>
    %23 = vector.broadcast %22 : vector<2x1xf32> to vector<2x256xf32>
    %24 = arith.mulf %12, %23 : vector<2x256xf32>
    %25 = vector.broadcast %14 : vector<1x256xf32> to vector<2x256xf32>
    %26 = arith.mulf %25, %24 : vector<2x256xf32>
    %27 = arith.truncf %26 : vector<2x256xf32> to vector<2x256xbf16>
    %c0_17 = arith.constant 0 : index
    %c0_18 = arith.constant 0 : index
    %c0_19 = arith.constant 0 : index
    %28 = vector.load %arg9[%c0_17, %c0_18, %c0_19] : memref<1x256x256xbf16, #tpu.memory_space<vmem>>, vector<1x256x256xbf16>
    %29 = vector.shape_cast %28 : vector<1x256x256xbf16> to vector<256x256xbf16>
    %cst_20 = arith.constant dense<0.000000e+00> : vector<2x256xf32>
    %30 = tpu.matmul %27, %29, %cst_20 {dimension_numbers = #tpu.dot_dimension_numbers<[1], [0], [0], [1], [0, 0, 1, 1], [], []>} : vector<2x256xbf16>, vector<256x256xbf16>, vector<2x256xf32> -> vector<2x256xf32>
    %c0_21 = arith.constant 0 : index
    %c0_22 = arith.constant 0 : index
    %c0_23 = arith.constant 0 : index
    %31 = vector.load %arg10[%c0_21, %c0_22, %c0_23] : memref<1x256x128xbf16, #tpu.memory_space<vmem>>, vector<1x256x128xbf16>
    %32 = vector.shape_cast %31 : vector<1x256x128xbf16> to vector<256x128xbf16>
    %cst_24 = arith.constant dense<0.000000e+00> : vector<2x128xf32>
    %33 = tpu.matmul %27, %32, %cst_24 {dimension_numbers = #tpu.dot_dimension_numbers<[1], [0], [0], [1], [0, 0, 1, 1], [], []>} : vector<2x256xbf16>, vector<256x128xbf16>, vector<2x128xf32> -> vector<2x128xf32>
    %c0_25 = arith.constant 0 : index
    %c0_26 = arith.constant 0 : index
    %c0_27 = arith.constant 0 : index
    %34 = vector.load %arg11[%c0_25, %c0_26, %c0_27] : memref<1x256x128xbf16, #tpu.memory_space<vmem>>, vector<1x256x128xbf16>
    %35 = vector.shape_cast %34 : vector<1x256x128xbf16> to vector<256x128xbf16>
    %cst_28 = arith.constant dense<0.000000e+00> : vector<2x128xf32>
    %36 = tpu.matmul %27, %35, %cst_28 {dimension_numbers = #tpu.dot_dimension_numbers<[1], [0], [0], [1], [0, 0, 1, 1], [], []>} : vector<2x256xbf16>, vector<256x128xbf16>, vector<2x128xf32> -> vector<2x128xf32>
    %c0_29 = arith.constant 0 : index
    %c0_30 = arith.constant 0 : index
    %37 = vector.load %arg5[%c0_29, %c0_30] : memref<1x128xf32, #tpu.memory_space<vmem>>, vector<1x128xf32>
    %c0_31 = arith.constant 0 : index
    %c0_32 = arith.constant 0 : index
    %38 = vector.load %arg6[%c0_31, %c0_32] : memref<1x128xf32, #tpu.memory_space<vmem>>, vector<1x128xf32>
    %39 = vector.extract_strided_slice %30 {offsets = [0, 0], sizes = [2, 128], strides = [1, 1]} : vector<2x256xf32> to vector<2x128xf32>
    %40 = vector.broadcast %37 : vector<1x128xf32> to vector<2x128xf32>
    %41 = arith.mulf %39, %40 : vector<2x128xf32>
    %c64_i32 = arith.constant 64 : i32
    %42 = tpu.dynamic_rotate %39 by %c64_i32 dim 1 : vector<2x128xf32>, i32 -> vector<2x128xf32>
    %43 = vector.broadcast %38 : vector<1x128xf32> to vector<2x128xf32>
    %44 = arith.mulf %42, %43 : vector<2x128xf32>
    %45 = arith.addf %41, %44 : vector<2x128xf32>
    %46 = vector.extract_strided_slice %30 {offsets = [0, 128], sizes = [2, 128], strides = [1, 1]} : vector<2x256xf32> to vector<2x128xf32>
    %47 = vector.broadcast %37 : vector<1x128xf32> to vector<2x128xf32>
    %48 = arith.mulf %46, %47 : vector<2x128xf32>
    %c64_i32_33 = arith.constant 64 : i32
    %49 = tpu.dynamic_rotate %46 by %c64_i32_33 dim 1 : vector<2x128xf32>, i32 -> vector<2x128xf32>
    %50 = vector.broadcast %38 : vector<1x128xf32> to vector<2x128xf32>
    %51 = arith.mulf %49, %50 : vector<2x128xf32>
    %52 = arith.addf %48, %51 : vector<2x128xf32>
    %53 = vector.broadcast %37 : vector<1x128xf32> to vector<2x128xf32>
    %54 = arith.mulf %33, %53 : vector<2x128xf32>
    %c64_i32_34 = arith.constant 64 : i32
    %55 = tpu.dynamic_rotate %33 by %c64_i32_34 dim 1 : vector<2x128xf32>, i32 -> vector<2x128xf32>
    %56 = vector.broadcast %38 : vector<1x128xf32> to vector<2x128xf32>
    %57 = arith.mulf %55, %56 : vector<2x128xf32>
    %58 = arith.addf %54, %57 : vector<2x128xf32>
    %c0_i32_35 = arith.constant 0 : i32
    %c0_i32_36 = arith.constant 0 : i32
    %c0_i32_37 = arith.constant 0 : i32
    %c0_i32_38 = arith.constant 0 : i32
    %c0_i32_39 = arith.constant 0 : i32
    %59 = tpu.memref_slice %arg3[%arg0, %c0_i32_36, %c0_i32_37, %c0_i32_38, %c0_i32_39] : memref<2x2x1x16x128xf32, #tpu.memory_space<any>> -> memref<1x2x1x16x128xf32, #tpu.memory_space<any>>
    %60 = tpu.memref_squeeze %59 : memref<1x2x1x16x128xf32, #tpu.memory_space<any>> -> memref<2x1x16x128xf32, #tpu.memory_space<any>>
    %61 = tpu.memref_slice %arg24[%c0_i32_35] : memref<2x!tpu.dma_semaphore, #tpu.memory_space<semaphore_mem>> -> memref<1x!tpu.dma_semaphore, #tpu.memory_space<semaphore_mem>>
    %62 = tpu.memref_squeeze %61 : memref<1x!tpu.dma_semaphore, #tpu.memory_space<semaphore_mem>> -> memref<!tpu.dma_semaphore, #tpu.memory_space<semaphore_mem>>
    tpu.wait_dma2 semaphore(%62 : memref<!tpu.dma_semaphore, #tpu.memory_space<semaphore_mem>>) src(%60 : memref<2x1x16x128xf32, #tpu.memory_space<any>>) dst(%arg22 : memref<2x1x16x128xf32, #tpu.memory_space<vmem>>)
    %c1_i32_40 = arith.constant 1 : i32
    %c0_i32_41 = arith.constant 0 : i32
    %c0_i32_42 = arith.constant 0 : i32
    %c0_i32_43 = arith.constant 0 : i32
    %c0_i32_44 = arith.constant 0 : i32
    %63 = tpu.memref_slice %arg4[%arg0, %c0_i32_41, %c0_i32_42, %c0_i32_43, %c0_i32_44] : memref<2x2x1x16x128xf32, #tpu.memory_space<any>> -> memref<1x2x1x16x128xf32, #tpu.memory_space<any>>
    %64 = tpu.memref_squeeze %63 : memref<1x2x1x16x128xf32, #tpu.memory_space<any>> -> memref<2x1x16x128xf32, #tpu.memory_space<any>>
    %65 = tpu.memref_slice %arg24[%c1_i32_40] : memref<2x!tpu.dma_semaphore, #tpu.memory_space<semaphore_mem>> -> memref<1x!tpu.dma_semaphore, #tpu.memory_space<semaphore_mem>>
    %66 = tpu.memref_squeeze %65 : memref<1x!tpu.dma_semaphore, #tpu.memory_space<semaphore_mem>> -> memref<!tpu.dma_semaphore, #tpu.memory_space<semaphore_mem>>
    tpu.wait_dma2 semaphore(%66 : memref<!tpu.dma_semaphore, #tpu.memory_space<semaphore_mem>>) src(%64 : memref<2x1x16x128xf32, #tpu.memory_space<any>>) dst(%arg23 : memref<2x1x16x128xf32, #tpu.memory_space<vmem>>)
    %67 = vector.extract_strided_slice %58 {offsets = [0, 0], sizes = [1, 128], strides = [1, 1]} : vector<2x128xf32> to vector<1x128xf32>
    %c0_45 = arith.constant 0 : index
    %c0_46 = arith.constant 0 : index
    %68 = arith.index_cast %0 : i32 to index
    %c0_47 = arith.constant 0 : index
    %69 = vector.load %arg22[%c0_45, %c0_46, %68, %c0_47] : memref<2x1x16x128xf32, #tpu.memory_space<vmem>>, vector<1x1x1x128xf32>
    %70 = vector.shape_cast %69 : vector<1x1x1x128xf32> to vector<1x128xf32>
    %71 = vector.shape_cast %67 : vector<1x128xf32> to vector<1x1x1x128xf32>
    tpu.vector_store %arg22[%c0_45, %c0_46, %68, %c0_47], %71 {strides = array<i32>} : memref<2x1x16x128xf32, #tpu.memory_space<vmem>>, vector<1x1x1x128xf32>,
    %72 = vector.extract_strided_slice %36 {offsets = [0, 0], sizes = [1, 128], strides = [1, 1]} : vector<2x128xf32> to vector<1x128xf32>
    %c0_48 = arith.constant 0 : index
    %c0_49 = arith.constant 0 : index
    %73 = arith.index_cast %0 : i32 to index
    %c0_50 = arith.constant 0 : index
    %74 = vector.load %arg23[%c0_48, %c0_49, %73, %c0_50] : memref<2x1x16x128xf32, #tpu.memory_space<vmem>>, vector<1x1x1x128xf32>
    %75 = vector.shape_cast %74 : vector<1x1x1x128xf32> to vector<1x128xf32>
    %76 = vector.shape_cast %72 : vector<1x128xf32> to vector<1x1x1x128xf32>
    tpu.vector_store %arg23[%c0_48, %c0_49, %73, %c0_50], %76 {strides = array<i32>} : memref<2x1x16x128xf32, #tpu.memory_space<vmem>>, vector<1x1x1x128xf32>,
    %c0_i32_51 = arith.constant 0 : i32
    %c0_i32_52 = arith.constant 0 : i32
    %c0_i32_53 = arith.constant 0 : i32
    %c0_i32_54 = arith.constant 0 : i32
    %c0_i32_55 = arith.constant 0 : i32
    %c0_i32_56 = arith.constant 0 : i32
    %c0_i32_57 = arith.constant 0 : i32
    %77 = tpu.memref_slice %arg22[%c0_i32_51, %c0_i32_52, %0, %c0_i32_57] : memref<2x1x16x128xf32, #tpu.memory_space<vmem>> -> memref<1x1x1x128xf32, #tpu.memory_space<vmem>>
    %78 = tpu.memref_squeeze %77 : memref<1x1x1x128xf32, #tpu.memory_space<vmem>> -> memref<1x128xf32, #tpu.memory_space<vmem>>
    %c0_i32_58 = arith.constant 0 : i32
    %79 = tpu.memref_slice %arg19[%arg0, %c0_i32_53, %c0_i32_54, %0, %c0_i32_58] : memref<2x2x1x16x128xf32, #tpu.memory_space<any>> -> memref<1x1x1x1x128xf32, #tpu.memory_space<any>>
    %80 = tpu.memref_squeeze %79 : memref<1x1x1x1x128xf32, #tpu.memory_space<any>> -> memref<1x128xf32, #tpu.memory_space<any>>
    %81 = tpu.memref_slice %arg25[%c0_i32_55, %c0_i32_56] : memref<2x2x!tpu.dma_semaphore, #tpu.memory_space<semaphore_mem>> -> memref<1x1x!tpu.dma_semaphore, #tpu.memory_space<semaphore_mem>>
    %82 = tpu.memref_squeeze %81 : memref<1x1x!tpu.dma_semaphore, #tpu.memory_space<semaphore_mem>> -> memref<!tpu.dma_semaphore, #tpu.memory_space<semaphore_mem>>
    tpu.enqueue_dma source(%78 : memref<1x128xf32, #tpu.memory_space<vmem>>) target(%80 : memref<1x128xf32, #tpu.memory_space<any>>) target_semaphore(%82 : memref<!tpu.dma_semaphore, #tpu.memory_space<semaphore_mem>>)
    %c0_i32_59 = arith.constant 0 : i32
    %c0_i32_60 = arith.constant 0 : i32
    %c0_i32_61 = arith.constant 0 : i32
    %c0_i32_62 = arith.constant 0 : i32
    %c1_i32_63 = arith.constant 1 : i32
    %c0_i32_64 = arith.constant 0 : i32
    %c0_i32_65 = arith.constant 0 : i32
    %83 = tpu.memref_slice %arg23[%c0_i32_59, %c0_i32_60, %0, %c0_i32_65] : memref<2x1x16x128xf32, #tpu.memory_space<vmem>> -> memref<1x1x1x128xf32, #tpu.memory_space<vmem>>
    %84 = tpu.memref_squeeze %83 : memref<1x1x1x128xf32, #tpu.memory_space<vmem>> -> memref<1x128xf32, #tpu.memory_space<vmem>>
    %c0_i32_66 = arith.constant 0 : i32
    %85 = tpu.memref_slice %arg20[%arg0, %c0_i32_61, %c0_i32_62, %0, %c0_i32_66] : memref<2x2x1x16x128xf32, #tpu.memory_space<any>> -> memref<1x1x1x1x128xf32, #tpu.memory_space<any>>
    %86 = tpu.memref_squeeze %85 : memref<1x1x1x1x128xf32, #tpu.memory_space<any>> -> memref<1x128xf32, #tpu.memory_space<any>>
    %87 = tpu.memref_slice %arg25[%c1_i32_63, %c0_i32_64] : memref<2x2x!tpu.dma_semaphore, #tpu.memory_space<semaphore_mem>> -> memref<1x1x!tpu.dma_semaphore, #tpu.memory_space<semaphore_mem>>
    %88 = tpu.memref_squeeze %87 : memref<1x1x!tpu.dma_semaphore, #tpu.memory_space<semaphore_mem>> -> memref<!tpu.dma_semaphore, #tpu.memory_space<semaphore_mem>>
    tpu.enqueue_dma source(%84 : memref<1x128xf32, #tpu.memory_space<vmem>>) target(%86 : memref<1x128xf32, #tpu.memory_space<any>>) target_semaphore(%88 : memref<!tpu.dma_semaphore, #tpu.memory_space<semaphore_mem>>)
    %89 = vector.extract_strided_slice %58 {offsets = [1, 0], sizes = [1, 128], strides = [1, 1]} : vector<2x128xf32> to vector<1x128xf32>
    %c1 = arith.constant 1 : index
    %c0_67 = arith.constant 0 : index
    %90 = arith.index_cast %0 : i32 to index
    %c0_68 = arith.constant 0 : index
    %91 = vector.load %arg22[%c1, %c0_67, %90, %c0_68] : memref<2x1x16x128xf32, #tpu.memory_space<vmem>>, vector<1x1x1x128xf32>
    %92 = vector.shape_cast %91 : vector<1x1x1x128xf32> to vector<1x128xf32>
    %93 = vector.shape_cast %89 : vector<1x128xf32> to vector<1x1x1x128xf32>
    tpu.vector_store %arg22[%c1, %c0_67, %90, %c0_68], %93 {strides = array<i32>} : memref<2x1x16x128xf32, #tpu.memory_space<vmem>>, vector<1x1x1x128xf32>,
    %94 = vector.extract_strided_slice %36 {offsets = [1, 0], sizes = [1, 128], strides = [1, 1]} : vector<2x128xf32> to vector<1x128xf32>
    %c1_69 = arith.constant 1 : index
    %c0_70 = arith.constant 0 : index
    %95 = arith.index_cast %0 : i32 to index
    %c0_71 = arith.constant 0 : index
    %96 = vector.load %arg23[%c1_69, %c0_70, %95, %c0_71] : memref<2x1x16x128xf32, #tpu.memory_space<vmem>>, vector<1x1x1x128xf32>
    %97 = vector.shape_cast %96 : vector<1x1x1x128xf32> to vector<1x128xf32>
    %98 = vector.shape_cast %94 : vector<1x128xf32> to vector<1x1x1x128xf32>
    tpu.vector_store %arg23[%c1_69, %c0_70, %95, %c0_71], %98 {strides = array<i32>} : memref<2x1x16x128xf32, #tpu.memory_space<vmem>>, vector<1x1x1x128xf32>,
    %c1_i32_72 = arith.constant 1 : i32
    %c0_i32_73 = arith.constant 0 : i32
    %c1_i32_74 = arith.constant 1 : i32
    %c0_i32_75 = arith.constant 0 : i32
    %c0_i32_76 = arith.constant 0 : i32
    %c1_i32_77 = arith.constant 1 : i32
    %c0_i32_78 = arith.constant 0 : i32
    %99 = tpu.memref_slice %arg22[%c1_i32_72, %c0_i32_73, %0, %c0_i32_78] : memref<2x1x16x128xf32, #tpu.memory_space<vmem>> -> memref<1x1x1x128xf32, #tpu.memory_space<vmem>>
    %100 = tpu.memref_squeeze %99 : memref<1x1x1x128xf32, #tpu.memory_space<vmem>> -> memref<1x128xf32, #tpu.memory_space<vmem>>
    %c0_i32_79 = arith.constant 0 : i32
    %101 = tpu.memref_slice %arg19[%arg0, %c1_i32_74, %c0_i32_75, %0, %c0_i32_79] : memref<2x2x1x16x128xf32, #tpu.memory_space<any>> -> memref<1x1x1x1x128xf32, #tpu.memory_space<any>>
    %102 = tpu.memref_squeeze %101 : memref<1x1x1x1x128xf32, #tpu.memory_space<any>> -> memref<1x128xf32, #tpu.memory_space<any>>
    %103 = tpu.memref_slice %arg25[%c0_i32_76, %c1_i32_77] : memref<2x2x!tpu.dma_semaphore, #tpu.memory_space<semaphore_mem>> -> memref<1x1x!tpu.dma_semaphore, #tpu.memory_space<semaphore_mem>>
    %104 = tpu.memref_squeeze %103 : memref<1x1x!tpu.dma_semaphore, #tpu.memory_space<semaphore_mem>> -> memref<!tpu.dma_semaphore, #tpu.memory_space<semaphore_mem>>
    tpu.enqueue_dma source(%100 : memref<1x128xf32, #tpu.memory_space<vmem>>) target(%102 : memref<1x128xf32, #tpu.memory_space<any>>) target_semaphore(%104 : memref<!tpu.dma_semaphore, #tpu.memory_space<semaphore_mem>>)
    %c1_i32_80 = arith.constant 1 : i32
    %c0_i32_81 = arith.constant 0 : i32
    %c1_i32_82 = arith.constant 1 : i32
    %c0_i32_83 = arith.constant 0 : i32
    %c1_i32_84 = arith.constant 1 : i32
    %c1_i32_85 = arith.constant 1 : i32
    %c0_i32_86 = arith.constant 0 : i32
    %105 = tpu.memref_slice %arg23[%c1_i32_80, %c0_i32_81, %0, %c0_i32_86] : memref<2x1x16x128xf32, #tpu.memory_space<vmem>> -> memref<1x1x1x128xf32, #tpu.memory_space<vmem>>
    %106 = tpu.memref_squeeze %105 : memref<1x1x1x128xf32, #tpu.memory_space<vmem>> -> memref<1x128xf32, #tpu.memory_space<vmem>>
    %c0_i32_87 = arith.constant 0 : i32
    %107 = tpu.memref_slice %arg20[%arg0, %c1_i32_82, %c0_i32_83, %0, %c0_i32_87] : memref<2x2x1x16x128xf32, #tpu.memory_space<any>> -> memref<1x1x1x1x128xf32, #tpu.memory_space<any>>
    %108 = tpu.memref_squeeze %107 : memref<1x1x1x1x128xf32, #tpu.memory_space<any>> -> memref<1x128xf32, #tpu.memory_space<any>>
    %109 = tpu.memref_slice %arg25[%c1_i32_84, %c1_i32_85] : memref<2x2x!tpu.dma_semaphore, #tpu.memory_space<semaphore_mem>> -> memref<1x1x!tpu.dma_semaphore, #tpu.memory_space<semaphore_mem>>
    %110 = tpu.memref_squeeze %109 : memref<1x1x!tpu.dma_semaphore, #tpu.memory_space<semaphore_mem>> -> memref<!tpu.dma_semaphore, #tpu.memory_space<semaphore_mem>>
    tpu.enqueue_dma source(%106 : memref<1x128xf32, #tpu.memory_space<vmem>>) target(%108 : memref<1x128xf32, #tpu.memory_space<any>>) target_semaphore(%110 : memref<!tpu.dma_semaphore, #tpu.memory_space<semaphore_mem>>)
    %c1_i32_88 = arith.constant 1 : i32
    %111 = arith.addi %0, %c1_i32_88 : i32
    %112 = tpu.iota {dimensions = array<i32: 1>} : vector<2x16xi32>
    %113 = vector.extract_strided_slice %45 {offsets = [0, 0], sizes = [1, 128], strides = [1, 1]} : vector<2x128xf32> to vector<1x128xf32>
    %114 = vector.extract_strided_slice %52 {offsets = [0, 0], sizes = [1, 128], strides = [1, 1]} : vector<2x128xf32> to vector<1x128xf32>
    %115 = tpu.concatenate %113, %114 in 0 : vector<1x128xf32>, vector<1x128xf32> -> vector<2x128xf32>
    %c0_89 = arith.constant 0 : index
    %c0_90 = arith.constant 0 : index
    %c0_91 = arith.constant 0 : index
    %c0_92 = arith.constant 0 : index
    %116 = vector.load %arg22[%c0_89, %c0_90, %c0_91, %c0_92] : memref<2x1x16x128xf32, #tpu.memory_space<vmem>>, vector<1x1x16x128xf32>
    %117 = vector.shape_cast %116 : vector<1x1x16x128xf32> to vector<16x128xf32>
    %c0_93 = arith.constant 0 : index
    %c0_94 = arith.constant 0 : index
    %c0_95 = arith.constant 0 : index
    %c0_96 = arith.constant 0 : index
    %118 = vector.load %arg23[%c0_93, %c0_94, %c0_95, %c0_96] : memref<2x1x16x128xf32, #tpu.memory_space<vmem>>, vector<1x1x16x128xf32>
    %119 = vector.shape_cast %118 : vector<1x1x16x128xf32> to vector<16x128xf32>
    %cst_97 = arith.constant dense<0.000000e+00> : vector<2x16xf32>
    %120 = tpu.matmul %115, %117, %cst_97 {dimension_numbers = #tpu.dot_dimension_numbers<[1], [1], [0], [0], [0, 0, 1, 0], [], []>} : vector<2x128xf32>, vector<16x128xf32>, vector<2x16xf32> -> vector<2x16xf32>
    %cst_98 = arith.constant 0.0883883461 : f32
    %121 = vector.broadcast %cst_98 : f32 to vector<2x16xf32>
    %122 = arith.mulf %120, %121 : vector<2x16xf32>
    %123 = vector.broadcast %111 : i32 to vector<2x16xi32>
    %124 = arith.cmpi slt, %112, %123 : vector<2x16xi32>
    %cst_99 = arith.constant 0xFF800000 : f32
    %125 = vector.broadcast %cst_99 : f32 to vector<2x16xf32>
    %126 = arith.select %124, %122, %125 : vector<2x16xi1>, vector<2x16xf32>
    %cst_100 = arith.constant dense<0xFF800000> : vector<2xf32>
    %127 = vector.multi_reduction <maximumf>, %126, %cst_100 [1] : vector<2x16xf32> to vector<2xf32>
    %128 = vector.shape_cast %127 : vector<2xf32> to vector<2x1xf32>
    %129 = vector.broadcast %128 : vector<2x1xf32> to vector<2x16xf32>
    %130 = arith.subf %126, %129 : vector<2x16xf32>
    %131 = math.exp %130 : vector<2x16xf32>
    %cst_101 = arith.constant dense<0.000000e+00> : vector<2xf32>
    %132 = vector.multi_reduction <add>, %131, %cst_101 [1] : vector<2x16xf32> to vector<2xf32>
    %133 = vector.shape_cast %132 : vector<2xf32> to vector<2x1xf32>
    %134 = tpu.reciprocal %133 {approx = true} : vector<2x1xf32> -> vector<2x1xf32>
    %135 = vector.broadcast %134 : vector<2x1xf32> to vector<2x16xf32>
    %136 = arith.mulf %131, %135 : vector<2x16xf32>
    %cst_102 = arith.constant dense<0.000000e+00> : vector<2x128xf32>
    %137 = tpu.matmul %136, %119, %cst_102 {dimension_numbers = #tpu.dot_dimension_numbers<[1], [0], [0], [1], [0, 0, 1, 1], [], []>} : vector<2x16xf32>, vector<16x128xf32>, vector<2x128xf32> -> vector<2x128xf32>
    %138 = vector.extract_strided_slice %137 {offsets = [0, 0], sizes = [1, 128], strides = [1, 1]} : vector<2x128xf32> to vector<1x128xf32>
    %139 = vector.extract_strided_slice %137 {offsets = [1, 0], sizes = [1, 128], strides = [1, 1]} : vector<2x128xf32> to vector<1x128xf32>
    %140 = tpu.concatenate %138, %139 in 1 : vector<1x128xf32>, vector<1x128xf32> -> vector<1x256xf32>
    %141 = vector.extract_strided_slice %45 {offsets = [1, 0], sizes = [1, 128], strides = [1, 1]} : vector<2x128xf32> to vector<1x128xf32>
    %142 = vector.extract_strided_slice %52 {offsets = [1, 0], sizes = [1, 128], strides = [1, 1]} : vector<2x128xf32> to vector<1x128xf32>
    %143 = tpu.concatenate %141, %142 in 0 : vector<1x128xf32>, vector<1x128xf32> -> vector<2x128xf32>
    %c1_103 = arith.constant 1 : index
    %c0_104 = arith.constant 0 : index
    %c0_105 = arith.constant 0 : index
    %c0_106 = arith.constant 0 : index
    %144 = vector.load %arg22[%c1_103, %c0_104, %c0_105, %c0_106] : memref<2x1x16x128xf32, #tpu.memory_space<vmem>>, vector<1x1x16x128xf32>
    %145 = vector.shape_cast %144 : vector<1x1x16x128xf32> to vector<16x128xf32>
    %c1_107 = arith.constant 1 : index
    %c0_108 = arith.constant 0 : index
    %c0_109 = arith.constant 0 : index
    %c0_110 = arith.constant 0 : index
    %146 = vector.load %arg23[%c1_107, %c0_108, %c0_109, %c0_110] : memref<2x1x16x128xf32, #tpu.memory_space<vmem>>, vector<1x1x16x128xf32>
    %147 = vector.shape_cast %146 : vector<1x1x16x128xf32> to vector<16x128xf32>
    %cst_111 = arith.constant dense<0.000000e+00> : vector<2x16xf32>
    %148 = tpu.matmul %143, %145, %cst_111 {dimension_numbers = #tpu.dot_dimension_numbers<[1], [1], [0], [0], [0, 0, 1, 0], [], []>} : vector<2x128xf32>, vector<16x128xf32>, vector<2x16xf32> -> vector<2x16xf32>
    %cst_112 = arith.constant 0.0883883461 : f32
    %149 = vector.broadcast %cst_112 : f32 to vector<2x16xf32>
    %150 = arith.mulf %148, %149 : vector<2x16xf32>
    %151 = vector.broadcast %111 : i32 to vector<2x16xi32>
    %152 = arith.cmpi slt, %112, %151 : vector<2x16xi32>
    %cst_113 = arith.constant 0xFF800000 : f32
    %153 = vector.broadcast %cst_113 : f32 to vector<2x16xf32>
    %154 = arith.select %152, %150, %153 : vector<2x16xi1>, vector<2x16xf32>
    %cst_114 = arith.constant dense<0xFF800000> : vector<2xf32>
    %155 = vector.multi_reduction <maximumf>, %154, %cst_114 [1] : vector<2x16xf32> to vector<2xf32>
    %156 = vector.shape_cast %155 : vector<2xf32> to vector<2x1xf32>
    %157 = vector.broadcast %156 : vector<2x1xf32> to vector<2x16xf32>
    %158 = arith.subf %154, %157 : vector<2x16xf32>
    %159 = math.exp %158 : vector<2x16xf32>
    %cst_115 = arith.constant dense<0.000000e+00> : vector<2xf32>
    %160 = vector.multi_reduction <add>, %159, %cst_115 [1] : vector<2x16xf32> to vector<2xf32>
    %161 = vector.shape_cast %160 : vector<2xf32> to vector<2x1xf32>
    %162 = tpu.reciprocal %161 {approx = true} : vector<2x1xf32> -> vector<2x1xf32>
    %163 = vector.broadcast %162 : vector<2x1xf32> to vector<2x16xf32>
    %164 = arith.mulf %159, %163 : vector<2x16xf32>
    %cst_116 = arith.constant dense<0.000000e+00> : vector<2x128xf32>
    %165 = tpu.matmul %164, %147, %cst_116 {dimension_numbers = #tpu.dot_dimension_numbers<[1], [0], [0], [1], [0, 0, 1, 1], [], []>} : vector<2x16xf32>, vector<16x128xf32>, vector<2x128xf32> -> vector<2x128xf32>
    %166 = vector.extract_strided_slice %165 {offsets = [0, 0], sizes = [1, 128], strides = [1, 1]} : vector<2x128xf32> to vector<1x128xf32>
    %167 = vector.extract_strided_slice %165 {offsets = [1, 0], sizes = [1, 128], strides = [1, 1]} : vector<2x128xf32> to vector<1x128xf32>
    %168 = tpu.concatenate %166, %167 in 1 : vector<1x128xf32>, vector<1x128xf32> -> vector<1x256xf32>
    %169 = tpu.concatenate %140, %168 in 0 : vector<1x256xf32>, vector<1x256xf32> -> vector<2x256xf32>
    %170 = arith.truncf %169 : vector<2x256xf32> to vector<2x256xbf16>
    %c0_117 = arith.constant 0 : index
    %c0_118 = arith.constant 0 : index
    %c0_119 = arith.constant 0 : index
    %171 = vector.load %arg12[%c0_117, %c0_118, %c0_119] : memref<1x256x256xbf16, #tpu.memory_space<vmem>>, vector<1x256x256xbf16>
    %172 = vector.shape_cast %171 : vector<1x256x256xbf16> to vector<256x256xbf16>
    %cst_120 = arith.constant dense<0.000000e+00> : vector<2x256xf32>
    %173 = tpu.matmul %170, %172, %cst_120 {dimension_numbers = #tpu.dot_dimension_numbers<[1], [0], [0], [1], [0, 0, 1, 1], [], []>} : vector<2x256xbf16>, vector<256x256xbf16>, vector<2x256xf32> -> vector<2x256xf32>
    %174 = arith.addf %12, %173 : vector<2x256xf32>
    %c0_121 = arith.constant 0 : index
    %c0_122 = arith.constant 0 : index
    %c0_123 = arith.constant 0 : index
    %175 = vector.load %arg8[%c0_121, %c0_122, %c0_123] : memref<1x1x256xf32, #tpu.memory_space<vmem>>, vector<1x1x256xf32>
    %176 = vector.shape_cast %175 : vector<1x1x256xf32> to vector<1x256xf32>
    %177 = arith.mulf %12, %12 : vector<2x256xf32>
    %cst_124 = arith.constant dense<0.000000e+00> : vector<2xf32>
    %178 = vector.multi_reduction <add>, %177, %cst_124 [1] : vector<2x256xf32> to vector<2xf32>
    %179 = vector.shape_cast %178 : vector<2xf32> to vector<2x1xf32>
    %cst_125 = arith.constant 2.560000e+02 : f32
    %180 = vector.broadcast %cst_125 : f32 to vector<2x1xf32>
    %181 = arith.divf %179, %180 : vector<2x1xf32>
    %cst_126 = arith.constant 9.99999974E-6 : f32
    %182 = vector.broadcast %cst_126 : f32 to vector<2x1xf32>
    %183 = arith.addf %181, %182 : vector<2x1xf32>
    %184 = math.rsqrt %183 : vector<2x1xf32>
    %185 = vector.broadcast %184 : vector<2x1xf32> to vector<2x256xf32>
    %186 = arith.mulf %12, %185 : vector<2x256xf32>
    %187 = vector.broadcast %176 : vector<1x256xf32> to vector<2x256xf32>
    %188 = arith.mulf %187, %186 : vector<2x256xf32>
    %189 = arith.truncf %188 : vector<2x256xf32> to vector<2x256xbf16>
    %c0_127 = arith.constant 0 : index
    %c0_128 = arith.constant 0 : index
    %c0_129 = arith.constant 0 : index
    %190 = vector.load %arg13[%c0_127, %c0_128, %c0_129] : memref<1x256x768xbf16, #tpu.memory_space<vmem>>, vector<1x256x768xbf16>
    %191 = vector.shape_cast %190 : vector<1x256x768xbf16> to vector<256x768xbf16>
    %cst_130 = arith.constant dense<0.000000e+00> : vector<2x768xf32>
    %192 = tpu.matmul %189, %191, %cst_130 {dimension_numbers = #tpu.dot_dimension_numbers<[1], [0], [0], [1], [0, 0, 1, 1], [], []>} : vector<2x256xbf16>, vector<256x768xbf16>, vector<2x768xf32> -> vector<2x768xf32>
    %c0_131 = arith.constant 0 : index
    %c0_132 = arith.constant 0 : index
    %c0_133 = arith.constant 0 : index
    %193 = vector.load %arg15[%c0_131, %c0_132, %c0_133] : memref<1x256x768xbf16, #tpu.memory_space<vmem>>, vector<1x256x768xbf16>
    %194 = vector.shape_cast %193 : vector<1x256x768xbf16> to vector<256x768xbf16>
    %cst_134 = arith.constant dense<0.000000e+00> : vector<2x768xf32>
    %195 = tpu.matmul %189, %194, %cst_134 {dimension_numbers = #tpu.dot_dimension_numbers<[1], [0], [0], [1], [0, 0, 1, 1], [], []>} : vector<2x256xbf16>, vector<256x768xbf16>, vector<2x768xf32> -> vector<2x768xf32>
    %cst_135 = arith.constant 0.000000e+00 : f32
    %196 = vector.broadcast %cst_135 : f32 to vector<2x768xf32>
    %197 = arith.subf %196, %192 : vector<2x768xf32>
    %198 = math.exp %197 : vector<2x768xf32>
    %cst_136 = arith.constant 1.000000e+00 : f32
    %199 = vector.broadcast %cst_136 : f32 to vector<2x768xf32>
    %200 = arith.addf %199, %198 : vector<2x768xf32>
    %201 = tpu.reciprocal %200 {approx = true} : vector<2x768xf32> -> vector<2x768xf32>
    %202 = arith.mulf %192, %201 : vector<2x768xf32>
    %203 = arith.mulf %202, %195 : vector<2x768xf32>
    %204 = arith.truncf %203 : vector<2x768xf32> to vector<2x768xbf16>
    %c0_137 = arith.constant 0 : index
    %c0_138 = arith.constant 0 : index
    %c0_139 = arith.constant 0 : index
    %205 = vector.load %arg14[%c0_137, %c0_138, %c0_139] : memref<1x768x256xbf16, #tpu.memory_space<vmem>>, vector<1x768x256xbf16>
    %206 = vector.shape_cast %205 : vector<1x768x256xbf16> to vector<768x256xbf16>
    %cst_140 = arith.constant dense<0.000000e+00> : vector<2x256xf32>
    %207 = tpu.matmul %204, %206, %cst_140 {dimension_numbers = #tpu.dot_dimension_numbers<[1], [0], [0], [1], [0, 0, 1, 1], [], []>} : vector<2x768xbf16>, vector<768x256xbf16>, vector<2x256xf32> -> vector<2x256xf32>
    %208 = arith.addf %174, %207 : vector<2x256xf32>
    %c0_141 = arith.constant 0 : index
    %c0_142 = arith.constant 0 : index
    %209 = vector.load %arg21[%c0_141, %c0_142] : memref<2x256xf32, #tpu.memory_space<vmem>>, vector<2x256xf32>
    tpu.vector_store %arg21[%c0_141, %c0_142], %208 {strides = array<i32>} : memref<2x256xf32, #tpu.memory_space<vmem>>, vector<2x256xf32>,
    %c1_i32_143 = arith.constant 1 : i32
    %210 = arith.cmpi eq, %arg0, %c1_i32_143 : i32
    %211 = arith.extui %210 : i1 to i32
    %c0_i32_144 = arith.constant 0 : i32
    %212 = arith.cmpi ne, %211, %c0_i32_144 : i32
    scf.if %212 {
      %c0_177 = arith.constant 0 : index
      %c0_178 = arith.constant 0 : index
      %237 = vector.load %arg16[%c0_177, %c0_178] : memref<1x256xf32, #tpu.memory_space<vmem>>, vector<1x256xf32>
      %238 = arith.mulf %208, %208 : vector<2x256xf32>
      %cst_179 = arith.constant dense<0.000000e+00> : vector<2xf32>
      %239 = vector.multi_reduction <add>, %238, %cst_179 [1] : vector<2x256xf32> to vector<2xf32>
      %240 = vector.shape_cast %239 : vector<2xf32> to vector<2x1xf32>
      %cst_180 = arith.constant 2.560000e+02 : f32
      %241 = vector.broadcast %cst_180 : f32 to vector<2x1xf32>
      %242 = arith.divf %240, %241 : vector<2x1xf32>
      %cst_181 = arith.constant 9.99999974E-6 : f32
      %243 = vector.broadcast %cst_181 : f32 to vector<2x1xf32>
      %244 = arith.addf %242, %243 : vector<2x1xf32>
      %245 = math.rsqrt %244 : vector<2x1xf32>
      %246 = vector.broadcast %245 : vector<2x1xf32> to vector<2x256xf32>
      %247 = arith.mulf %208, %246 : vector<2x256xf32>
      %248 = vector.broadcast %237 : vector<1x256xf32> to vector<2x256xf32>
      %249 = arith.mulf %248, %247 : vector<2x256xf32>
      %250 = arith.truncf %249 : vector<2x256xf32> to vector<2x256xbf16>
      %c0_182 = arith.constant 0 : index
      %c0_183 = arith.constant 0 : index
      %251 = vector.load %arg17[%c0_182, %c0_183] : memref<256x256xbf16, #tpu.memory_space<vmem>>, vector<256x256xbf16>
      %cst_184 = arith.constant dense<0.000000e+00> : vector<2x256xf32>
      %252 = tpu.matmul %250, %251, %cst_184 {dimension_numbers = #tpu.dot_dimension_numbers<[1], [0], [0], [1], [0, 0, 1, 1], [], []>} : vector<2x256xbf16>, vector<256x256xbf16>, vector<2x256xf32> -> vector<2x256xf32>
      %c0_185 = arith.constant 0 : index
      %c0_186 = arith.constant 0 : index
      %253 = vector.load %arg18[%c0_185, %c0_186] : memref<2x256xf32, #tpu.memory_space<vmem>>, vector<2x256xf32>
      tpu.vector_store %arg18[%c0_185, %c0_186], %252 {strides = array<i32>} : memref<2x256xf32, #tpu.memory_space<vmem>>, vector<2x256xf32>,
    } else {
    }
    %c0_i32_145 = arith.constant 0 : i32
    %c0_i32_146 = arith.constant 0 : i32
    %c0_i32_147 = arith.constant 0 : i32
    %c0_i32_148 = arith.constant 0 : i32
    %c0_i32_149 = arith.constant 0 : i32
    %c0_i32_150 = arith.constant 0 : i32
    %c0_i32_151 = arith.constant 0 : i32
    %213 = tpu.memref_slice %arg22[%c0_i32_145, %c0_i32_146, %0, %c0_i32_151] : memref<2x1x16x128xf32, #tpu.memory_space<vmem>> -> memref<1x1x1x128xf32, #tpu.memory_space<vmem>>
    %214 = tpu.memref_squeeze %213 : memref<1x1x1x128xf32, #tpu.memory_space<vmem>> -> memref<1x128xf32, #tpu.memory_space<vmem>>
    %c0_i32_152 = arith.constant 0 : i32
    %215 = tpu.memref_slice %arg19[%arg0, %c0_i32_147, %c0_i32_148, %0, %c0_i32_152] : memref<2x2x1x16x128xf32, #tpu.memory_space<any>> -> memref<1x1x1x1x128xf32, #tpu.memory_space<any>>
    %216 = tpu.memref_squeeze %215 : memref<1x1x1x1x128xf32, #tpu.memory_space<any>> -> memref<1x128xf32, #tpu.memory_space<any>>
    %217 = tpu.memref_slice %arg25[%c0_i32_149, %c0_i32_150] : memref<2x2x!tpu.dma_semaphore, #tpu.memory_space<semaphore_mem>> -> memref<1x1x!tpu.dma_semaphore, #tpu.memory_space<semaphore_mem>>
    %218 = tpu.memref_squeeze %217 : memref<1x1x!tpu.dma_semaphore, #tpu.memory_space<semaphore_mem>> -> memref<!tpu.dma_semaphore, #tpu.memory_space<semaphore_mem>>
    tpu.wait_dma2 semaphore(%218 : memref<!tpu.dma_semaphore, #tpu.memory_space<semaphore_mem>>) src(%214 : memref<1x128xf32, #tpu.memory_space<vmem>>) dst(%216 : memref<1x128xf32, #tpu.memory_space<any>>)
    %c0_i32_153 = arith.constant 0 : i32
    %c0_i32_154 = arith.constant 0 : i32
    %c0_i32_155 = arith.constant 0 : i32
    %c0_i32_156 = arith.constant 0 : i32
    %c1_i32_157 = arith.constant 1 : i32
    %c0_i32_158 = arith.constant 0 : i32
    %c0_i32_159 = arith.constant 0 : i32
    %219 = tpu.memref_slice %arg23[%c0_i32_153, %c0_i32_154, %0, %c0_i32_159] : memref<2x1x16x128xf32, #tpu.memory_space<vmem>> -> memref<1x1x1x128xf32, #tpu.memory_space<vmem>>
    %220 = tpu.memref_squeeze %219 : memref<1x1x1x128xf32, #tpu.memory_space<vmem>> -> memref<1x128xf32, #tpu.memory_space<vmem>>
    %c0_i32_160 = arith.constant 0 : i32
    %221 = tpu.memref_slice %arg20[%arg0, %c0_i32_155, %c0_i32_156, %0, %c0_i32_160] : memref<2x2x1x16x128xf32, #tpu.memory_space<any>> -> memref<1x1x1x1x128xf32, #tpu.memory_space<any>>
    %222 = tpu.memref_squeeze %221 : memref<1x1x1x1x128xf32, #tpu.memory_space<any>> -> memref<1x128xf32, #tpu.memory_space<any>>
    %223 = tpu.memref_slice %arg25[%c1_i32_157, %c0_i32_158] : memref<2x2x!tpu.dma_semaphore, #tpu.memory_space<semaphore_mem>> -> memref<1x1x!tpu.dma_semaphore, #tpu.memory_space<semaphore_mem>>
    %224 = tpu.memref_squeeze %223 : memref<1x1x!tpu.dma_semaphore, #tpu.memory_space<semaphore_mem>> -> memref<!tpu.dma_semaphore, #tpu.memory_space<semaphore_mem>>
    tpu.wait_dma2 semaphore(%224 : memref<!tpu.dma_semaphore, #tpu.memory_space<semaphore_mem>>) src(%220 : memref<1x128xf32, #tpu.memory_space<vmem>>) dst(%222 : memref<1x128xf32, #tpu.memory_space<any>>)
    %c1_i32_161 = arith.constant 1 : i32
    %c0_i32_162 = arith.constant 0 : i32
    %c1_i32_163 = arith.constant 1 : i32
    %c0_i32_164 = arith.constant 0 : i32
    %c0_i32_165 = arith.constant 0 : i32
    %c1_i32_166 = arith.constant 1 : i32
    %c0_i32_167 = arith.constant 0 : i32
    %225 = tpu.memref_slice %arg22[%c1_i32_161, %c0_i32_162, %0, %c0_i32_167] : memref<2x1x16x128xf32, #tpu.memory_space<vmem>> -> memref<1x1x1x128xf32, #tpu.memory_space<vmem>>
    %226 = tpu.memref_squeeze %225 : memref<1x1x1x128xf32, #tpu.memory_space<vmem>> -> memref<1x128xf32, #tpu.memory_space<vmem>>
    %c0_i32_168 = arith.constant 0 : i32
    %227 = tpu.memref_slice %arg19[%arg0, %c1_i32_163, %c0_i32_164, %0, %c0_i32_168] : memref<2x2x1x16x128xf32, #tpu.memory_space<any>> -> memref<1x1x1x1x128xf32, #tpu.memory_space<any>>
    %228 = tpu.memref_squeeze %227 : memref<1x1x1x1x128xf32, #tpu.memory_space<any>> -> memref<1x128xf32, #tpu.memory_space<any>>
    %229 = tpu.memref_slice %arg25[%c0_i32_165, %c1_i32_166] : memref<2x2x!tpu.dma_semaphore, #tpu.memory_space<semaphore_mem>> -> memref<1x1x!tpu.dma_semaphore, #tpu.memory_space<semaphore_mem>>
    %230 = tpu.memref_squeeze %229 : memref<1x1x!tpu.dma_semaphore, #tpu.memory_space<semaphore_mem>> -> memref<!tpu.dma_semaphore, #tpu.memory_space<semaphore_mem>>
    tpu.wait_dma2 semaphore(%230 : memref<!tpu.dma_semaphore, #tpu.memory_space<semaphore_mem>>) src(%226 : memref<1x128xf32, #tpu.memory_space<vmem>>) dst(%228 : memref<1x128xf32, #tpu.memory_space<any>>)
    %c1_i32_169 = arith.constant 1 : i32
    %c0_i32_170 = arith.constant 0 : i32
    %c1_i32_171 = arith.constant 1 : i32
    %c0_i32_172 = arith.constant 0 : i32
    %c1_i32_173 = arith.constant 1 : i32
    %c1_i32_174 = arith.constant 1 : i32
    %c0_i32_175 = arith.constant 0 : i32
    %231 = tpu.memref_slice %arg23[%c1_i32_169, %c0_i32_170, %0, %c0_i32_175] : memref<2x1x16x128xf32, #tpu.memory_space<vmem>> -> memref<1x1x1x128xf32, #tpu.memory_space<vmem>>
    %232 = tpu.memref_squeeze %231 : memref<1x1x1x128xf32, #tpu.memory_space<vmem>> -> memref<1x128xf32, #tpu.memory_space<vmem>>
    %c0_i32_176 = arith.constant 0 : i32
    %233 = tpu.memref_slice %arg20[%arg0, %c1_i32_171, %c0_i32_172, %0, %c0_i32_176] : memref<2x2x1x16x128xf32, #tpu.memory_space<any>> -> memref<1x1x1x1x128xf32, #tpu.memory_space<any>>
    %234 = tpu.memref_squeeze %233 : memref<1x1x1x1x128xf32, #tpu.memory_space<any>> -> memref<1x128xf32, #tpu.memory_space<any>>
    %235 = tpu.memref_slice %arg25[%c1_i32_173, %c1_i32_174] : memref<2x2x!tpu.dma_semaphore, #tpu.memory_space<semaphore_mem>> -> memref<1x1x!tpu.dma_semaphore, #tpu.memory_space<semaphore_mem>>
    %236 = tpu.memref_squeeze %235 : memref<1x1x!tpu.dma_semaphore, #tpu.memory_space<semaphore_mem>> -> memref<!tpu.dma_semaphore, #tpu.memory_space<semaphore_mem>>
    tpu.wait_dma2 semaphore(%236 : memref<!tpu.dma_semaphore, #tpu.memory_space<semaphore_mem>>) src(%232 : memref<1x128xf32, #tpu.memory_space<vmem>>) dst(%234 : memref<1x128xf32, #tpu.memory_space<any>>)
    return
  }
  func.func @transform_0(%arg0: i32) -> i32 {
    %c0_i32 = arith.constant 0 : i32
    %c0_i32_0 = arith.constant 0 : i32
    return %c0_i32 : i32
  }
  func.func @transform_1(%arg0: i32) -> (i32, i32) {
    %c0_i32 = arith.constant 0 : i32
    %c0_i32_0 = arith.constant 0 : i32
    %c0_i32_1 = arith.constant 0 : i32
    return %c0_i32, %c0_i32_0 : i32, i32
  }
  func.func @transform_4(%arg0: i32) -> (i32, i32) {
    %c0_i32 = arith.constant 0 : i32
    %c0_i32_0 = arith.constant 0 : i32
    %c0_i32_1 = arith.constant 0 : i32
    return %c0_i32, %c0_i32_0 : i32, i32
  }
  func.func @transform_5(%arg0: i32) -> (i32, i32) {
    %c0_i32 = arith.constant 0 : i32
    %c0_i32_0 = arith.constant 0 : i32
    %c0_i32_1 = arith.constant 0 : i32
    return %c0_i32, %c0_i32_0 : i32, i32
  }
  func.func @transform_6(%arg0: i32) -> (i32, i32, i32) {
    %c0_i32 = arith.constant 0 : i32
    %c0_i32_0 = arith.constant 0 : i32
    %c0_i32_1 = arith.constant 0 : i32
    return %arg0, %c0_i32, %c0_i32_0 : i32, i32, i32
  }
  func.func @transform_7(%arg0: i32) -> (i32, i32, i32) {
    %c0_i32 = arith.constant 0 : i32
    %c0_i32_0 = arith.constant 0 : i32
    %c0_i32_1 = arith.constant 0 : i32
    return %arg0, %c0_i32, %c0_i32_0 : i32, i32, i32
  }
  func.func @transform_8(%arg0: i32) -> (i32, i32, i32) {
    %c0_i32 = arith.constant 0 : i32
    %c0_i32_0 = arith.constant 0 : i32
    %c0_i32_1 = arith.constant 0 : i32
    return %arg0, %c0_i32, %c0_i32_0 : i32, i32, i32
  }
  func.func @transform_9(%arg0: i32) -> (i32, i32, i32) {
    %c0_i32 = arith.constant 0 : i32
    %c0_i32_0 = arith.constant 0 : i32
    %c0_i32_1 = arith.constant 0 : i32
    return %arg0, %c0_i32, %c0_i32_0 : i32, i32, i32
  }
  func.func @transform_10(%arg0: i32) -> (i32, i32, i32) {
    %c0_i32 = arith.constant 0 : i32
    %c0_i32_0 = arith.constant 0 : i32
    %c0_i32_1 = arith.constant 0 : i32
    return %arg0, %c0_i32, %c0_i32_0 : i32, i32, i32
  }
  func.func @transform_11(%arg0: i32) -> (i32, i32, i32) {
    %c0_i32 = arith.constant 0 : i32
    %c0_i32_0 = arith.constant 0 : i32
    %c0_i32_1 = arith.constant 0 : i32
    return %arg0, %c0_i32, %c0_i32_0 : i32, i32, i32
  }
  func.func @transform_12(%arg0: i32) -> (i32, i32, i32) {
    %c0_i32 = arith.constant 0 : i32
    %c0_i32_0 = arith.constant 0 : i32
    %c0_i32_1 = arith.constant 0 : i32
    return %arg0, %c0_i32, %c0_i32_0 : i32, i32, i32
  }
  func.func @transform_13(%arg0: i32) -> (i32, i32, i32) {
    %c0_i32 = arith.constant 0 : i32
    %c0_i32_0 = arith.constant 0 : i32
    %c0_i32_1 = arith.constant 0 : i32
    return %arg0, %c0_i32, %c0_i32_0 : i32, i32, i32
  }
  func.func @transform_14(%arg0: i32) -> (i32, i32, i32) {
    %c0_i32 = arith.constant 0 : i32
    %c0_i32_0 = arith.constant 0 : i32
    %c0_i32_1 = arith.constant 0 : i32
    return %arg0, %c0_i32, %c0_i32_0 : i32, i32, i32
  }
  func.func @transform_15(%arg0: i32) -> (i32, i32) {
    %c0_i32 = arith.constant 0 : i32
    %c0_i32_0 = arith.constant 0 : i32
    %c0_i32_1 = arith.constant 0 : i32
    return %c0_i32, %c0_i32_0 : i32, i32
  }
  func.func @transform_16(%arg0: i32) -> (i32, i32) {
    %c0_i32 = arith.constant 0 : i32
    %c0_i32_0 = arith.constant 0 : i32
    %c0_i32_1 = arith.constant 0 : i32
    return %c0_i32, %c0_i32_0 : i32, i32
  }
  func.func @transform_17(%arg0: i32) -> (i32, i32) {
    %c0_i32 = arith.constant 0 : i32
    %c0_i32_0 = arith.constant 0 : i32
    %c0_i32_1 = arith.constant 0 : i32
    return %c0_i32, %c0_i32_0 : i32, i32
  }
}

</mosaic_0001>

<llo_original>
// kernel: tpu_custom_call.1
$region0: #{tpu_custom_call.1}
  #allocation0 [shape = 'u32[]', space=smem, size = 0x4, offset = 0x4, fixed_abs, tag = 'smem constant byte address 0x4 - core index']
  #allocation1 [shape = 'u32[72,128]{1,0:T(1,128)}', space=vmem, size = 0x9000, scoped, tag = 'internal scratch']
  #allocation2 [shape = 'f32[2,256]{1,0:T(2,128)}', space=vmem, size = 0x800, scoped, tag = 'scratch operand']
  #allocation3 [shape = 'f32[2,1,16,128]{3,2,1,0:T(8,128)}', space=vmem, size = 0x4000, scoped, tag = 'scratch operand']
  #allocation4 [shape = 'f32[2,1,16,128]{3,2,1,0:T(8,128)}', space=vmem, size = 0x4000, scoped, tag = 'scratch operand']
  #allocation5 [shape = 's32[2]{0}', space=sflag, size = 0x8, scoped, tag = 'scratch operand']
  #allocation6 [shape = 's32[4]{0}', space=sflag, size = 0x10, scoped, tag = 'scratch operand']
  #allocation7 [shape = 's32[1]{0:T(128)S(6)}', space=smem, size = 0x200, scoped, tag = 'scoped memory for tpu_custom_call.1']
  #allocation23 [shape = 's32[]', space=sflag, size = 0x4, offset = 0, fixed_abs, tag = 'sflag constant byte address 0x0 - dummy sync flag']
  #allocation24 [shape = 's32[]', space=sflag, size = 0x4, offset = 0, fixed_abs, tag = 'sflag constant byte address 0x0 - dummy sync flag']
  #allocation25 [shape = 'u32[]', space=smem, size = 0x4, offset = 0x44, fixed_abs, tag = 'smem constant byte address 0x44 - assertion arg 0']
  #allocation26 [shape = 'u32[]', space=smem, size = 0x4, offset = 0x48, fixed_abs, tag = 'smem constant byte address 0x48 - assertion arg 1']
  #allocation27 [shape = 's32[]', space=sflag, size = 0x4, offset = 0, fixed_abs, tag = 'sflag constant byte address 0x0 - dummy sync flag']
  #allocation28 [shape = 's32[]', space=sflag, size = 0x4, offset = 0, fixed_abs, tag = 'sflag constant byte address 0x0 - dummy sync flag']
  #allocation29 [shape = 's32[]', space=sflag, size = 0x4, offset = 0, fixed_abs, tag = 'sflag constant byte address 0x0 - dummy sync flag']
  #allocation30 [shape = 's32[]', space=sflag, size = 0x4, offset = 0, fixed_abs, tag = 'sflag constant byte address 0x0 - dummy sync flag']
  #allocation31 [shape = 's32[]', space=sflag, size = 0x4, offset = 0, fixed_abs, tag = 'sflag constant byte address 0x0 - dummy sync flag']
  #allocation32 [shape = 's32[]', space=sflag, size = 0x4, offset = 0, fixed_abs, tag = 'sflag constant byte address 0x0 - dummy sync flag']
  #allocation33 [shape = 's32[]', space=sflag, size = 0x4, offset = 0, fixed_abs, tag = 'sflag constant byte address 0x0 - dummy sync flag']
  #allocation34 [shape = 's32[]', space=sflag, size = 0x4, offset = 0, fixed_abs, tag = 'sflag constant byte address 0x0 - dummy sync flag']
  #allocation35 [shape = 's32[]', space=sflag, size = 0x4, offset = 0, fixed_abs, tag = 'sflag constant byte address 0x0 - dummy sync flag']
  #allocation36 [shape = 's32[]', space=sflag, size = 0x4, offset = 0, fixed_abs, tag = 'sflag constant byte address 0x0 - dummy sync flag']
  %s0 = inlined_call_operand.<no memory space> [shape: s32[1], index: 0, kind: input, shape index: {}]
  %s1 = inlined_call_operand.vmem [shape: f32[2,256], index: 1, kind: input, shape index: {}]
  %s2 = inlined_call_operand.hbm [shape: f32[2,2,1,16,128], index: 2, kind: input, shape index: {}, may-alias: {2,18}]
  %s3 = inlined_call_operand.hbm [shape: f32[2,2,1,16,128], index: 3, kind: input, shape index: {}, may-alias: {3,19}]
  %s4 = inlined_call_operand.vmem [shape: f32[1,128], index: 4, kind: input, shape index: {}]
  %s5 = inlined_call_operand.vmem [shape: f32[1,128], index: 5, kind: input, shape index: {}]
  %s6 = inlined_call_operand.vmem [shape: f32[2,1,256], index: 6, kind: input, shape index: {}]
  %s7 = inlined_call_operand.vmem [shape: f32[2,1,256], index: 7, kind: input, shape index: {}]
  %s8 = inlined_call_operand.hbm [shape: bf16[2,256,256], index: 8, kind: input, shape index: {}]
  %s9 = inlined_call_operand.hbm [shape: bf16[2,256,128], index: 9, kind: input, shape index: {}]
  %s10 = inlined_call_operand.hbm [shape: bf16[2,256,128], index: 10, kind: input, shape index: {}]
  %s11 = inlined_call_operand.hbm [shape: bf16[2,256,256], index: 11, kind: input, shape index: {}]
  %s12 = inlined_call_operand.hbm [shape: bf16[2,256,768], index: 12, kind: input, shape index: {}]
  %s13 = inlined_call_operand.hbm [shape: bf16[2,768,256], index: 13, kind: input, shape index: {}]
  %s14 = inlined_call_operand.hbm [shape: bf16[2,256,768], index: 14, kind: input, shape index: {}]
  %s15 = inlined_call_operand.vmem [shape: f32[1,256], index: 15, kind: input, shape index: {}]
  %s16 = inlined_call_operand.hbm [shape: bf16[256,256], index: 16, kind: input, shape index: {}]
  %s17 = inlined_call_operand.hbm [shape: f32[2,256], index: 17, kind: output, shape index: {0}]
  %s18 = inlined_call_operand.hbm [shape: f32[2,2,1,16,128], index: 18, kind: output, shape index: {1}, may-alias: {2,18}]
  %s19 = inlined_call_operand.hbm [shape: f32[2,2,1,16,128], index: 19, kind: output, shape index: {2}, may-alias: {3,19}]
  %20 = xla_tuple %s17, %s18, %s19
  %s21 = sld [smem:[#allocation0]]
  $region157: #{tpu_custom_call.1} parent=0
    _
  %s23 = ssub.s32 1, %s21
  %s24 = scalar_select 0, %s23, %s21
  %25 = sst [smem:[#allocation7]] %s0
  $region1: #{tpu_custom_call.1} parent=0
    #allocation8 [shape = 'u8[262144]{0}', space=vmem, size = 0x40000, scoped, tag = 'input window, operand 8']
    #allocation9 [shape = 's32[2]{0}', space=sflag, size = 0x8, scoped, tag = 'scoped memory for tpu_custom_call.1']
    #allocation10 [shape = 's32[2]{0}', space=sflag, size = 0x8, scoped, tag = 'scoped memory for tpu_custom_call.1']
    #allocation11 [shape = 'u8[131072]{0}', space=vmem, size = 0x20000, scoped, tag = 'input window, operand 9']
    #allocation12 [shape = 's32[2]{0}', space=sflag, size = 0x8, scoped, tag = 'scoped memory for tpu_custom_call.1']
    #allocation13 [shape = 'u8[131072]{0}', space=vmem, size = 0x20000, scoped, tag = 'input window, operand 10']
    #allocation14 [shape = 'u8[262144]{0}', space=vmem, size = 0x40000, scoped, tag = 'input window, operand 11']
    #allocation15 [shape = 's32[2]{0}', space=sflag, size = 0x8, scoped, tag = 'scoped memory for tpu_custom_call.1']
    #allocation16 [shape = 'u8[786432]{0}', space=vmem, size = 0xc0000, scoped, tag = 'input window, operand 12']
    #allocation17 [shape = 'u8[786432]{0}', space=vmem, size = 0xc0000, scoped, tag = 'input window, operand 13']
    #allocation18 [shape = 's32[2]{0}', space=sflag, size = 0x8, scoped, tag = 'scoped memory for tpu_custom_call.1']
    #allocation19 [shape = 'u8[786432]{0}', space=vmem, size = 0xc0000, scoped, tag = 'input window, operand 14']
    #allocation20 [shape = 'u8[131072]{0}', space=vmem, size = 0x20000, scoped, tag = 'input window, operand 16, single buffered']
    #allocation21 [shape = 's32[1]{0}', space=sflag, size = 0x4, scoped, tag = 'scoped memory for tpu_custom_call.1']
    #allocation22 [shape = 'u8[2048]{0}', space=vmem, size = 0x800, scoped, tag = 'output window, operand 0, single buffered']
    %26 = vsyncpa [#allocation9], 0
    %s27 = scalar_lea.sflag [#allocation9], 1
    %28 = vsyncpa %s27, 0
    %29 = vsyncpa [#allocation12], 0
    %s30 = scalar_lea.sflag [#allocation12], 1
    %31 = vsyncpa %s30, 0
    %32 = vsyncpa [#allocation15], 0
    %s33 = scalar_lea.sflag [#allocation15], 1
    %34 = vsyncpa %s33, 0
    %35 = vsyncpa [#allocation18], 0
    %s36 = scalar_lea.sflag [#allocation18], 1
    %37 = vsyncpa %s36, 0
    %38 = vsyncpa [#allocation21], 0
    %39 = vsyncpa [#allocation10], 0
    loop: start=0, step=1, limit=4
    $region2: #{tpu_custom_call.1} parent=1 // loop_pre_header
      _
    $region3: #{tpu_custom_call.1} parent=1 // loop_header
      %s41 = sphi 0, %s45
      %p42 = scmp.ge.s32.totalorder %s41, 4
      %s49 = sphi 0, %s49
      %s51 = sphi 0, %s49
      %s52 = sphi 0, %s51
      %s66 = sphi 0, %s52
      %s70 = sphi 0, %s70
      %s72 = sphi 0, %s70
      %s73 = sphi 0, %s72
      %s87 = sphi 0, %s73
      %s91 = sphi 0, %s91
      %s93 = sphi 0, %s91
      %s94 = sphi 0, %s93
      %s108 = sphi 0, %s94
      %s112 = sphi 0, %s112
      %s114 = sphi 0, %s112
      %s115 = sphi 0, %s114
      %s129 = sphi 0, %s115
      %s135 = sphi 0, %s137
      %s138 = sphi 0, %s135
      %s139 = sphi 0, %s138
      %s155 = sphi 0, %s139
      %s161 = sphi 0, %s163
      %s164 = sphi 0, %s161
      %s165 = sphi 0, %s164
      %s181 = sphi 0, %s165
      %s187 = sphi 0, %s189
      %s190 = sphi 0, %s187
      %s191 = sphi 0, %s190
      %s207 = sphi 0, %s191
      %s213 = sphi 0, %s215
      %s216 = sphi 0, %s213
      %s217 = sphi 0, %s216
      %s233 = sphi 0, %s217
      %s239 = sphi 0, %s241
      %s242 = sphi 0, %s239
      %s243 = sphi 0, %s242
      %s259 = sphi 0, %s243
      %s265 = sphi 0, %s267
      %s268 = sphi 0, %s265
      %s269 = sphi 0, %s268
      %s285 = sphi 0, %s269
      %s291 = sphi 0, %s293
      %s294 = sphi 0, %s291
      %s295 = sphi 0, %s294
      %s311 = sphi 0, %s295
      %s317 = sphi 0, %s319
      %s320 = sphi 0, %s317
      %s321 = sphi 0, %s320
      %s337 = sphi 0, %s321
      %s343 = sphi 0, %s345
      %s346 = sphi 0, %s343
      %s347 = sphi 0, %s346
      %s363 = sphi 0, %s347
      %s367 = sphi 0, %s367
      %s369 = sphi 0, %s367
      %s370 = sphi 0, %s369
      %s384 = sphi 0, %s370
      %s388 = sphi 0, %s388
      %s390 = sphi 0, %s388
      %s391 = sphi 0, %s390
      %s405 = sphi 0, %s391
      %s409 = sphi 0, %s409
      %s411 = sphi 0, %s409
      %s412 = sphi 0, %s411
      %s426 = sphi 0, %s412
    $region4: #{tpu_custom_call.1} parent=1 // loop_header_branch
      %44 = sbr.rel (%p42) target = $region8
    $region5: #{tpu_custom_call.1} parent=1 // loop_body
      %s46 = ssub.s32 %s41, 1
      %s47 = ssub.s32 %s41, 2
      %s48 = sadd.s32 %s41, 1
      %s50 = sadd.s32 %s49, 1
      %p53 = scmp.eq.s32.totalorder %s41, 1
      %p54 = scmp.ne.s32.totalorder %s49, %s51
      %p55 = scmp.eq.s32.totalorder %s41, 0
      %p56 = por %p54, %p55
      %p57 = scmp.ne.s32.totalorder %s49, %s51
      %p58 = scmp.eq.s32.totalorder %s46, 1
      %p59 = por %p57, %p58
      %p60 = scmp.ne.s32.totalorder %s51, %s52
      %p61 = scmp.eq.s32.totalorder %s46, 0
      %p62 = por %p60, %p61
      %p63 = scmp.ne.s32.totalorder %s51, %s52
      %p64 = scmp.eq.s32.totalorder %s47, 1
      %p65 = por %p63, %p64
      %p67 = scmp.ne.s32.totalorder %s52, %s66
      %p68 = scmp.eq.s32.totalorder %s47, 0
      %p69 = por %p67, %p68
      %s71 = sadd.s32 %s70, 1
      %p74 = scmp.eq.s32.totalorder %s41, 1
      %p75 = scmp.ne.s32.totalorder %s70, %s72
      %p76 = scmp.eq.s32.totalorder %s41, 0
      %p77 = por %p75, %p76
      %p78 = scmp.ne.s32.totalorder %s70, %s72
      %p79 = scmp.eq.s32.totalorder %s46, 1
      %p80 = por %p78, %p79
      %p81 = scmp.ne.s32.totalorder %s72, %s73
      %p82 = scmp.eq.s32.totalorder %s46, 0
      %p83 = por %p81, %p82
      %p84 = scmp.ne.s32.totalorder %s72, %s73
      %p85 = scmp.eq.s32.totalorder %s47, 1
      %p86 = por %p84, %p85
      %p88 = scmp.ne.s32.totalorder %s73, %s87
      %p89 = scmp.eq.s32.totalorder %s47, 0
      %p90 = por %p88, %p89
      %s92 = sadd.s32 %s91, 1
      %p95 = scmp.eq.s32.totalorder %s41, 1
      %p96 = scmp.ne.s32.totalorder %s91, %s93
      %p97 = scmp.eq.s32.totalorder %s41, 0
      %p98 = por %p96, %p97
      %p99 = scmp.ne.s32.totalorder %s91, %s93
      %p100 = scmp.eq.s32.totalorder %s46, 1
      %p101 = por %p99, %p100
      %p102 = scmp.ne.s32.totalorder %s93, %s94
      %p103 = scmp.eq.s32.totalorder %s46, 0
      %p104 = por %p102, %p103
      %p105 = scmp.ne.s32.totalorder %s93, %s94
      %p106 = scmp.eq.s32.totalorder %s47, 1
      %p107 = por %p105, %p106
      %p109 = scmp.ne.s32.totalorder %s94, %s108
      %p110 = scmp.eq.s32.totalorder %s47, 0
      %p111 = por %p109, %p110
      %s113 = sadd.s32 %s112, 1
      %p116 = scmp.eq.s32.totalorder %s41, 1
      %p117 = scmp.ne.s32.totalorder %s112, %s114
      %p118 = scmp.eq.s32.totalorder %s41, 0
      %p119 = por %p117, %p118
      %p120 = scmp.ne.s32.totalorder %s112, %s114
      %p121 = scmp.eq.s32.totalorder %s46, 1
      %p122 = por %p120, %p121
      %p123 = scmp.ne.s32.totalorder %s114, %s115
      %p124 = scmp.eq.s32.totalorder %s46, 0
      %p125 = por %p123, %p124
      %p126 = scmp.ne.s32.totalorder %s114, %s115
      %p127 = scmp.eq.s32.totalorder %s47, 1
      %p128 = por %p126, %p127
      %p130 = scmp.ne.s32.totalorder %s115, %s129
      %p131 = scmp.eq.s32.totalorder %s47, 0
      %p132 = por %p130, %p131
      %s133 = ssub.s32 %s41, %s48
      %p134 = scmp.eq.s32.totalorder %s133, 0
      %s136 = sadd.s32 %s135, 1
      %s137 = scalar_select %p134, %s135, %s136
      %p140 = pneg %p134
      %p141 = scmp.eq.s32.totalorder %s41, 1
      %p142 = por %p140, %p141
      %p143 = scmp.ne.s32.totalorder %s135, %s138
      %p144 = scmp.eq.s32.totalorder %s41, 0
      %p145 = por %p143, %p144
      %p146 = scmp.ne.s32.totalorder %s135, %s138
      %p147 = scmp.eq.s32.totalorder %s46, 1
      %p148 = por %p146, %p147
      %p149 = scmp.ne.s32.totalorder %s138, %s139
      %p150 = scmp.eq.s32.totalorder %s46, 0
      %p151 = por %p149, %p150
      %p152 = scmp.ne.s32.totalorder %s138, %s139
      %p153 = scmp.eq.s32.totalorder %s47, 1
      %p154 = por %p152, %p153
      %p156 = scmp.ne.s32.totalorder %s139, %s155
      %p157 = scmp.eq.s32.totalorder %s47, 0
      %p158 = por %p156, %p157
      %s159 = ssub.s32 %s41, %s48
      %p160 = scmp.eq.s32.totalorder %s159, 0
      %s162 = sadd.s32 %s161, 1
      %s163 = scalar_select %p160, %s161, %s162
      %p166 = pneg %p160
      %p167 = scmp.eq.s32.totalorder %s41, 1
      %p168 = por %p166, %p167
      %p169 = scmp.ne.s32.totalorder %s161, %s164
      %p170 = scmp.eq.s32.totalorder %s41, 0
      %p171 = por %p169, %p170
      %p172 = scmp.ne.s32.totalorder %s161, %s164
      %p173 = scmp.eq.s32.totalorder %s46, 1
      %p174 = por %p172, %p173
      %p175 = scmp.ne.s32.totalorder %s164, %s165
      %p176 = scmp.eq.s32.totalorder %s46, 0
      %p177 = por %p175, %p176
      %p178 = scmp.ne.s32.totalorder %s164, %s165
      %p179 = scmp.eq.s32.totalorder %s47, 1
      %p180 = por %p178, %p179
      %p182 = scmp.ne.s32.totalorder %s165, %s181
      %p183 = scmp.eq.s32.totalorder %s47, 0
      %p184 = por %p182, %p183
      %s185 = ssub.s32 %s41, %s48
      %p186 = scmp.eq.s32.totalorder %s185, 0
      %s188 = sadd.s32 %s187, 1
      %s189 = scalar_select %p186, %s187, %s188
      %p192 = pneg %p186
      %p193 = scmp.eq.s32.totalorder %s41, 1
      %p194 = por %p192, %p193
      %p195 = scmp.ne.s32.totalorder %s187, %s190
      %p196 = scmp.eq.s32.totalorder %s41, 0
      %p197 = por %p195, %p196
      %p198 = scmp.ne.s32.totalorder %s187, %s190
      %p199 = scmp.eq.s32.totalorder %s46, 1
      %p200 = por %p198, %p199
      %p201 = scmp.ne.s32.totalorder %s190, %s191
      %p202 = scmp.eq.s32.totalorder %s46, 0
      %p203 = por %p201, %p202
      %p204 = scmp.ne.s32.totalorder %s190, %s191
      %p205 = scmp.eq.s32.totalorder %s47, 1
      %p206 = por %p204, %p205
      %p208 = scmp.ne.s32.totalorder %s191, %s207
      %p209 = scmp.eq.s32.totalorder %s47, 0
      %p210 = por %p208, %p209
      %s211 = ssub.s32 %s41, %s48
      %p212 = scmp.eq.s32.totalorder %s211, 0
      %s214 = sadd.s32 %s213, 1
      %s215 = scalar_select %p212, %s213, %s214
      %p218 = pneg %p212
      %p219 = scmp.eq.s32.totalorder %s41, 1
      %p220 = por %p218, %p219
      %p221 = scmp.ne.s32.totalorder %s213, %s216
      %p222 = scmp.eq.s32.totalorder %s41, 0
      %p223 = por %p221, %p222
      %p224 = scmp.ne.s32.totalorder %s213, %s216
      %p225 = scmp.eq.s32.totalorder %s46, 1
      %p226 = por %p224, %p225
      %p227 = scmp.ne.s32.totalorder %s216, %s217
      %p228 = scmp.eq.s32.totalorder %s46, 0
      %p229 = por %p227, %p228
      %p230 = scmp.ne.s32.totalorder %s216, %s217
      %p231 = scmp.eq.s32.totalorder %s47, 1
      %p232 = por %p230, %p231
      %p234 = scmp.ne.s32.totalorder %s217, %s233
      %p235 = scmp.eq.s32.totalorder %s47, 0
      %p236 = por %p234, %p235
      %s237 = ssub.s32 %s41, %s48
      %p238 = scmp.eq.s32.totalorder %s237, 0
      %s240 = sadd.s32 %s239, 1
      %s241 = scalar_select %p238, %s239, %s240
      %p244 = pneg %p238
      %p245 = scmp.eq.s32.totalorder %s41, 1
      %p246 = por %p244, %p245
      %p247 = scmp.ne.s32.totalorder %s239, %s242
      %p248 = scmp.eq.s32.totalorder %s41, 0
      %p249 = por %p247, %p248
      %p250 = scmp.ne.s32.totalorder %s239, %s242
      %p251 = scmp.eq.s32.totalorder %s46, 1
      %p252 = por %p250, %p251
      %p253 = scmp.ne.s32.totalorder %s242, %s243
      %p254 = scmp.eq.s32.totalorder %s46, 0
      %p255 = por %p253, %p254
      %p256 = scmp.ne.s32.totalorder %s242, %s243
      %p257 = scmp.eq.s32.totalorder %s47, 1
      %p258 = por %p256, %p257
      %p260 = scmp.ne.s32.totalorder %s243, %s259
      %p261 = scmp.eq.s32.totalorder %s47, 0
      %p262 = por %p260, %p261
      %s263 = ssub.s32 %s41, %s48
      %p264 = scmp.eq.s32.totalorder %s263, 0
      %s266 = sadd.s32 %s265, 1
      %s267 = scalar_select %p264, %s265, %s266
      %p270 = pneg %p264
      %p271 = scmp.eq.s32.totalorder %s41, 1
      %p272 = por %p270, %p271
      %p273 = scmp.ne.s32.totalorder %s265, %s268
      %p274 = scmp.eq.s32.totalorder %s41, 0
      %p275 = por %p273, %p274
      %p276 = scmp.ne.s32.totalorder %s265, %s268
      %p277 = scmp.eq.s32.totalorder %s46, 1
      %p278 = por %p276, %p277
      %p279 = scmp.ne.s32.totalorder %s268, %s269
      %p280 = scmp.eq.s32.totalorder %s46, 0
      %p281 = por %p279, %p280
      %p282 = scmp.ne.s32.totalorder %s268, %s269
      %p283 = scmp.eq.s32.totalorder %s47, 1
      %p284 = por %p282, %p283
      %p286 = scmp.ne.s32.totalorder %s269, %s285
      %p287 = scmp.eq.s32.totalorder %s47, 0
      %p288 = por %p286, %p287
      %s289 = ssub.s32 %s41, %s48
      %p290 = scmp.eq.s32.totalorder %s289, 0
      %s292 = sadd.s32 %s291, 1
      %s293 = scalar_select %p290, %s291, %s292
      %p296 = pneg %p290
      %p297 = scmp.eq.s32.totalorder %s41, 1
      %p298 = por %p296, %p297
      %p299 = scmp.ne.s32.totalorder %s291, %s294
      %p300 = scmp.eq.s32.totalorder %s41, 0
      %p301 = por %p299, %p300
      %p302 = scmp.ne.s32.totalorder %s291, %s294
      %p303 = scmp.eq.s32.totalorder %s46, 1
      %p304 = por %p302, %p303
      %p305 = scmp.ne.s32.totalorder %s294, %s295
      %p306 = scmp.eq.s32.totalorder %s46, 0
      %p307 = por %p305, %p306
      %p308 = scmp.ne.s32.totalorder %s294, %s295
      %p309 = scmp.eq.s32.totalorder %s47, 1
      %p310 = por %p308, %p309
      %p312 = scmp.ne.s32.totalorder %s295, %s311
      %p313 = scmp.eq.s32.totalorder %s47, 0
      %p314 = por %p312, %p313
      %s315 = ssub.s32 %s41, %s48
      %p316 = scmp.eq.s32.totalorder %s315, 0
      %s318 = sadd.s32 %s317, 1
      %s319 = scalar_select %p316, %s317, %s318
      %p322 = pneg %p316
      %p323 = scmp.eq.s32.totalorder %s41, 1
      %p324 = por %p322, %p323
      %p325 = scmp.ne.s32.totalorder %s317, %s320
      %p326 = scmp.eq.s32.totalorder %s41, 0
      %p327 = por %p325, %p326
      %p328 = scmp.ne.s32.totalorder %s317, %s320
      %p329 = scmp.eq.s32.totalorder %s46, 1
      %p330 = por %p328, %p329
      %p331 = scmp.ne.s32.totalorder %s320, %s321
      %p332 = scmp.eq.s32.totalorder %s46, 0
      %p333 = por %p331, %p332
      %p334 = scmp.ne.s32.totalorder %s320, %s321
      %p335 = scmp.eq.s32.totalorder %s47, 1
      %p336 = por %p334, %p335
      %p338 = scmp.ne.s32.totalorder %s321, %s337
      %p339 = scmp.eq.s32.totalorder %s47, 0
      %p340 = por %p338, %p339
      %s341 = ssub.s32 %s41, %s48
      %p342 = scmp.eq.s32.totalorder %s341, 0
      %s344 = sadd.s32 %s343, 1
      %s345 = scalar_select %p342, %s343, %s344
      %p348 = pneg %p342
      %p349 = scmp.eq.s32.totalorder %s41, 1
      %p350 = por %p348, %p349
      %p351 = scmp.ne.s32.totalorder %s343, %s346
      %p352 = scmp.eq.s32.totalorder %s41, 0
      %p353 = por %p351, %p352
      %p354 = scmp.ne.s32.totalorder %s343, %s346
      %p355 = scmp.eq.s32.totalorder %s46, 1
      %p356 = por %p354, %p355
      %p357 = scmp.ne.s32.totalorder %s346, %s347
      %p358 = scmp.eq.s32.totalorder %s46, 0
      %p359 = por %p357, %p358
      %p360 = scmp.ne.s32.totalorder %s346, %s347
      %p361 = scmp.eq.s32.totalorder %s47, 1
      %p362 = por %p360, %p361
      %p364 = scmp.ne.s32.totalorder %s347, %s363
      %p365 = scmp.eq.s32.totalorder %s47, 0
      %p366 = por %p364, %p365
      %s368 = sadd.s32 %s367, 1
      %p371 = scmp.eq.s32.totalorder %s41, 1
      %p372 = scmp.ne.s32.totalorder %s367, %s369
      %p373 = scmp.eq.s32.totalorder %s41, 0
      %p374 = por %p372, %p373
      %p375 = scmp.ne.s32.totalorder %s367, %s369
      %p376 = scmp.eq.s32.totalorder %s46, 1
      %p377 = por %p375, %p376
      %p378 = scmp.ne.s32.totalorder %s369, %s370
      %p379 = scmp.eq.s32.totalorder %s46, 0
      %p380 = por %p378, %p379
      %p381 = scmp.ne.s32.totalorder %s369, %s370
      %p382 = scmp.eq.s32.totalorder %s47, 1
      %p383 = por %p381, %p382
      %p385 = scmp.ne.s32.totalorder %s370, %s384
      %p386 = scmp.eq.s32.totalorder %s47, 0
      %p387 = por %p385, %p386
      %s389 = sadd.s32 %s388, 1
      %p392 = scmp.eq.s32.totalorder %s41, 1
      %p393 = scmp.ne.s32.totalorder %s388, %s390
      %p394 = scmp.eq.s32.totalorder %s41, 0
      %p395 = por %p393, %p394
      %p396 = scmp.ne.s32.totalorder %s388, %s390
      %p397 = scmp.eq.s32.totalorder %s46, 1
      %p398 = por %p396, %p397
      %p399 = scmp.ne.s32.totalorder %s390, %s391
      %p400 = scmp.eq.s32.totalorder %s46, 0
      %p401 = por %p399, %p400
      %p402 = scmp.ne.s32.totalorder %s390, %s391
      %p403 = scmp.eq.s32.totalorder %s47, 1
      %p404 = por %p402, %p403
      %p406 = scmp.ne.s32.totalorder %s391, %s405
      %p407 = scmp.eq.s32.totalorder %s47, 0
      %p408 = por %p406, %p407
      %s410 = sadd.s32 %s409, 1
      %p413 = scmp.eq.s32.totalorder %s41, 1
      %p414 = scmp.ne.s32.totalorder %s409, %s411
      %p415 = scmp.eq.s32.totalorder %s41, 0
      %p416 = por %p414, %p415
      %p417 = scmp.ne.s32.totalorder %s409, %s411
      %p418 = scmp.eq.s32.totalorder %s46, 1
      %p419 = por %p417, %p418
      %p420 = scmp.ne.s32.totalorder %s411, %s412
      %p421 = scmp.eq.s32.totalorder %s46, 0
      %p422 = por %p420, %p421
      %p423 = scmp.ne.s32.totalorder %s411, %s412
      %p424 = scmp.eq.s32.totalorder %s47, 1
      %p425 = por %p423, %p424
      %p427 = scmp.ne.s32.totalorder %s412, %s426
      %p428 = scmp.eq.s32.totalorder %s47, 0
      %p429 = por %p427, %p428
      %p430 = scmp.le.s32.totalorder 1, %s41
      %p431 = scmp.lt.s32.totalorder %s41, 3
      %p432 = pnand %p430, %p431
      %p433 = pneg %p432
      // Predicated region
      $region9: #{tpu_custom_call.1} parent=5 // pred_check
        _
      $region10: #{tpu_custom_call.1} parent=5 // pred_check_branch
        %435 = sbr.rel (%p432) target = $region12
      $region11: #{tpu_custom_call.1} parent=5 // pred_region
        %s436 = ssub.s32 %s41, 1
        // Predicated region
        $region13: #{tpu_custom_call.1} parent=11 // pred_check
          %p437 = pneg %p62
        $region14: #{tpu_custom_call.1} parent=11 // pred_check_branch
          %439 = sbr.rel (%p437) target = $region16
        $region15: #{tpu_custom_call.1} parent=11 // pred_region
          _
        $region16: #{tpu_custom_call.1} parent=11 // pred_fallthru
          _
        // Predicated region
        $region17: #{tpu_custom_call.1} parent=11 // pred_check
          %p440 = pneg %p83
        $region18: #{tpu_custom_call.1} parent=11 // pred_check_branch
          %442 = sbr.rel (%p440) target = $region20
        $region19: #{tpu_custom_call.1} parent=11 // pred_region
          _
        $region20: #{tpu_custom_call.1} parent=11 // pred_fallthru
          _
        // Predicated region
        $region21: #{tpu_custom_call.1} parent=11 // pred_check
          %p443 = pneg %p104
        $region22: #{tpu_custom_call.1} parent=11 // pred_check_branch
          %445 = sbr.rel (%p443) target = $region24
        $region23: #{tpu_custom_call.1} parent=11 // pred_region
          _
        $region24: #{tpu_custom_call.1} parent=11 // pred_fallthru
          _
        // Predicated region
        $region25: #{tpu_custom_call.1} parent=11 // pred_check
          %p446 = pneg %p125
        $region26: #{tpu_custom_call.1} parent=11 // pred_check_branch
          %448 = sbr.rel (%p446) target = $region28
        $region27: #{tpu_custom_call.1} parent=11 // pred_region
          _
        $region28: #{tpu_custom_call.1} parent=11 // pred_fallthru
          _
        // Predicated region
        $region29: #{tpu_custom_call.1} parent=11 // pred_check
          %p449 = pneg %p380
        $region30: #{tpu_custom_call.1} parent=11 // pred_check_branch
          %451 = sbr.rel (%p449) target = $region32
        $region31: #{tpu_custom_call.1} parent=11 // pred_region
          _
        $region32: #{tpu_custom_call.1} parent=11 // pred_fallthru
          _
        // Predicated region
        $region33: #{tpu_custom_call.1} parent=11 // pred_check
          %p452 = pneg %p401
        $region34: #{tpu_custom_call.1} parent=11 // pred_check_branch
          %454 = sbr.rel (%p452) target = $region36
        $region35: #{tpu_custom_call.1} parent=11 // pred_region
          %456 = vsyncadd [#allocation21], 0
          %s457 = sshll.u32 %s16, 4
          %s458 = int_to_ptr.hbm [resolvable:$true] %s457
          %s459 = sshll.u32 [#allocation20], 4
          %s460 = int_to_ptr.vmem [resolvable:$true] %s459
          %465 = dma.hbm_to_vmem [thread:$0]  %s458, 4096, %s460, [#allocation21], 128, 128, 8
        $region36: #{tpu_custom_call.1} parent=11 // pred_fallthru
          _
      $region12: #{tpu_custom_call.1} parent=5 // pred_fallthru
        _
      %p466 = scmp.lt.s32.totalorder %s41, 2
      // Predicated region
      $region37: #{tpu_custom_call.1} parent=5 // pred_check
        %p467 = pneg %p466
      $region38: #{tpu_custom_call.1} parent=5 // pred_check_branch
        %469 = sbr.rel (%p467) target = $region40
      $region39: #{tpu_custom_call.1} parent=5 // pred_region
        // Predicated region
        $region41: #{tpu_custom_call.1} parent=39 // pred_check
          %p470 = pneg %p145
        $region42: #{tpu_custom_call.1} parent=39 // pred_check_branch
          %472 = sbr.rel (%p470) target = $region44
        $region43: #{tpu_custom_call.1} parent=39 // pred_region
          %p473 = scmp.lt.s32.totalorder %s41, 1
          %s474 = scalar_select %p473, %s41, 1
          %s475 = smul.addr %s474, 2
          %s476 = scalar_lea.vmem %s6, %s475
        $region44: #{tpu_custom_call.1} parent=39 // pred_fallthru
          _
        // Predicated region
        $region45: #{tpu_custom_call.1} parent=39 // pred_check
          %p477 = pneg %p171
        $region46: #{tpu_custom_call.1} parent=39 // pred_check_branch
          %479 = sbr.rel (%p477) target = $region48
        $region47: #{tpu_custom_call.1} parent=39 // pred_region
          %p480 = scmp.lt.s32.totalorder %s41, 1
          %s481 = scalar_select %p480, %s41, 1
          %s482 = smul.addr %s481, 2
          %s483 = scalar_lea.vmem %s7, %s482
        $region48: #{tpu_custom_call.1} parent=39 // pred_fallthru
          _
        // Predicated region
        $region49: #{tpu_custom_call.1} parent=39 // pred_check
          %p484 = pneg %p197
        $region50: #{tpu_custom_call.1} parent=39 // pred_check_branch
          %486 = sbr.rel (%p484) target = $region52
        $region51: #{tpu_custom_call.1} parent=39 // pred_region
          %s487 = sand.u32 %s187, 1
          %s488 = scalar_lea.sflag [#allocation9], %s487
          %s489 = sand.u32 %s187, 1
          %s490 = smul.addr %s489, 256
          %s491 = scalar_lea.vmem [#allocation8], %s490
          %493 = vsyncadd %s488, 0
          %s494 = smul.addr %s41, 64
          %s495 = smul.addr %s494, 4
          %s496 = scalar_lea.hbm %s8, %s495
          %s497 = sshll.u32 %s496, 4
          %s498 = int_to_ptr.hbm [resolvable:$true] %s497
          %s499 = sshll.u32 %s491, 4
          %s500 = int_to_ptr.vmem [resolvable:$true] %s499
          %505 = dma.hbm_to_vmem [thread:$0]  %s498, 4096, %s500, %s488, 128, 128, 8
        $region52: #{tpu_custom_call.1} parent=39 // pred_fallthru
          _
        // Predicated region
        $region53: #{tpu_custom_call.1} parent=39 // pred_check
          %p506 = pneg %p223
        $region54: #{tpu_custom_call.1} parent=39 // pred_check_branch
          %508 = sbr.rel (%p506) target = $region56
        $region55: #{tpu_custom_call.1} parent=39 // pred_region
          %s509 = sand.u32 %s41, 1
          %s510 = scalar_lea.sflag [#allocation12], %s509
          %s511 = sand.u32 %s213, 1
          %s512 = smul.addr %s511, 128
          %s513 = scalar_lea.vmem [#allocation11], %s512
          %515 = vsyncadd %s510, 0
          %s516 = smul.addr %s41, 32
          %s517 = smul.addr %s516, 4
          %s518 = scalar_lea.hbm %s9, %s517
          %s519 = sshll.u32 %s518, 4
          %s520 = int_to_ptr.hbm [resolvable:$true] %s519
          %s521 = sshll.u32 %s513, 4
          %s522 = int_to_ptr.vmem [resolvable:$true] %s521
          %527 = dma.hbm_to_vmem [thread:$0]  %s520, 2048, %s522, %s510, 64, 64, 4
        $region56: #{tpu_custom_call.1} parent=39 // pred_fallthru
          _
        // Predicated region
        $region57: #{tpu_custom_call.1} parent=39 // pred_check
          %p528 = pneg %p249
        $region58: #{tpu_custom_call.1} parent=39 // pred_check_branch
          %530 = sbr.rel (%p528) target = $region60
        $region59: #{tpu_custom_call.1} parent=39 // pred_region
          %s531 = sand.u32 %s41, 1
          %s532 = scalar_lea.sflag [#allocation12], %s531
          %s533 = sand.u32 %s239, 1
          %s534 = smul.addr %s533, 128
          %s535 = scalar_lea.vmem [#allocation13], %s534
          %537 = vsyncadd %s532, 0
          %s538 = smul.addr %s41, 32
          %s539 = smul.addr %s538, 4
          %s540 = scalar_lea.hbm %s10, %s539
          %s541 = sshll.u32 %s540, 4
          %s542 = int_to_ptr.hbm [resolvable:$true] %s541
          %s543 = sshll.u32 %s535, 4
          %s544 = int_to_ptr.vmem [resolvable:$true] %s543
          %549 = dma.hbm_to_vmem [thread:$0]  %s542, 2048, %s544, %s532, 64, 64, 4
        $region60: #{tpu_custom_call.1} parent=39 // pred_fallthru
          _
        // Predicated region
        $region61: #{tpu_custom_call.1} parent=39 // pred_check
          %p550 = pneg %p275
        $region62: #{tpu_custom_call.1} parent=39 // pred_check_branch
          %552 = sbr.rel (%p550) target = $region64
        $region63: #{tpu_custom_call.1} parent=39 // pred_region
          %s553 = sand.u32 %s41, 1
          %s554 = scalar_lea.sflag [#allocation15], %s553
          %s555 = sand.u32 %s265, 1
          %s556 = smul.addr %s555, 256
          %s557 = scalar_lea.vmem [#allocation14], %s556
          %559 = vsyncadd %s554, 0
          %s560 = smul.addr %s41, 64
          %s561 = smul.addr %s560, 4
          %s562 = scalar_lea.hbm %s11, %s561
          %s563 = sshll.u32 %s562, 4
          %s564 = int_to_ptr.hbm [resolvable:$true] %s563
          %s565 = sshll.u32 %s557, 4
          %s566 = int_to_ptr.vmem [resolvable:$true] %s565
          %571 = dma.hbm_to_vmem [thread:$0]  %s564, 4096, %s566, %s554, 128, 128, 8
        $region64: #{tpu_custom_call.1} parent=39 // pred_fallthru
          _
        // Predicated region
        $region65: #{tpu_custom_call.1} parent=39 // pred_check
          %p572 = pneg %p301
        $region66: #{tpu_custom_call.1} parent=39 // pred_check_branch
          %574 = sbr.rel (%p572) target = $region68
        $region67: #{tpu_custom_call.1} parent=39 // pred_region
          %s575 = sand.u32 %s41, 1
          %s576 = scalar_lea.sflag [#allocation15], %s575
          %s577 = sand.u32 %s291, 1
          %s578 = smul.addr %s577, 768
          %s579 = scalar_lea.vmem [#allocation16], %s578
          %581 = vsyncadd %s576, 0
          %s582 = smul.addr %s41, 192
          %s583 = smul.addr %s582, 4
          %s584 = scalar_lea.hbm %s12, %s583
          %s585 = sshll.u32 %s584, 4
          %s586 = int_to_ptr.hbm [resolvable:$true] %s585
          %s587 = sshll.u32 %s579, 4
          %s588 = int_to_ptr.vmem [resolvable:$true] %s587
          %593 = dma.hbm_to_vmem [thread:$0]  %s586, 12288, %s588, %s576, 384, 384, 24
        $region68: #{tpu_custom_call.1} parent=39 // pred_fallthru
          _
        // Predicated region
        $region69: #{tpu_custom_call.1} parent=39 // pred_check
          %p594 = pneg %p327
        $region70: #{tpu_custom_call.1} parent=39 // pred_check_branch
          %596 = sbr.rel (%p594) target = $region72
        $region71: #{tpu_custom_call.1} parent=39 // pred_region
          %s597 = sand.u32 %s41, 1
          %s598 = scalar_lea.sflag [#allocation18], %s597
          %s599 = sand.u32 %s317, 1
          %s600 = smul.addr %s599, 768
          %s601 = scalar_lea.vmem [#allocation17], %s600
          %603 = vsyncadd %s598, 0
          %s604 = smul.addr %s41, 192
          %s605 = smul.addr %s604, 4
          %s606 = scalar_lea.hbm %s13, %s605
          %s607 = sshll.u32 %s606, 4
          %s608 = int_to_ptr.hbm [resolvable:$true] %s607
          %s609 = sshll.u32 %s601, 4
          %s610 = int_to_ptr.vmem [resolvable:$true] %s609
          %615 = dma.hbm_to_vmem [thread:$0]  %s608, 12288, %s610, %s598, 128, 128, 8
        $region72: #{tpu_custom_call.1} parent=39 // pred_fallthru
          _
        // Predicated region
        $region73: #{tpu_custom_call.1} parent=39 // pred_check
          %p616 = pneg %p353
        $region74: #{tpu_custom_call.1} parent=39 // pred_check_branch
          %618 = sbr.rel (%p616) target = $region76
        $region75: #{tpu_custom_call.1} parent=39 // pred_region
          %s619 = sand.u32 %s41, 1
          %s620 = scalar_lea.sflag [#allocation18], %s619
          %s621 = sand.u32 %s343, 1
          %s622 = smul.addr %s621, 768
          %s623 = scalar_lea.vmem [#allocation19], %s622
          %625 = vsyncadd %s620, 0
          %s626 = smul.addr %s41, 192
          %s627 = smul.addr %s626, 4
          %s628 = scalar_lea.hbm %s14, %s627
          %s629 = sshll.u32 %s628, 4
          %s630 = int_to_ptr.hbm [resolvable:$true] %s629
          %s631 = sshll.u32 %s623, 4
          %s632 = int_to_ptr.vmem [resolvable:$true] %s631
          %637 = dma.hbm_to_vmem [thread:$0]  %s630, 12288, %s632, %s620, 384, 384, 24
        $region76: #{tpu_custom_call.1} parent=39 // pred_fallthru
          _
      $region40: #{tpu_custom_call.1} parent=5 // pred_fallthru
        _
      %p638 = scmp.le.s32.totalorder 1, %s41
      %p639 = scmp.lt.s32.totalorder %s41, 3
      %p640 = pnand %p638, %p639
      %p641 = pneg %p640
      // Predicated region
      $region77: #{tpu_custom_call.1} parent=5 // pred_check
        _
      $region78: #{tpu_custom_call.1} parent=5 // pred_check_branch
        %643 = sbr.rel (%p640) target = $region80
      $region79: #{tpu_custom_call.1} parent=5 // pred_region
        %s644 = ssub.s32 %s41, 1
        %s645 = sand.u32 %s190, 1
        %s646 = scalar_lea.sflag [#allocation9], %s645
        %s647 = sand.u32 %s190, 1
        %s648 = smul.addr %s647, 256
        %s649 = scalar_lea.vmem [#allocation8], %s648
        // Predicated region
        $region81: #{tpu_custom_call.1} parent=79 // pred_check
          %p650 = pneg %p203
        $region82: #{tpu_custom_call.1} parent=79 // pred_check_branch
          %652 = sbr.rel (%p650) target = $region84
        $region83: #{tpu_custom_call.1} parent=79 // pred_region
          %654 = dma.done %s646, 4096
        $region84: #{tpu_custom_call.1} parent=79 // pred_fallthru
          _
        %s655 = sand.u32 %s46, 1
        %s656 = scalar_lea.sflag [#allocation12], %s655
        %s657 = sand.u32 %s216, 1
        %s658 = smul.addr %s657, 128
        %s659 = scalar_lea.vmem [#allocation11], %s658
        // Predicated region
        $region85: #{tpu_custom_call.1} parent=79 // pred_check
          %p660 = pneg %p229
        $region86: #{tpu_custom_call.1} parent=79 // pred_check_branch
          %662 = sbr.rel (%p660) target = $region88
        $region87: #{tpu_custom_call.1} parent=79 // pred_region
          %664 = dma.done %s656, 2048
        $region88: #{tpu_custom_call.1} parent=79 // pred_fallthru
          _
        %s665 = sand.u32 %s46, 1
        %s666 = scalar_lea.sflag [#allocation12], %s665
        %s667 = sand.u32 %s242, 1
        %s668 = smul.addr %s667, 128
        %s669 = scalar_lea.vmem [#allocation13], %s668
        // Predicated region
        $region89: #{tpu_custom_call.1} parent=79 // pred_check
          %p670 = pneg %p255
        $region90: #{tpu_custom_call.1} parent=79 // pred_check_branch
          %672 = sbr.rel (%p670) target = $region92
        $region91: #{tpu_custom_call.1} parent=79 // pred_region
          %674 = dma.done %s666, 2048
        $region92: #{tpu_custom_call.1} parent=79 // pred_fallthru
          _
        %s675 = sand.u32 %s46, 1
        %s676 = scalar_lea.sflag [#allocation15], %s675
        %s677 = sand.u32 %s268, 1
        %s678 = smul.addr %s677, 256
        %s679 = scalar_lea.vmem [#allocation14], %s678
        // Predicated region
        $region93: #{tpu_custom_call.1} parent=79 // pred_check
          %p680 = pneg %p281
        $region94: #{tpu_custom_call.1} parent=79 // pred_check_branch
          %682 = sbr.rel (%p680) target = $region96
        $region95: #{tpu_custom_call.1} parent=79 // pred_region
          %684 = dma.done %s676, 4096
        $region96: #{tpu_custom_call.1} parent=79 // pred_fallthru
          _
        %s685 = sand.u32 %s46, 1
        %s686 = scalar_lea.sflag [#allocation15], %s685
        %s687 = sand.u32 %s294, 1
        %s688 = smul.addr %s687, 768
        %s689 = scalar_lea.vmem [#allocation16], %s688
        // Predicated region
        $region97: #{tpu_custom_call.1} parent=79 // pred_check
          %p690 = pneg %p307
        $region98: #{tpu_custom_call.1} parent=79 // pred_check_branch
          %692 = sbr.rel (%p690) target = $region100
        $region99: #{tpu_custom_call.1} parent=79 // pred_region
          %694 = dma.done %s686, 12288
        $region100: #{tpu_custom_call.1} parent=79 // pred_fallthru
          _
        %s695 = sand.u32 %s46, 1
        %s696 = scalar_lea.sflag [#allocation18], %s695
        %s697 = sand.u32 %s320, 1
        %s698 = smul.addr %s697, 768
        %s699 = scalar_lea.vmem [#allocation17], %s698
        // Predicated region
        $region101: #{tpu_custom_call.1} parent=79 // pred_check
          %p700 = pneg %p333
        $region102: #{tpu_custom_call.1} parent=79 // pred_check_branch
          %702 = sbr.rel (%p700) target = $region104
        $region103: #{tpu_custom_call.1} parent=79 // pred_region
          %704 = dma.done %s696, 12288
        $region104: #{tpu_custom_call.1} parent=79 // pred_fallthru
          _
        %s705 = sand.u32 %s46, 1
        %s706 = scalar_lea.sflag [#allocation18], %s705
        %s707 = sand.u32 %s346, 1
        %s708 = smul.addr %s707, 768
        %s709 = scalar_lea.vmem [#allocation19], %s708
        // Predicated region
        $region105: #{tpu_custom_call.1} parent=79 // pred_check
          %p710 = pneg %p359
        $region106: #{tpu_custom_call.1} parent=79 // pred_check_branch
          %712 = sbr.rel (%p710) target = $region108
        $region107: #{tpu_custom_call.1} parent=79 // pred_region
          %714 = dma.done %s706, 12288
        $region108: #{tpu_custom_call.1} parent=79 // pred_fallthru
          _
        // Predicated region
        $region109: #{tpu_custom_call.1} parent=79 // pred_check
          %p715 = pneg %p401
        $region110: #{tpu_custom_call.1} parent=79 // pred_check_branch
          %717 = sbr.rel (%p715) target = $region112
        $region111: #{tpu_custom_call.1} parent=79 // pred_region
          %719 = dma.done [#allocation21], 4096
        $region112: #{tpu_custom_call.1} parent=79 // pred_fallthru
          _
        %p720 = pneg %p62
        %p721 = pneg %p59
        %p722 = pneg %p83
        %p723 = pneg %p80
        %p724 = pneg %p104
        %p725 = pneg %p101
        %p726 = pneg %p125
        %p727 = pneg %p122
        %p728 = scmp.lt.s32.totalorder %s46, 1
        %s729 = scalar_select %p728, %s46, 1
        %s730 = smul.addr %s729, 2
        %s731 = scalar_lea.vmem %s6, %s730
        %p732 = pneg %p151
        %p733 = pneg %p148
        %p734 = scmp.lt.s32.totalorder %s46, 1
        %s735 = scalar_select %p734, %s46, 1
        %s736 = smul.addr %s735, 2
        %s737 = scalar_lea.vmem %s7, %s736
        %p738 = pneg %p177
        %p739 = pneg %p174
        %s740 = sand.u32 %s190, 1
        %s741 = scalar_lea.sflag [#allocation9], %s740
        %s742 = sand.u32 %s190, 1
        %s743 = smul.addr %s742, 256
        %s744 = scalar_lea.vmem [#allocation8], %s743
        %p745 = pneg %p203
        %p746 = pneg %p200
        %s747 = sand.u32 %s46, 1
        %s748 = scalar_lea.sflag [#allocation12], %s747
        %s749 = sand.u32 %s216, 1
        %s750 = smul.addr %s749, 128
        %s751 = scalar_lea.vmem [#allocation11], %s750
        %p752 = pneg %p229
        %p753 = pneg %p226
        %s754 = sand.u32 %s46, 1
        %s755 = scalar_lea.sflag [#allocation12], %s754
        %s756 = sand.u32 %s242, 1
        %s757 = smul.addr %s756, 128
        %s758 = scalar_lea.vmem [#allocation13], %s757
        %p759 = pneg %p255
        %p760 = pneg %p252
        %s761 = sand.u32 %s46, 1
        %s762 = scalar_lea.sflag [#allocation15], %s761
        %s763 = sand.u32 %s268, 1
        %s764 = smul.addr %s763, 256
        %s765 = scalar_lea.vmem [#allocation14], %s764
        %p766 = pneg %p281
        %p767 = pneg %p278
        %s768 = sand.u32 %s46, 1
        %s769 = scalar_lea.sflag [#allocation15], %s768
        %s770 = sand.u32 %s294, 1
        %s771 = smul.addr %s770, 768
        %s772 = scalar_lea.vmem [#allocation16], %s771
        %p773 = pneg %p307
        %p774 = pneg %p304
        %s775 = sand.u32 %s46, 1
        %s776 = scalar_lea.sflag [#allocation18], %s775
        %s777 = sand.u32 %s320, 1
        %s778 = smul.addr %s777, 768
        %s779 = scalar_lea.vmem [#allocation17], %s778
        %p780 = pneg %p333
        %p781 = pneg %p330
        %s782 = sand.u32 %s46, 1
        %s783 = scalar_lea.sflag [#allocation18], %s782
        %s784 = sand.u32 %s346, 1
        %s785 = smul.addr %s784, 768
        %s786 = scalar_lea.vmem [#allocation19], %s785
        %p787 = pneg %p359
        %p788 = pneg %p356
        %p789 = pneg %p380
        %p790 = pneg %p377
        %p791 = pneg %p401
        %p792 = pneg %p398
        %p793 = pneg %p422
        %p794 = pneg %p419
        %p795 = scmp.lt.s32.totalorder %s46, 1
        %s796 = scalar_select %p795, %s46, 1
        %s797 = smul.addr %s796, 2
        %s798 = scalar_lea.vmem %s6, %s797
        %p799 = scmp.lt.s32.totalorder %s46, 1
        %s800 = scalar_select %p799, %s46, 1
        %s801 = smul.addr %s800, 2
        %s802 = scalar_lea.vmem %s7, %s801
        %s803 = sld [smem:[#allocation7]]
        %s804 = smul.u32 %s46, 32
        %s805 = scalar_lea.hbm %s2, %s804
        // Predicated region
        $region113: #{tpu_custom_call.1} parent=79 // pred_check
          _
        $region114: #{tpu_custom_call.1} parent=79 // pred_check_branch
          %807 = sbr.rel target = $region116
        $region115: #{tpu_custom_call.1} parent=79 // pred_region
          %808 = sst [smem:[#allocation25]] [#allocation24]
          %809 = sst [smem:[#allocation26]] [#allocation23]
        $region116: #{tpu_custom_call.1} parent=79 // pred_fallthru
          _
        %811 = shalt.err (0)
        %s813 = sshll.u32 %s805, 4
        %s814 = int_to_ptr.hbm [resolvable:$true] %s813
        %s815 = sshll.u32 [#allocation3], 4
        %s816 = int_to_ptr.vmem [resolvable:$true] %s815
        %818 = dma.hbm_to_vmem [thread:$0]  %s814, 512, %s816, [#allocation5]
        %s819 = scalar_lea.hbm %s3, %s804
        %s820 = scalar_lea.sflag [#allocation5], 1
        // Predicated region
        $region117: #{tpu_custom_call.1} parent=79 // pred_check
          _
        $region118: #{tpu_custom_call.1} parent=79 // pred_check_branch
          %822 = sbr.rel target = $region120
        $region119: #{tpu_custom_call.1} parent=79 // pred_region
          %823 = sst [smem:[#allocation25]] [#allocation28]
          %824 = sst [smem:[#allocation26]] [#allocation27]
        $region120: #{tpu_custom_call.1} parent=79 // pred_fallthru
          _
        %826 = shalt.err (0)
        %s828 = sshll.u32 %s819, 4
        %s829 = int_to_ptr.hbm [resolvable:$true] %s828
        %s830 = sshll.u32 [#allocation4], 4
        %s831 = int_to_ptr.vmem [resolvable:$true] %s830
        %833 = dma.hbm_to_vmem [thread:$0]  %s829, 512, %s831, %s820
        %p834 = scmp.eq.s32.totalorder %s46, 0
        // Predicated region
        $region121: #{tpu_custom_call.1} parent=79 // pred_check
          %p835 = pneg %p834
        $region122: #{tpu_custom_call.1} parent=79 // pred_check_branch
          %837 = sbr.rel (%p835) target = $region124
        $region123: #{tpu_custom_call.1} parent=79 // pred_region
          %v838 = vld [vmem:[%s1] sm:$0xf]
          %839 = vst [vmem:[#allocation2] sm:$0xf] %v838
        $region124: #{tpu_custom_call.1} parent=79 // pred_fallthru
          _
        %v840 = vld [vmem:[#allocation2] sm:$0xf]
        %v841 = vld [vmem:[%s798] sm:$0x3]
        %v842 = vmul.f32 %v840, %v840
        %844 = vst [vmem:[#allocation1] ss:$4 sm:$0xff] %v842
        %v845 = vld.sshfl [vmem:[#allocation1] sm:$0xff pattern:$0x73625140]
        %v846 = vld.sshfl [vmem:[#allocation1 + $0x8] sm:$0xff pattern:$0x73625140]
        %vm849 = vcmask 1041408
        %v850 = vsel %vm849, %v845, 0.0
        %v851 = vsel %vm849, %v846, 0.0
        %v852 = vadd.f32 %v850, %v851
        %853 = vadd.xlane.f32.xlu0 %v852
        %v854 = vpop.xlane.xlu0 %853
        %v855 = vrcp.pop 256.0
        %v856 = vmul.f32 256.0, %v855
        %v857 = vsub.f32 1.0, %v856
        %v858 = vmul.f32 %v855, %v857
        %v859 = vadd.f32 %v855, %v858
        %vm860 = vweird.f32 %v855
        %v861 = vsel %vm860, %v855, %v859
        %v862 = vmul.f32 %v854, %v861
        %v863 = vadd.f32 %v862, 1e-05
        %v864 = vrsqrt.pop %v863
        %v865 = vmul.f32 %v864, %v863
        %v866 = vmul.f32 %v865, %v864
        %v867 = vmul.f32 0.5, %v866
        %v868 = vsub.f32 1.5, %v867
        %v869 = vmul.f32 %v864, %v868
        %vm870 = vweird.f32 %v863
        %vm871 = vweird.f32 %v864
        %vm872 = vmor %vm870, %vm871
        %v873 = vsel %vm872, %v864, %v869
        %v876 = vunpack.c.l.s4 269488144
        %v877 = vunpack.c.0.s8 %v876
        %v878 = vperm.slane %v873, %v877
        %v880 = vmul.f32 %v840, %v878
        %v882 = vperm.slane %v841, 0
        %v883 = vperm.slane %v841, 1
        %887 = vst [vmem:[#allocation1] ss:$4 sm:$0xff] %v880
        %v888 = vld.sshfl [vmem:[#allocation1] sm:$0xff pattern:$0x73625140]
        %v889 = vld.sshfl [vmem:[#allocation1 + $0x8] sm:$0xff pattern:$0x73625140]
        %v892 = vmul.f32 %v882, %v888
        %v893 = vmul.f32 %v883, %v889
        %v894 = vpack.c.bf16 %v892, %v892
        %v895 = vpack.c.bf16 %v893, %v893
        %v896 = vld [vmem:[%s649] sm:$0xff]
        %v897 = vld [vmem:[%s649 + $0x8] sm:$0xff]
        %v898 = vld [vmem:[%s649 + $0x10] sm:$0xff]
        %v899 = vld [vmem:[%s649 + $0x18] sm:$0xff]
        %v900 = vld [vmem:[%s649 + $0x20] sm:$0xff]
        %v901 = vld [vmem:[%s649 + $0x28] sm:$0xff]
        %v902 = vld [vmem:[%s649 + $0x30] sm:$0xff]
        %v903 = vld [vmem:[%s649 + $0x38] sm:$0xff]
        %v904 = vld [vmem:[%s649 + $0x40] sm:$0xff]
        %v905 = vld [vmem:[%s649 + $0x48] sm:$0xff]
        %v906 = vld [vmem:[%s649 + $0x50] sm:$0xff]
        %v907 = vld [vmem:[%s649 + $0x58] sm:$0xff]
        %v908 = vld [vmem:[%s649 + $0x60] sm:$0xff]
        %v909 = vld [vmem:[%s649 + $0x68] sm:$0xff]
        %v910 = vld [vmem:[%s649 + $0x70] sm:$0xff]
        %v911 = vld [vmem:[%s649 + $0x78] sm:$0xff]
        %v912 = vld [vmem:[%s649 + $0x80] sm:$0xff]
        %v913 = vld [vmem:[%s649 + $0x88] sm:$0xff]
        %v914 = vld [vmem:[%s649 + $0x90] sm:$0xff]
        %v915 = vld [vmem:[%s649 + $0x98] sm:$0xff]
        %v916 = vld [vmem:[%s649 + $0xa0] sm:$0xff]
        %v917 = vld [vmem:[%s649 + $0xa8] sm:$0xff]
        %v918 = vld [vmem:[%s649 + $0xb0] sm:$0xff]
        %v919 = vld [vmem:[%s649 + $0xb8] sm:$0xff]
        %v920 = vld [vmem:[%s649 + $0xc0] sm:$0xff]
        %v921 = vld [vmem:[%s649 + $0xc8] sm:$0xff]
        %v922 = vld [vmem:[%s649 + $0xd0] sm:$0xff]
        %v923 = vld [vmem:[%s649 + $0xd8] sm:$0xff]
        %v924 = vld [vmem:[%s649 + $0xe0] sm:$0xff]
        %v925 = vld [vmem:[%s649 + $0xe8] sm:$0xff]
        %v926 = vld [vmem:[%s649 + $0xf0] sm:$0xff]
        %v927 = vld [vmem:[%s649 + $0xf8] sm:$0xff]
        %v960 = vunpack.c.l.b16 %v896
        %v961 = vunpack.c.h.b16 %v896
        %v962 = vunpack.c.l.b16 %v897
        %v963 = vunpack.c.h.b16 %v897
        %v964 = vunpack.c.l.b16 %v898
        %v965 = vunpack.c.h.b16 %v898
        %v966 = vunpack.c.l.b16 %v899
        %v967 = vunpack.c.h.b16 %v899
        %v968 = vunpack.c.l.b16 %v900
        %v969 = vunpack.c.h.b16 %v900
        %v970 = vunpack.c.l.b16 %v901
        %v971 = vunpack.c.h.b16 %v901
        %v972 = vunpack.c.l.b16 %v902
        %v973 = vunpack.c.h.b16 %v902
        %v974 = vunpack.c.l.b16 %v903
        %v975 = vunpack.c.h.b16 %v903
        %v976 = vunpack.c.l.b16 %v904
        %v977 = vunpack.c.h.b16 %v904
        %v978 = vunpack.c.l.b16 %v905
        %v979 = vunpack.c.h.b16 %v905
        %v980 = vunpack.c.l.b16 %v906
        %v981 = vunpack.c.h.b16 %v906
        %v982 = vunpack.c.l.b16 %v907
        %v983 = vunpack.c.h.b16 %v907
        %v984 = vunpack.c.l.b16 %v908
        %v985 = vunpack.c.h.b16 %v908
        %v986 = vunpack.c.l.b16 %v909
        %v987 = vunpack.c.h.b16 %v909
        %v988 = vunpack.c.l.b16 %v910
        %v989 = vunpack.c.h.b16 %v910
        %v990 = vunpack.c.l.b16 %v911
        %v991 = vunpack.c.h.b16 %v911
        %v992 = vunpack.c.l.b16 %v912
        %v993 = vunpack.c.h.b16 %v912
        %v994 = vunpack.c.l.b16 %v913
        %v995 = vunpack.c.h.b16 %v913
        %v996 = vunpack.c.l.b16 %v914
        %v997 = vunpack.c.h.b16 %v914
        %v998 = vunpack.c.l.b16 %v915
        %v999 = vunpack.c.h.b16 %v915
        %v1000 = vunpack.c.l.b16 %v916
        %v1001 = vunpack.c.h.b16 %v916
        %v1002 = vunpack.c.l.b16 %v917
        %v1003 = vunpack.c.h.b16 %v917
        %v1004 = vunpack.c.l.b16 %v918
        %v1005 = vunpack.c.h.b16 %v918
        %v1006 = vunpack.c.l.b16 %v919
        %v1007 = vunpack.c.h.b16 %v919
        %v1008 = vunpack.c.l.b16 %v920
        %v1009 = vunpack.c.h.b16 %v920
        %v1010 = vunpack.c.l.b16 %v921
        %v1011 = vunpack.c.h.b16 %v921
        %v1012 = vunpack.c.l.b16 %v922
        %v1013 = vunpack.c.h.b16 %v922
        %v1014 = vunpack.c.l.b16 %v923
        %v1015 = vunpack.c.h.b16 %v923
        %v1016 = vunpack.c.l.b16 %v924
        %v1017 = vunpack.c.h.b16 %v924
        %v1018 = vunpack.c.l.b16 %v925
        %v1019 = vunpack.c.h.b16 %v925
        %v1020 = vunpack.c.l.b16 %v926
        %v1021 = vunpack.c.h.b16 %v926
        %v1022 = vunpack.c.l.b16 %v927
        %v1023 = vunpack.c.h.b16 %v927
        %v1024 = vpack.c.b16 %v962, %v960
        %v1025 = vpack.c.b16 %v963, %v961
        %v1026 = vpack.c.b16 %v966, %v964
        %v1027 = vpack.c.b16 %v967, %v965
        %v1028 = vpack.c.b16 %v970, %v968
        %v1029 = vpack.c.b16 %v971, %v969
        %v1030 = vpack.c.b16 %v974, %v972
        %v1031 = vpack.c.b16 %v975, %v973
        %v1032 = vpack.c.b16 %v978, %v976
        %v1033 = vpack.c.b16 %v979, %v977
        %v1034 = vpack.c.b16 %v982, %v980
        %v1035 = vpack.c.b16 %v983, %v981
        %v1036 = vpack.c.b16 %v986, %v984
        %v1037 = vpack.c.b16 %v987, %v985
        %v1038 = vpack.c.b16 %v990, %v988
        %v1039 = vpack.c.b16 %v991, %v989
        %v1040 = vpack.c.b16 %v994, %v992
        %v1041 = vpack.c.b16 %v995, %v993
        %v1042 = vpack.c.b16 %v998, %v996
        %v1043 = vpack.c.b16 %v999, %v997
        %v1044 = vpack.c.b16 %v1002, %v1000
        %v1045 = vpack.c.b16 %v1003, %v1001
        %v1046 = vpack.c.b16 %v1006, %v1004
        %v1047 = vpack.c.b16 %v1007, %v1005
        %v1048 = vpack.c.b16 %v1010, %v1008
        %v1049 = vpack.c.b16 %v1011, %v1009
        %v1050 = vpack.c.b16 %v1014, %v1012
        %v1051 = vpack.c.b16 %v1015, %v1013
        %v1052 = vpack.c.b16 %v1018, %v1016
        %v1053 = vpack.c.b16 %v1019, %v1017
        %v1054 = vpack.c.b16 %v1022, %v1020
        %v1055 = vpack.c.b16 %v1023, %v1021
        %1088 = vmatpush.bf16.msra.mxu0 %v1038
        %1089 = vmatpush.bf16.msra.mxu0 %v1036
        %1090 = vmatpush.bf16.msra.mxu0 %v1034
        %1091 = vmatpush.bf16.msra.mxu0 %v1032
        %1092 = vmatpush.bf16.msra.mxu0 %v1030
        %1093 = vmatpush.bf16.msra.mxu0 %v1028
        %1094 = vmatpush.bf16.msra.mxu0 %v1026
        %1095 = vmatpush.bf16.msra.mxu0 %v1024
        %1096 = vmatmul.bf16.gmra.mxu0 %v894
        %v1097 = vpop.f32.mrf.mxu0
        %v1098 = vadd.f32 0.0, %v1097
        %v1099 = vpop.f32.mrf.mxu0
        %1100 = vdwg.mxu0
        %1101 = vmatpush.bf16.msra.mxu0 %v1054
        %1102 = vmatpush.bf16.msra.mxu0 %v1052
        %1103 = vmatpush.bf16.msra.mxu0 %v1050
        %1104 = vmatpush.bf16.msra.mxu0 %v1048
        %1105 = vmatpush.bf16.msra.mxu0 %v1046
        %1106 = vmatpush.bf16.msra.mxu0 %v1044
        %1107 = vmatpush.bf16.msra.mxu0 %v1042
        %1108 = vmatpush.bf16.msra.mxu0 %v1040
        %1109 = vmatmul.bf16.gmra.mxu0 %v895
        %v1110 = vpop.f32.mrf.mxu0
        %v1111 = vadd.f32 %v1098, %v1110
        %v1112 = vpop.f32.mrf.mxu0
        %1113 = vdwg.mxu0
        %1114 = vmatpush.bf16.msra.mxu0 %v1039
        %1115 = vmatpush.bf16.msra.mxu0 %v1037
        %1116 = vmatpush.bf16.msra.mxu0 %v1035
        %1117 = vmatpush.bf16.msra.mxu0 %v1033
        %1118 = vmatpush.bf16.msra.mxu0 %v1031
        %1119 = vmatpush.bf16.msra.mxu0 %v1029
        %1120 = vmatpush.bf16.msra.mxu0 %v1027
        %1121 = vmatpush.bf16.msra.mxu0 %v1025
        %1122 = vmatmul.bf16.gmra.mxu0 %v894
        %v1123 = vpop.f32.mrf.mxu0
        %v1124 = vadd.f32 0.0, %v1123
        %v1125 = vpop.f32.mrf.mxu0
        %1126 = vdwg.mxu0
        %1127 = vmatpush.bf16.msra.mxu0 %v1055
        %1128 = vmatpush.bf16.msra.mxu0 %v1053
        %1129 = vmatpush.bf16.msra.mxu0 %v1051
        %1130 = vmatpush.bf16.msra.mxu0 %v1049
        %1131 = vmatpush.bf16.msra.mxu0 %v1047
        %1132 = vmatpush.bf16.msra.mxu0 %v1045
        %1133 = vmatpush.bf16.msra.mxu0 %v1043
        %1134 = vmatpush.bf16.msra.mxu0 %v1041
        %1135 = vmatmul.bf16.gmra.mxu0 %v895
        %v1136 = vpop.f32.mrf.mxu0
        %v1137 = vadd.f32 %v1124, %v1136
        %v1138 = vpop.f32.mrf.mxu0
        %1139 = vdwg.mxu0
        %v1140 = vld [vmem:[%s659] sm:$0xf]
        %v1141 = vld [vmem:[%s659 + $0x4] sm:$0xf]
        %v1142 = vld [vmem:[%s659 + $0x8] sm:$0xf]
        %v1143 = vld [vmem:[%s659 + $0xc] sm:$0xf]
        %v1144 = vld [vmem:[%s659 + $0x10] sm:$0xf]
        %v1145 = vld [vmem:[%s659 + $0x14] sm:$0xf]
        %v1146 = vld [vmem:[%s659 + $0x18] sm:$0xf]
        %v1147 = vld [vmem:[%s659 + $0x1c] sm:$0xf]
        %v1148 = vld [vmem:[%s659 + $0x20] sm:$0xf]
        %v1149 = vld [vmem:[%s659 + $0x24] sm:$0xf]
        %v1150 = vld [vmem:[%s659 + $0x28] sm:$0xf]
        %v1151 = vld [vmem:[%s659 + $0x2c] sm:$0xf]
        %v1152 = vld [vmem:[%s659 + $0x30] sm:$0xf]
        %v1153 = vld [vmem:[%s659 + $0x34] sm:$0xf]
        %v1154 = vld [vmem:[%s659 + $0x38] sm:$0xf]
        %v1155 = vld [vmem:[%s659 + $0x3c] sm:$0xf]
        %v1156 = vld [vmem:[%s659 + $0x40] sm:$0xf]
        %v1157 = vld [vmem:[%s659 + $0x44] sm:$0xf]
        %v1158 = vld [vmem:[%s659 + $0x48] sm:$0xf]
        %v1159 = vld [vmem:[%s659 + $0x4c] sm:$0xf]
        %v1160 = vld [vmem:[%s659 + $0x50] sm:$0xf]
        %v1161 = vld [vmem:[%s659 + $0x54] sm:$0xf]
        %v1162 = vld [vmem:[%s659 + $0x58] sm:$0xf]
        %v1163 = vld [vmem:[%s659 + $0x5c] sm:$0xf]
        %v1164 = vld [vmem:[%s659 + $0x60] sm:$0xf]
        %v1165 = vld [vmem:[%s659 + $0x64] sm:$0xf]
        %v1166 = vld [vmem:[%s659 + $0x68] sm:$0xf]
        %v1167 = vld [vmem:[%s659 + $0x6c] sm:$0xf]
        %v1168 = vld [vmem:[%s659 + $0x70] sm:$0xf]
        %v1169 = vld [vmem:[%s659 + $0x74] sm:$0xf]
        %v1170 = vld [vmem:[%s659 + $0x78] sm:$0xf]
        %v1171 = vld [vmem:[%s659 + $0x7c] sm:$0xf]
        %v1204 = vunpack.c.l.b16 %v1140
        %v1205 = vunpack.c.l.b16 %v1141
        %v1206 = vunpack.c.l.b16 %v1142
        %v1207 = vunpack.c.l.b16 %v1143
        %v1208 = vunpack.c.l.b16 %v1144
        %v1209 = vunpack.c.l.b16 %v1145
        %v1210 = vunpack.c.l.b16 %v1146
        %v1211 = vunpack.c.l.b16 %v1147
        %v1212 = vunpack.c.l.b16 %v1148
        %v1213 = vunpack.c.l.b16 %v1149
        %v1214 = vunpack.c.l.b16 %v1150
        %v1215 = vunpack.c.l.b16 %v1151
        %v1216 = vunpack.c.l.b16 %v1152
        %v1217 = vunpack.c.l.b16 %v1153
        %v1218 = vunpack.c.l.b16 %v1154
        %v1219 = vunpack.c.l.b16 %v1155
        %v1220 = vunpack.c.l.b16 %v1156
        %v1221 = vunpack.c.l.b16 %v1157
        %v1222 = vunpack.c.l.b16 %v1158
        %v1223 = vunpack.c.l.b16 %v1159
        %v1224 = vunpack.c.l.b16 %v1160
        %v1225 = vunpack.c.l.b16 %v1161
        %v1226 = vunpack.c.l.b16 %v1162
        %v1227 = vunpack.c.l.b16 %v1163
        %v1228 = vunpack.c.l.b16 %v1164
        %v1229 = vunpack.c.l.b16 %v1165
        %v1230 = vunpack.c.l.b16 %v1166
        %v1231 = vunpack.c.l.b16 %v1167
        %v1232 = vunpack.c.l.b16 %v1168
        %v1233 = vunpack.c.l.b16 %v1169
        %v1234 = vunpack.c.l.b16 %v1170
        %v1235 = vunpack.c.l.b16 %v1171
        %v1236 = vpack.c.b16 %v1205, %v1204
        %v1237 = vpack.c.b16 %v1207, %v1206
        %v1238 = vpack.c.b16 %v1209, %v1208
        %v1239 = vpack.c.b16 %v1211, %v1210
        %v1240 = vpack.c.b16 %v1213, %v1212
        %v1241 = vpack.c.b16 %v1215, %v1214
        %v1242 = vpack.c.b16 %v1217, %v1216
        %v1243 = vpack.c.b16 %v1219, %v1218
        %v1244 = vpack.c.b16 %v1221, %v1220
        %v1245 = vpack.c.b16 %v1223, %v1222
        %v1246 = vpack.c.b16 %v1225, %v1224
        %v1247 = vpack.c.b16 %v1227, %v1226
        %v1248 = vpack.c.b16 %v1229, %v1228
        %v1249 = vpack.c.b16 %v1231, %v1230
        %v1250 = vpack.c.b16 %v1233, %v1232
        %v1251 = vpack.c.b16 %v1235, %v1234
        %1268 = vmatpush.bf16.msra.mxu0 %v1243
        %1269 = vmatpush.bf16.msra.mxu0 %v1242
        %1270 = vmatpush.bf16.msra.mxu0 %v1241
        %1271 = vmatpush.bf16.msra.mxu0 %v1240
        %1272 = vmatpush.bf16.msra.mxu0 %v1239
        %1273 = vmatpush.bf16.msra.mxu0 %v1238
        %1274 = vmatpush.bf16.msra.mxu0 %v1237
        %1275 = vmatpush.bf16.msra.mxu0 %v1236
        %1276 = vmatmul.bf16.gmra.mxu0 %v894
        %v1277 = vpop.f32.mrf.mxu0
        %v1278 = vadd.f32 0.0, %v1277
        %v1279 = vpop.f32.mrf.mxu0
        %1280 = vdwg.mxu0
        %1281 = vmatpush.bf16.msra.mxu0 %v1251
        %1282 = vmatpush.bf16.msra.mxu0 %v1250
        %1283 = vmatpush.bf16.msra.mxu0 %v1249
        %1284 = vmatpush.bf16.msra.mxu0 %v1248
        %1285 = vmatpush.bf16.msra.mxu0 %v1247
        %1286 = vmatpush.bf16.msra.mxu0 %v1246
        %1287 = vmatpush.bf16.msra.mxu0 %v1245
        %1288 = vmatpush.bf16.msra.mxu0 %v1244
        %1289 = vmatmul.bf16.gmra.mxu0 %v895
        %v1290 = vpop.f32.mrf.mxu0
        %v1291 = vadd.f32 %v1278, %v1290
        %v1292 = vpop.f32.mrf.mxu0
        %1293 = vdwg.mxu0
        %v1294 = vld [vmem:[%s669] sm:$0xf]
        %v1295 = vld [vmem:[%s669 + $0x4] sm:$0xf]
        %v1296 = vld [vmem:[%s669 + $0x8] sm:$0xf]
        %v1297 = vld [vmem:[%s669 + $0xc] sm:$0xf]
        %v1298 = vld [vmem:[%s669 + $0x10] sm:$0xf]
        %v1299 = vld [vmem:[%s669 + $0x14] sm:$0xf]
        %v1300 = vld [vmem:[%s669 + $0x18] sm:$0xf]
        %v1301 = vld [vmem:[%s669 + $0x1c] sm:$0xf]
        %v1302 = vld [vmem:[%s669 + $0x20] sm:$0xf]
        %v1303 = vld [vmem:[%s669 + $0x24] sm:$0xf]
        %v1304 = vld [vmem:[%s669 + $0x28] sm:$0xf]
        %v1305 = vld [vmem:[%s669 + $0x2c] sm:$0xf]
        %v1306 = vld [vmem:[%s669 + $0x30] sm:$0xf]
        %v1307 = vld [vmem:[%s669 + $0x34] sm:$0xf]
        %v1308 = vld [vmem:[%s669 + $0x38] sm:$0xf]
        %v1309 = vld [vmem:[%s669 + $0x3c] sm:$0xf]
        %v1310 = vld [vmem:[%s669 + $0x40] sm:$0xf]
        %v1311 = vld [vmem:[%s669 + $0x44] sm:$0xf]
        %v1312 = vld [vmem:[%s669 + $0x48] sm:$0xf]
        %v1313 = vld [vmem:[%s669 + $0x4c] sm:$0xf]
        %v1314 = vld [vmem:[%s669 + $0x50] sm:$0xf]
        %v1315 = vld [vmem:[%s669 + $0x54] sm:$0xf]
        %v1316 = vld [vmem:[%s669 + $0x58] sm:$0xf]
        %v1317 = vld [vmem:[%s669 + $0x5c] sm:$0xf]
        %v1318 = vld [vmem:[%s669 + $0x60] sm:$0xf]
        %v1319 = vld [vmem:[%s669 + $0x64] sm:$0xf]
        %v1320 = vld [vmem:[%s669 + $0x68] sm:$0xf]
        %v1321 = vld [vmem:[%s669 + $0x6c] sm:$0xf]
        %v1322 = vld [vmem:[%s669 + $0x70] sm:$0xf]
        %v1323 = vld [vmem:[%s669 + $0x74] sm:$0xf]
        %v1324 = vld [vmem:[%s669 + $0x78] sm:$0xf]
        %v1325 = vld [vmem:[%s669 + $0x7c] sm:$0xf]
        %v1358 = vunpack.c.l.b16 %v1294
        %v1359 = vunpack.c.l.b16 %v1295
        %v1360 = vunpack.c.l.b16 %v1296
        %v1361 = vunpack.c.l.b16 %v1297
        %v1362 = vunpack.c.l.b16 %v1298
        %v1363 = vunpack.c.l.b16 %v1299
        %v1364 = vunpack.c.l.b16 %v1300
        %v1365 = vunpack.c.l.b16 %v1301
        %v1366 = vunpack.c.l.b16 %v1302
        %v1367 = vunpack.c.l.b16 %v1303
        %v1368 = vunpack.c.l.b16 %v1304
        %v1369 = vunpack.c.l.b16 %v1305
        %v1370 = vunpack.c.l.b16 %v1306
        %v1371 = vunpack.c.l.b16 %v1307
        %v1372 = vunpack.c.l.b16 %v1308
        %v1373 = vunpack.c.l.b16 %v1309
        %v1374 = vunpack.c.l.b16 %v1310
        %v1375 = vunpack.c.l.b16 %v1311
        %v1376 = vunpack.c.l.b16 %v1312
        %v1377 = vunpack.c.l.b16 %v1313
        %v1378 = vunpack.c.l.b16 %v1314
        %v1379 = vunpack.c.l.b16 %v1315
        %v1380 = vunpack.c.l.b16 %v1316
        %v1381 = vunpack.c.l.b16 %v1317
        %v1382 = vunpack.c.l.b16 %v1318
        %v1383 = vunpack.c.l.b16 %v1319
        %v1384 = vunpack.c.l.b16 %v1320
        %v1385 = vunpack.c.l.b16 %v1321
        %v1386 = vunpack.c.l.b16 %v1322
        %v1387 = vunpack.c.l.b16 %v1323
        %v1388 = vunpack.c.l.b16 %v1324
        %v1389 = vunpack.c.l.b16 %v1325
        %v1390 = vpack.c.b16 %v1359, %v1358
        %v1391 = vpack.c.b16 %v1361, %v1360
        %v1392 = vpack.c.b16 %v1363, %v1362
        %v1393 = vpack.c.b16 %v1365, %v1364
        %v1394 = vpack.c.b16 %v1367, %v1366
        %v1395 = vpack.c.b16 %v1369, %v1368
        %v1396 = vpack.c.b16 %v1371, %v1370
        %v1397 = vpack.c.b16 %v1373, %v1372
        %v1398 = vpack.c.b16 %v1375, %v1374
        %v1399 = vpack.c.b16 %v1377, %v1376
        %v1400 = vpack.c.b16 %v1379, %v1378
        %v1401 = vpack.c.b16 %v1381, %v1380
        %v1402 = vpack.c.b16 %v1383, %v1382
        %v1403 = vpack.c.b16 %v1385, %v1384
        %v1404 = vpack.c.b16 %v1387, %v1386
        %v1405 = vpack.c.b16 %v1389, %v1388
        %1422 = vmatpush.bf16.msra.mxu0 %v1397
        %1423 = vmatpush.bf16.msra.mxu0 %v1396
        %1424 = vmatpush.bf16.msra.mxu0 %v1395
        %1425 = vmatpush.bf16.msra.mxu0 %v1394
        %1426 = vmatpush.bf16.msra.mxu0 %v1393
        %1427 = vmatpush.bf16.msra.mxu0 %v1392
        %1428 = vmatpush.bf16.msra.mxu0 %v1391
        %1429 = vmatpush.bf16.msra.mxu0 %v1390
        %1430 = vmatmul.bf16.gmra.mxu0 %v894
        %v1431 = vpop.f32.mrf.mxu0
        %v1432 = vadd.f32 0.0, %v1431
        %v1433 = vpop.f32.mrf.mxu0
        %1434 = vdwg.mxu0
        %1435 = vmatpush.bf16.msra.mxu0 %v1405
        %1436 = vmatpush.bf16.msra.mxu0 %v1404
        %1437 = vmatpush.bf16.msra.mxu0 %v1403
        %1438 = vmatpush.bf16.msra.mxu0 %v1402
        %1439 = vmatpush.bf16.msra.mxu0 %v1401
        %1440 = vmatpush.bf16.msra.mxu0 %v1400
        %1441 = vmatpush.bf16.msra.mxu0 %v1399
        %1442 = vmatpush.bf16.msra.mxu0 %v1398
        %1443 = vmatmul.bf16.gmra.mxu0 %v895
        %v1444 = vpop.f32.mrf.mxu0
        %v1445 = vadd.f32 %v1432, %v1444
        %v1446 = vpop.f32.mrf.mxu0
        %1447 = vdwg.mxu0
        %v1448 = vld [vmem:[%s4] sm:$0x1]
        %v1449 = vld [vmem:[%s5] sm:$0x1]
        %v1451 = vperm.slane %v1448, 0
        %v1453 = vmul.f32 %v1111, %v1451
        %1454 = vrot.lane.b32.xlu0 %v1111, 64
        %v1455 = vpop.permute.xlu0 %1454
        %v1457 = vperm.slane %v1449, 0
        %v1459 = vmul.f32 %v1455, %v1457
        %v1460 = vadd.f32 %v1453, %v1459
        %v1461 = vmul.f32 %v1137, %v1451
        %1462 = vrot.lane.b32.xlu0 %v1137, 64
        %v1463 = vpop.permute.xlu0 %1462
        %v1464 = vmul.f32 %v1463, %v1457
        %v1465 = vadd.f32 %v1461, %v1464
        %v1466 = vmul.f32 %v1291, %v1451
        %1467 = vrot.lane.b32.xlu0 %v1291, 64
        %v1468 = vpop.permute.xlu0 %1467
        %v1469 = vmul.f32 %v1468, %v1457
        %v1470 = vadd.f32 %v1466, %v1469
        %s1471 = smul.u32 2, 1
        %s1472 = smul.u32 %s1471, 16
        %s1473 = smul.u32 %s1472, 1
        %s1474 = sshll.u32 %s1473, 4
        %1475 = dma.done [#allocation5], %s1474
        %s1476 = sshll.u32 %s1473, 4
        %1477 = dma.done %s820, %s1476
        %s1478 = scalar_lea.vmem [#allocation3], %s803
        %1479 = vst [vmem:[%s1478] sm:$0x1] %v1470
        %s1480 = scalar_lea.vmem [#allocation4], %s803
        %1481 = vst [vmem:[%s1480] sm:$0x1] %v1445
        %s1482 = sadd.s32 %s803, %s804
        %s1483 = scalar_lea.hbm %s18, %s1482
        // Predicated region
        $region125: #{tpu_custom_call.1} parent=79 // pred_check
          _
        $region126: #{tpu_custom_call.1} parent=79 // pred_check_branch
          %1485 = sbr.rel target = $region128
        $region127: #{tpu_custom_call.1} parent=79 // pred_region
          %1486 = sst [smem:[#allocation25]] [#allocation30]
          %1487 = sst [smem:[#allocation26]] [#allocation29]
        $region128: #{tpu_custom_call.1} parent=79 // pred_fallthru
          _
        %1489 = shalt.err (0)
        %s1491 = sshll.u32 %s1478, 4
        %s1492 = int_to_ptr.vmem [resolvable:$true] %s1491
        %s1493 = sshll.u32 %s1483, 4
        %s1494 = int_to_ptr.hbm [resolvable:$true] %s1493
        %1496 = dma.vmem_to_hbm [thread:$0]  %s1492, 16, %s1494, [#allocation6]
        %s1497 = scalar_lea.hbm %s19, %s1482
        %s1498 = scalar_lea.sflag [#allocation6], 2
        // Predicated region
        $region129: #{tpu_custom_call.1} parent=79 // pred_check
          _
        $region130: #{tpu_custom_call.1} parent=79 // pred_check_branch
          %1500 = sbr.rel target = $region132
        $region131: #{tpu_custom_call.1} parent=79 // pred_region
          %1501 = sst [smem:[#allocation25]] [#allocation32]
          %1502 = sst [smem:[#allocation26]] [#allocation31]
        $region132: #{tpu_custom_call.1} parent=79 // pred_fallthru
          _
        %1504 = shalt.err (0)
        %s1506 = sshll.u32 %s1480, 4
        %s1507 = int_to_ptr.vmem [resolvable:$true] %s1506
        %s1508 = sshll.u32 %s1497, 4
        %s1509 = int_to_ptr.hbm [resolvable:$true] %s1508
        %1511 = dma.vmem_to_hbm [thread:$0]  %s1507, 16, %s1509, %s1498
        %s1512 = sadd.s32 %s803, 16
        %s1513 = scalar_lea.vmem [#allocation3], %s1512
        %1514 = vst [vmem:[%s1513 - $0x1] sm:$0x2] %v1470
        %s1515 = scalar_lea.vmem [#allocation4], %s1512
        %1516 = vst [vmem:[%s1515 - $0x1] sm:$0x2] %v1445
        %s1517 = sadd.s32 %s1512, %s804
        %s1518 = scalar_lea.hbm %s18, %s1517
        %s1519 = scalar_lea.sflag [#allocation6], 1
        // Predicated region
        $region133: #{tpu_custom_call.1} parent=79 // pred_check
          _
        $region134: #{tpu_custom_call.1} parent=79 // pred_check_branch
          %1521 = sbr.rel target = $region136
        $region135: #{tpu_custom_call.1} parent=79 // pred_region
          %1522 = sst [smem:[#allocation25]] [#allocation34]
          %1523 = sst [smem:[#allocation26]] [#allocation33]
        $region136: #{tpu_custom_call.1} parent=79 // pred_fallthru
          _
        %1525 = shalt.err (0)
        %s1527 = sshll.u32 %s1513, 4
        %s1528 = int_to_ptr.vmem [resolvable:$true] %s1527
        %s1529 = sshll.u32 %s1518, 4
        %s1530 = int_to_ptr.hbm [resolvable:$true] %s1529
        %1532 = dma.vmem_to_hbm [thread:$0]  %s1528, 16, %s1530, %s1519
        %s1533 = scalar_lea.hbm %s19, %s1517
        %s1534 = scalar_lea.sflag [#allocation6], 3
        // Predicated region
        $region137: #{tpu_custom_call.1} parent=79 // pred_check
          _
        $region138: #{tpu_custom_call.1} parent=79 // pred_check_branch
          %1536 = sbr.rel target = $region140
        $region139: #{tpu_custom_call.1} parent=79 // pred_region
          %1537 = sst [smem:[#allocation25]] [#allocation36]
          %1538 = sst [smem:[#allocation26]] [#allocation35]
        $region140: #{tpu_custom_call.1} parent=79 // pred_fallthru
          _
        %1540 = shalt.err (0)
        %s1542 = sshll.u32 %s1515, 4
        %s1543 = int_to_ptr.vmem [resolvable:$true] %s1542
        %s1544 = sshll.u32 %s1533, 4
        %s1545 = int_to_ptr.hbm [resolvable:$true] %s1544
        %1547 = dma.vmem_to_hbm [thread:$0]  %s1543, 16, %s1545, %s1534
        %s1548 = sadd.s32 %s803, 1
        %v1549 = vlaneseq
        %v1550 = vand.u32 %v1549, 127
        %v1552 = vrot.slane %v1465, 7
        %vm1554 = vcmask 1040384
        %v1555 = vsel %vm1554, %v1460, %v1552
        %v1556 = vld [vmem:[#allocation3] sm:$0xff]
        %v1557 = vld [vmem:[#allocation3 + $0x8] sm:$0xff]
        %v1558 = vld [vmem:[#allocation4] sm:$0xff]
        %v1559 = vld [vmem:[#allocation4 + $0x8] sm:$0xff]
        %1560 = vmatpush.xpose.msra.mxu0 0.0
        %1561 = vmatpush.xpose.msra.mxu0 0.0
        %1562 = vmatpush.xpose.msra.mxu0 0.0
        %1563 = vmatpush.xpose.msra.mxu0 0.0
        %1564 = vmatpush.xpose.msra.mxu0 0.0
        %1565 = vmatpush.xpose.msra.mxu0 0.0
        %1566 = vmatpush.xpose.msra.mxu0 0.0
        %1567 = vmatpush.xpose.msra.mxu0 0.0
        %1568 = vmatpush.xpose.msra.mxu0 0.0
        %1569 = vmatpush.xpose.msra.mxu0 0.0
        %1570 = vmatpush.xpose.msra.mxu0 0.0
        %1571 = vmatpush.xpose.msra.mxu0 0.0
        %1572 = vmatpush.xpose.msra.mxu0 0.0
        %1573 = vmatpush.xpose.msra.mxu0 0.0
        %1574 = vmatpush.xpose.msra.mxu0 %v1557
        %1575 = vmatpush.xpose.msra.mxu0 %v1556
        %1576 = vmatmul.f32.gmra.mxu0 %v1555
        %v1577 = vpop.f32.mrf.mxu0
        %v1578 = vadd.f32 0.0, %v1577
        %1579 = vdwg.mxu0
        %v1580 = vmul.f32 %v1578, 0.088388346
        %v1581 = vstv %s1548
        %vm1582 = vcmp.lt.s32.totalorder %v1550, %v1581
        %v1583 = vsel %vm1582, %v1580, -inf
        %vm1584 = vcmask 123904
        %v1585 = vsel %vm1584, %v1583, -inf
        %1586 = vmax.xlane.f32.xlu0 %v1585
        %v1587 = vpop.xlane.xlu0 %1586
        %v1588 = vsub.f32 %v1583, %v1587
        %v1589 = vmul.f32 %v1588, 1.442695
        %v1590 = vpow.pop %v1589
        %v1591 = vsel %vm1584, %v1590, 0.0
        %1592 = vadd.xlane.f32.xlu0 %v1591
        %v1593 = vpop.xlane.xlu0 %1592
        %v1594 = vrcp.pop %v1593
        %v1595 = vmul.f32 %v1590, %v1594
        %vm1596 = vcmask 130048
        %v1598 = vsel %vm1596, %v1595, 0
        %1600 = vmatpush.msra.mxu0 0.0
        %1601 = vmatpush.msra.mxu0 0.0
        %1602 = vmatpush.msra.mxu0 0.0
        %1603 = vmatpush.msra.mxu0 0.0
        %1604 = vmatpush.msra.mxu0 0.0
        %1605 = vmatpush.msra.mxu0 0.0
        %1606 = vmatpush.msra.mxu0 0.0
        %1607 = vmatpush.msra.mxu0 0.0
        %1608 = vmatpush.msra.mxu0 0.0
        %1609 = vmatpush.msra.mxu0 0.0
        %1610 = vmatpush.msra.mxu0 0.0
        %1611 = vmatpush.msra.mxu0 0.0
        %1612 = vmatpush.msra.mxu0 0.0
        %1613 = vmatpush.msra.mxu0 0.0
        %1614 = vmatpush.msra.mxu0 %v1559
        %1615 = vmatpush.msra.mxu0 %v1558
        %1616 = vmatmul.f32.gmra.mxu0 %v1598
        %v1617 = vpop.f32.mrf.mxu0
        %v1618 = vadd.f32 0.0, %v1617
        %1619 = vdwg.mxu0
        %v1621 = vrot.slane %v1618, 1
        %v1624 = vrot.slane %v1460, 1
        %v1626 = vsel %vm1554, %v1624, %v1465
        %s1627 = scalar_lea.vmem [#allocation3], 16
        %v1628 = vld [vmem:[%s1627] sm:$0xff]
        %v1629 = vld [vmem:[%s1627 + $0x8] sm:$0xff]
        %s1630 = scalar_lea.vmem [#allocation4], 16
        %v1631 = vld [vmem:[%s1630] sm:$0xff]
        %v1632 = vld [vmem:[%s1630 + $0x8] sm:$0xff]
        %1633 = vmatpush.xpose.msra.mxu0 0.0
        %1634 = vmatpush.xpose.msra.mxu0 0.0
        %1635 = vmatpush.xpose.msra.mxu0 0.0
        %1636 = vmatpush.xpose.msra.mxu0 0.0
        %1637 = vmatpush.xpose.msra.mxu0 0.0
        %1638 = vmatpush.xpose.msra.mxu0 0.0
        %1639 = vmatpush.xpose.msra.mxu0 0.0
        %1640 = vmatpush.xpose.msra.mxu0 0.0
        %1641 = vmatpush.xpose.msra.mxu0 0.0
        %1642 = vmatpush.xpose.msra.mxu0 0.0
        %1643 = vmatpush.xpose.msra.mxu0 0.0
        %1644 = vmatpush.xpose.msra.mxu0 0.0
        %1645 = vmatpush.xpose.msra.mxu0 0.0
        %1646 = vmatpush.xpose.msra.mxu0 0.0
        %1647 = vmatpush.xpose.msra.mxu0 %v1629
        %1648 = vmatpush.xpose.msra.mxu0 %v1628
        %1649 = vmatmul.f32.gmra.mxu0 %v1626
        %v1650 = vpop.f32.mrf.mxu0
        %v1651 = vadd.f32 0.0, %v1650
        %1652 = vdwg.mxu0
        %v1653 = vmul.f32 %v1651, 0.088388346
        %v1654 = vsel %vm1582, %v1653, -inf
        %v1655 = vsel %vm1584, %v1654, -inf
        %1656 = vmax.xlane.f32.xlu0 %v1655
        %v1657 = vpop.xlane.xlu0 %1656
        %v1658 = vsub.f32 %v1654, %v1657
        %v1659 = vmul.f32 %v1658, 1.442695
        %v1660 = vpow.pop %v1659
        %v1661 = vsel %vm1584, %v1660, 0.0
        %1662 = vadd.xlane.f32.xlu0 %v1661
        %v1663 = vpop.xlane.xlu0 %1662
        %v1664 = vrcp.pop %v1663
        %v1665 = vmul.f32 %v1660, %v1664
        %v1667 = vsel %vm1596, %v1665, 0
        %1669 = vmatpush.msra.mxu0 0.0
        %1670 = vmatpush.msra.mxu0 0.0
        %1671 = vmatpush.msra.mxu0 0.0
        %1672 = vmatpush.msra.mxu0 0.0
        %1673 = vmatpush.msra.mxu0 0.0
        %1674 = vmatpush.msra.mxu0 0.0
        %1675 = vmatpush.msra.mxu0 0.0
        %1676 = vmatpush.msra.mxu0 0.0
        %1677 = vmatpush.msra.mxu0 0.0
        %1678 = vmatpush.msra.mxu0 0.0
        %1679 = vmatpush.msra.mxu0 0.0
        %1680 = vmatpush.msra.mxu0 0.0
        %1681 = vmatpush.msra.mxu0 0.0
        %1682 = vmatpush.msra.mxu0 0.0
        %1683 = vmatpush.msra.mxu0 %v1632
        %1684 = vmatpush.msra.mxu0 %v1631
        %1685 = vmatmul.f32.gmra.mxu0 %v1667
        %v1686 = vpop.f32.mrf.mxu0
        %v1687 = vadd.f32 0.0, %v1686
        %1688 = vdwg.mxu0
        %v1690 = vrot.slane %v1687, 1
        %v1691 = vrot.slane %v1687, 7
        %v1692 = vrot.slane %v1690, 7
        %v1695 = vsel %vm1554, %v1618, %v1691
        %v1696 = vsel %vm1554, %v1621, %v1692
        %v1697 = vpack.c.bf16 %v1695, %v1695
        %v1698 = vpack.c.bf16 %v1696, %v1696
        %v1699 = vld [vmem:[%s679] sm:$0xff]
        %v1700 = vld [vmem:[%s679 + $0x8] sm:$0xff]
        %v1701 = vld [vmem:[%s679 + $0x10] sm:$0xff]
        %v1702 = vld [vmem:[%s679 + $0x18] sm:$0xff]
        %v1703 = vld [vmem:[%s679 + $0x20] sm:$0xff]
        %v1704 = vld [vmem:[%s679 + $0x28] sm:$0xff]
        %v1705 = vld [vmem:[%s679 + $0x30] sm:$0xff]
        %v1706 = vld [vmem:[%s679 + $0x38] sm:$0xff]
        %v1707 = vld [vmem:[%s679 + $0x40] sm:$0xff]
        %v1708 = vld [vmem:[%s679 + $0x48] sm:$0xff]
        %v1709 = vld [vmem:[%s679 + $0x50] sm:$0xff]
        %v1710 = vld [vmem:[%s679 + $0x58] sm:$0xff]
        %v1711 = vld [vmem:[%s679 + $0x60] sm:$0xff]
        %v1712 = vld [vmem:[%s679 + $0x68] sm:$0xff]
        %v1713 = vld [vmem:[%s679 + $0x70] sm:$0xff]
        %v1714 = vld [vmem:[%s679 + $0x78] sm:$0xff]
        %v1715 = vld [vmem:[%s679 + $0x80] sm:$0xff]
        %v1716 = vld [vmem:[%s679 + $0x88] sm:$0xff]
        %v1717 = vld [vmem:[%s679 + $0x90] sm:$0xff]
        %v1718 = vld [vmem:[%s679 + $0x98] sm:$0xff]
        %v1719 = vld [vmem:[%s679 + $0xa0] sm:$0xff]
        %v1720 = vld [vmem:[%s679 + $0xa8] sm:$0xff]
        %v1721 = vld [vmem:[%s679 + $0xb0] sm:$0xff]
        %v1722 = vld [vmem:[%s679 + $0xb8] sm:$0xff]
        %v1723 = vld [vmem:[%s679 + $0xc0] sm:$0xff]
        %v1724 = vld [vmem:[%s679 + $0xc8] sm:$0xff]
        %v1725 = vld [vmem:[%s679 + $0xd0] sm:$0xff]
        %v1726 = vld [vmem:[%s679 + $0xd8] sm:$0xff]
        %v1727 = vld [vmem:[%s679 + $0xe0] sm:$0xff]
        %v1728 = vld [vmem:[%s679 + $0xe8] sm:$0xff]
        %v1729 = vld [vmem:[%s679 + $0xf0] sm:$0xff]
        %v1730 = vld [vmem:[%s679 + $0xf8] sm:$0xff]
        %v1763 = vunpack.c.l.b16 %v1699
        %v1764 = vunpack.c.h.b16 %v1699
        %v1765 = vunpack.c.l.b16 %v1700
        %v1766 = vunpack.c.h.b16 %v1700
        %v1767 = vunpack.c.l.b16 %v1701
        %v1768 = vunpack.c.h.b16 %v1701
        %v1769 = vunpack.c.l.b16 %v1702
        %v1770 = vunpack.c.h.b16 %v1702
        %v1771 = vunpack.c.l.b16 %v1703
        %v1772 = vunpack.c.h.b16 %v1703
        %v1773 = vunpack.c.l.b16 %v1704
        %v1774 = vunpack.c.h.b16 %v1704
        %v1775 = vunpack.c.l.b16 %v1705
        %v1776 = vunpack.c.h.b16 %v1705
        %v1777 = vunpack.c.l.b16 %v1706
        %v1778 = vunpack.c.h.b16 %v1706
        %v1779 = vunpack.c.l.b16 %v1707
        %v1780 = vunpack.c.h.b16 %v1707
        %v1781 = vunpack.c.l.b16 %v1708
        %v1782 = vunpack.c.h.b16 %v1708
        %v1783 = vunpack.c.l.b16 %v1709
        %v1784 = vunpack.c.h.b16 %v1709
        %v1785 = vunpack.c.l.b16 %v1710
        %v1786 = vunpack.c.h.b16 %v1710
        %v1787 = vunpack.c.l.b16 %v1711
        %v1788 = vunpack.c.h.b16 %v1711
        %v1789 = vunpack.c.l.b16 %v1712
        %v1790 = vunpack.c.h.b16 %v1712
        %v1791 = vunpack.c.l.b16 %v1713
        %v1792 = vunpack.c.h.b16 %v1713
        %v1793 = vunpack.c.l.b16 %v1714
        %v1794 = vunpack.c.h.b16 %v1714
        %v1795 = vunpack.c.l.b16 %v1715
        %v1796 = vunpack.c.h.b16 %v1715
        %v1797 = vunpack.c.l.b16 %v1716
        %v1798 = vunpack.c.h.b16 %v1716
        %v1799 = vunpack.c.l.b16 %v1717
        %v1800 = vunpack.c.h.b16 %v1717
        %v1801 = vunpack.c.l.b16 %v1718
        %v1802 = vunpack.c.h.b16 %v1718
        %v1803 = vunpack.c.l.b16 %v1719
        %v1804 = vunpack.c.h.b16 %v1719
        %v1805 = vunpack.c.l.b16 %v1720
        %v1806 = vunpack.c.h.b16 %v1720
        %v1807 = vunpack.c.l.b16 %v1721
        %v1808 = vunpack.c.h.b16 %v1721
        %v1809 = vunpack.c.l.b16 %v1722
        %v1810 = vunpack.c.h.b16 %v1722
        %v1811 = vunpack.c.l.b16 %v1723
        %v1812 = vunpack.c.h.b16 %v1723
        %v1813 = vunpack.c.l.b16 %v1724
        %v1814 = vunpack.c.h.b16 %v1724
        %v1815 = vunpack.c.l.b16 %v1725
        %v1816 = vunpack.c.h.b16 %v1725
        %v1817 = vunpack.c.l.b16 %v1726
        %v1818 = vunpack.c.h.b16 %v1726
        %v1819 = vunpack.c.l.b16 %v1727
        %v1820 = vunpack.c.h.b16 %v1727
        %v1821 = vunpack.c.l.b16 %v1728
        %v1822 = vunpack.c.h.b16 %v1728
        %v1823 = vunpack.c.l.b16 %v1729
        %v1824 = vunpack.c.h.b16 %v1729
        %v1825 = vunpack.c.l.b16 %v1730
        %v1826 = vunpack.c.h.b16 %v1730
        %v1827 = vpack.c.b16 %v1765, %v1763
        %v1828 = vpack.c.b16 %v1766, %v1764
        %v1829 = vpack.c.b16 %v1769, %v1767
        %v1830 = vpack.c.b16 %v1770, %v1768
        %v1831 = vpack.c.b16 %v1773, %v1771
        %v1832 = vpack.c.b16 %v1774, %v1772
        %v1833 = vpack.c.b16 %v1777, %v1775
        %v1834 = vpack.c.b16 %v1778, %v1776
        %v1835 = vpack.c.b16 %v1781, %v1779
        %v1836 = vpack.c.b16 %v1782, %v1780
        %v1837 = vpack.c.b16 %v1785, %v1783
        %v1838 = vpack.c.b16 %v1786, %v1784
        %v1839 = vpack.c.b16 %v1789, %v1787
        %v1840 = vpack.c.b16 %v1790, %v1788
        %v1841 = vpack.c.b16 %v1793, %v1791
        %v1842 = vpack.c.b16 %v1794, %v1792
        %v1843 = vpack.c.b16 %v1797, %v1795
        %v1844 = vpack.c.b16 %v1798, %v1796
        %v1845 = vpack.c.b16 %v1801, %v1799
        %v1846 = vpack.c.b16 %v1802, %v1800
        %v1847 = vpack.c.b16 %v1805, %v1803
        %v1848 = vpack.c.b16 %v1806, %v1804
        %v1849 = vpack.c.b16 %v1809, %v1807
        %v1850 = vpack.c.b16 %v1810, %v1808
        %v1851 = vpack.c.b16 %v1813, %v1811
        %v1852 = vpack.c.b16 %v1814, %v1812
        %v1853 = vpack.c.b16 %v1817, %v1815
        %v1854 = vpack.c.b16 %v1818, %v1816
        %v1855 = vpack.c.b16 %v1821, %v1819
        %v1856 = vpack.c.b16 %v1822, %v1820
        %v1857 = vpack.c.b16 %v1825, %v1823
        %v1858 = vpack.c.b16 %v1826, %v1824
        %1891 = vmatpush.bf16.msra.mxu0 %v1841
        %1892 = vmatpush.bf16.msra.mxu0 %v1839
        %1893 = vmatpush.bf16.msra.mxu0 %v1837
        %1894 = vmatpush.bf16.msra.mxu0 %v1835
        %1895 = vmatpush.bf16.msra.mxu0 %v1833
        %1896 = vmatpush.bf16.msra.mxu0 %v1831
        %1897 = vmatpush.bf16.msra.mxu0 %v1829
        %1898 = vmatpush.bf16.msra.mxu0 %v1827
        %1899 = vmatmul.bf16.gmra.mxu0 %v1697
        %v1900 = vpop.f32.mrf.mxu0
        %v1901 = vadd.f32 0.0, %v1900
        %v1902 = vpop.f32.mrf.mxu0
        %1903 = vdwg.mxu0
        %1904 = vmatpush.bf16.msra.mxu0 %v1857
        %1905 = vmatpush.bf16.msra.mxu0 %v1855
        %1906 = vmatpush.bf16.msra.mxu0 %v1853
        %1907 = vmatpush.bf16.msra.mxu0 %v1851
        %1908 = vmatpush.bf16.msra.mxu0 %v1849
        %1909 = vmatpush.bf16.msra.mxu0 %v1847
        %1910 = vmatpush.bf16.msra.mxu0 %v1845
        %1911 = vmatpush.bf16.msra.mxu0 %v1843
        %1912 = vmatmul.bf16.gmra.mxu0 %v1698
        %v1913 = vpop.f32.mrf.mxu0
        %v1914 = vadd.f32 %v1901, %v1913
        %v1915 = vpop.f32.mrf.mxu0
        %1916 = vdwg.mxu0
        %1917 = vmatpush.bf16.msra.mxu0 %v1842
        %1918 = vmatpush.bf16.msra.mxu0 %v1840
        %1919 = vmatpush.bf16.msra.mxu0 %v1838
        %1920 = vmatpush.bf16.msra.mxu0 %v1836
        %1921 = vmatpush.bf16.msra.mxu0 %v1834
        %1922 = vmatpush.bf16.msra.mxu0 %v1832
        %1923 = vmatpush.bf16.msra.mxu0 %v1830
        %1924 = vmatpush.bf16.msra.mxu0 %v1828
        %1925 = vmatmul.bf16.gmra.mxu0 %v1697
        %v1926 = vpop.f32.mrf.mxu0
        %v1927 = vadd.f32 0.0, %v1926
        %v1928 = vpop.f32.mrf.mxu0
        %1929 = vdwg.mxu0
        %1930 = vmatpush.bf16.msra.mxu0 %v1858
        %1931 = vmatpush.bf16.msra.mxu0 %v1856
        %1932 = vmatpush.bf16.msra.mxu0 %v1854
        %1933 = vmatpush.bf16.msra.mxu0 %v1852
        %1934 = vmatpush.bf16.msra.mxu0 %v1850
        %1935 = vmatpush.bf16.msra.mxu0 %v1848
        %1936 = vmatpush.bf16.msra.mxu0 %v1846
        %1937 = vmatpush.bf16.msra.mxu0 %v1844
        %1938 = vmatmul.bf16.gmra.mxu0 %v1698
        %v1939 = vpop.f32.mrf.mxu0
        %v1940 = vadd.f32 %v1927, %v1939
        %v1941 = vpop.f32.mrf.mxu0
        %1942 = vdwg.mxu0
        %v1945 = vrot.slane %v1940, 6
        %v1946 = vsel %vm849, %v1914, %v1945
        %v1948 = vadd.f32 %v840, %v1946
        %v1949 = vld [vmem:[%s802] sm:$0x3]
        %v1951 = vperm.slane %v1949, 0
        %v1952 = vperm.slane %v1949, 1
        %1955 = vst [vmem:[#allocation1] ss:$4 sm:$0xff] %v880
        %v1956 = vld.sshfl [vmem:[#allocation1] sm:$0xff pattern:$0x73625140]
        %v1957 = vld.sshfl [vmem:[#allocation1 + $0x8] sm:$0xff pattern:$0x73625140]
        %v1960 = vmul.f32 %v1951, %v1956
        %v1961 = vmul.f32 %v1952, %v1957
        %v1962 = vpack.c.bf16 %v1960, %v1960
        %v1963 = vpack.c.bf16 %v1961, %v1961
        %v1964 = vld [vmem:[%s689] sm:$0xff]
        %v1965 = vld [vmem:[%s689 + $0x8] sm:$0xff]
        %v1966 = vld [vmem:[%s689 + $0x10] sm:$0xff]
        %v1967 = vld [vmem:[%s689 + $0x18] sm:$0xff]
        %v1968 = vld [vmem:[%s689 + $0x20] sm:$0xff]
        %v1969 = vld [vmem:[%s689 + $0x28] sm:$0xff]
        %v1970 = vld [vmem:[%s689 + $0x30] sm:$0xff]
        %v1971 = vld [vmem:[%s689 + $0x38] sm:$0xff]
        %v1972 = vld [vmem:[%s689 + $0x40] sm:$0xff]
        %v1973 = vld [vmem:[%s689 + $0x48] sm:$0xff]
        %v1974 = vld [vmem:[%s689 + $0x50] sm:$0xff]
        %v1975 = vld [vmem:[%s689 + $0x58] sm:$0xff]
        %v1976 = vld [vmem:[%s689 + $0x60] sm:$0xff]
        %v1977 = vld [vmem:[%s689 + $0x68] sm:$0xff]
        %v1978 = vld [vmem:[%s689 + $0x70] sm:$0xff]
        %v1979 = vld [vmem:[%s689 + $0x78] sm:$0xff]
        %v1980 = vld [vmem:[%s689 + $0x80] sm:$0xff]
        %v1981 = vld [vmem:[%s689 + $0x88] sm:$0xff]
        %v1982 = vld [vmem:[%s689 + $0x90] sm:$0xff]
        %v1983 = vld [vmem:[%s689 + $0x98] sm:$0xff]
        %v1984 = vld [vmem:[%s689 + $0xa0] sm:$0xff]
        %v1985 = vld [vmem:[%s689 + $0xa8] sm:$0xff]
        %v1986 = vld [vmem:[%s689 + $0xb0] sm:$0xff]
        %v1987 = vld [vmem:[%s689 + $0xb8] sm:$0xff]
        %v1988 = vld [vmem:[%s689 + $0xc0] sm:$0xff]
        %v1989 = vld [vmem:[%s689 + $0xc8] sm:$0xff]
        %v1990 = vld [vmem:[%s689 + $0xd0] sm:$0xff]
        %v1991 = vld [vmem:[%s689 + $0xd8] sm:$0xff]
        %v1992 = vld [vmem:[%s689 + $0xe0] sm:$0xff]
        %v1993 = vld [vmem:[%s689 + $0xe8] sm:$0xff]
        %v1994 = vld [vmem:[%s689 + $0xf0] sm:$0xff]
        %v1995 = vld [vmem:[%s689 + $0xf8] sm:$0xff]
        %v1996 = vld [vmem:[%s689 + $0x100] sm:$0xff]
        %v1997 = vld [vmem:[%s689 + $0x108] sm:$0xff]
        %v1998 = vld [vmem:[%s689 + $0x110] sm:$0xff]
        %v1999 = vld [vmem:[%s689 + $0x118] sm:$0xff]
        %v2000 = vld [vmem:[%s689 + $0x120] sm:$0xff]
        %v2001 = vld [vmem:[%s689 + $0x128] sm:$0xff]
        %v2002 = vld [vmem:[%s689 + $0x130] sm:$0xff]
        %v2003 = vld [vmem:[%s689 + $0x138] sm:$0xff]
        %v2004 = vld [vmem:[%s689 + $0x140] sm:$0xff]
        %v2005 = vld [vmem:[%s689 + $0x148] sm:$0xff]
        %v2006 = vld [vmem:[%s689 + $0x150] sm:$0xff]
        %v2007 = vld [vmem:[%s689 + $0x158] sm:$0xff]
        %v2008 = vld [vmem:[%s689 + $0x160] sm:$0xff]
        %v2009 = vld [vmem:[%s689 + $0x168] sm:$0xff]
        %v2010 = vld [vmem:[%s689 + $0x170] sm:$0xff]
        %v2011 = vld [vmem:[%s689 + $0x178] sm:$0xff]
        %v2012 = vld [vmem:[%s689 + $0x180] sm:$0xff]
        %v2013 = vld [vmem:[%s689 + $0x188] sm:$0xff]
        %v2014 = vld [vmem:[%s689 + $0x190] sm:$0xff]
        %v2015 = vld [vmem:[%s689 + $0x198] sm:$0xff]
        %v2016 = vld [vmem:[%s689 + $0x1a0] sm:$0xff]
        %v2017 = vld [vmem:[%s689 + $0x1a8] sm:$0xff]
        %v2018 = vld [vmem:[%s689 + $0x1b0] sm:$0xff]
        %v2019 = vld [vmem:[%s689 + $0x1b8] sm:$0xff]
        %v2020 = vld [vmem:[%s689 + $0x1c0] sm:$0xff]
        %v2021 = vld [vmem:[%s689 + $0x1c8] sm:$0xff]
        %v2022 = vld [vmem:[%s689 + $0x1d0] sm:$0xff]
        %v2023 = vld [vmem:[%s689 + $0x1d8] sm:$0xff]
        %v2024 = vld [vmem:[%s689 + $0x1e0] sm:$0xff]
        %v2025 = vld [vmem:[%s689 + $0x1e8] sm:$0xff]
        %v2026 = vld [vmem:[%s689 + $0x1f0] sm:$0xff]
        %v2027 = vld [vmem:[%s689 + $0x1f8] sm:$0xff]
        %v2028 = vld [vmem:[%s689 + $0x200] sm:$0xff]
        %v2029 = vld [vmem:[%s689 + $0x208] sm:$0xff]
        %v2030 = vld [vmem:[%s689 + $0x210] sm:$0xff]
        %v2031 = vld [vmem:[%s689 + $0x218] sm:$0xff]
        %v2032 = vld [vmem:[%s689 + $0x220] sm:$0xff]
        %v2033 = vld [vmem:[%s689 + $0x228] sm:$0xff]
        %v2034 = vld [vmem:[%s689 + $0x230] sm:$0xff]
        %v2035 = vld [vmem:[%s689 + $0x238] sm:$0xff]
        %v2036 = vld [vmem:[%s689 + $0x240] sm:$0xff]
        %v2037 = vld [vmem:[%s689 + $0x248] sm:$0xff]
        %v2038 = vld [vmem:[%s689 + $0x250] sm:$0xff]
        %v2039 = vld [vmem:[%s689 + $0x258] sm:$0xff]
        %v2040 = vld [vmem:[%s689 + $0x260] sm:$0xff]
        %v2041 = vld [vmem:[%s689 + $0x268] sm:$0xff]
        %v2042 = vld [vmem:[%s689 + $0x270] sm:$0xff]
        %v2043 = vld [vmem:[%s689 + $0x278] sm:$0xff]
        %v2044 = vld [vmem:[%s689 + $0x280] sm:$0xff]
        %v2045 = vld [vmem:[%s689 + $0x288] sm:$0xff]
        %v2046 = vld [vmem:[%s689 + $0x290] sm:$0xff]
        %v2047 = vld [vmem:[%s689 + $0x298] sm:$0xff]
        %v2048 = vld [vmem:[%s689 + $0x2a0] sm:$0xff]
        %v2049 = vld [vmem:[%s689 + $0x2a8] sm:$0xff]
        %v2050 = vld [vmem:[%s689 + $0x2b0] sm:$0xff]
        %v2051 = vld [vmem:[%s689 + $0x2b8] sm:$0xff]
        %v2052 = vld [vmem:[%s689 + $0x2c0] sm:$0xff]
        %v2053 = vld [vmem:[%s689 + $0x2c8] sm:$0xff]
        %v2054 = vld [vmem:[%s689 + $0x2d0] sm:$0xff]
        %v2055 = vld [vmem:[%s689 + $0x2d8] sm:$0xff]
        %v2056 = vld [vmem:[%s689 + $0x2e0] sm:$0xff]
        %v2057 = vld [vmem:[%s689 + $0x2e8] sm:$0xff]
        %v2058 = vld [vmem:[%s689 + $0x2f0] sm:$0xff]
        %v2059 = vld [vmem:[%s689 + $0x2f8] sm:$0xff]
        %v2156 = vunpack.c.l.b16 %v1964
        %v2157 = vunpack.c.h.b16 %v1964
        %v2158 = vunpack.c.l.b16 %v1965
        %v2159 = vunpack.c.h.b16 %v1965
        %v2160 = vunpack.c.l.b16 %v1966
        %v2161 = vunpack.c.h.b16 %v1966
        %v2162 = vunpack.c.l.b16 %v1967
        %v2163 = vunpack.c.h.b16 %v1967
        %v2164 = vunpack.c.l.b16 %v1968
        %v2165 = vunpack.c.h.b16 %v1968
        %v2166 = vunpack.c.l.b16 %v1969
        %v2167 = vunpack.c.h.b16 %v1969
        %v2168 = vunpack.c.l.b16 %v1970
        %v2169 = vunpack.c.h.b16 %v1970
        %v2170 = vunpack.c.l.b16 %v1971
        %v2171 = vunpack.c.h.b16 %v1971
        %v2172 = vunpack.c.l.b16 %v1972
        %v2173 = vunpack.c.h.b16 %v1972
        %v2174 = vunpack.c.l.b16 %v1973
        %v2175 = vunpack.c.h.b16 %v1973
        %v2176 = vunpack.c.l.b16 %v1974
        %v2177 = vunpack.c.h.b16 %v1974
        %v2178 = vunpack.c.l.b16 %v1975
        %v2179 = vunpack.c.h.b16 %v1975
        %v2180 = vunpack.c.l.b16 %v1976
        %v2181 = vunpack.c.h.b16 %v1976
        %v2182 = vunpack.c.l.b16 %v1977
        %v2183 = vunpack.c.h.b16 %v1977
        %v2184 = vunpack.c.l.b16 %v1978
        %v2185 = vunpack.c.h.b16 %v1978
        %v2186 = vunpack.c.l.b16 %v1979
        %v2187 = vunpack.c.h.b16 %v1979
        %v2188 = vunpack.c.l.b16 %v1980
        %v2189 = vunpack.c.h.b16 %v1980
        %v2190 = vunpack.c.l.b16 %v1981
        %v2191 = vunpack.c.h.b16 %v1981
        %v2192 = vunpack.c.l.b16 %v1982
        %v2193 = vunpack.c.h.b16 %v1982
        %v2194 = vunpack.c.l.b16 %v1983
        %v2195 = vunpack.c.h.b16 %v1983
        %v2196 = vunpack.c.l.b16 %v1984
        %v2197 = vunpack.c.h.b16 %v1984
        %v2198 = vunpack.c.l.b16 %v1985
        %v2199 = vunpack.c.h.b16 %v1985
        %v2200 = vunpack.c.l.b16 %v1986
        %v2201 = vunpack.c.h.b16 %v1986
        %v2202 = vunpack.c.l.b16 %v1987
        %v2203 = vunpack.c.h.b16 %v1987
        %v2204 = vunpack.c.l.b16 %v1988
        %v2205 = vunpack.c.h.b16 %v1988
        %v2206 = vunpack.c.l.b16 %v1989
        %v2207 = vunpack.c.h.b16 %v1989
        %v2208 = vunpack.c.l.b16 %v1990
        %v2209 = vunpack.c.h.b16 %v1990
        %v2210 = vunpack.c.l.b16 %v1991
        %v2211 = vunpack.c.h.b16 %v1991
        %v2212 = vunpack.c.l.b16 %v1992
        %v2213 = vunpack.c.h.b16 %v1992
        %v2214 = vunpack.c.l.b16 %v1993
        %v2215 = vunpack.c.h.b16 %v1993
        %v2216 = vunpack.c.l.b16 %v1994
        %v2217 = vunpack.c.h.b16 %v1994
        %v2218 = vunpack.c.l.b16 %v1995
        %v2219 = vunpack.c.h.b16 %v1995
        %v2220 = vunpack.c.l.b16 %v1996
        %v2221 = vunpack.c.h.b16 %v1996
        %v2222 = vunpack.c.l.b16 %v1997
        %v2223 = vunpack.c.h.b16 %v1997
        %v2224 = vunpack.c.l.b16 %v1998
        %v2225 = vunpack.c.h.b16 %v1998
        %v2226 = vunpack.c.l.b16 %v1999
        %v2227 = vunpack.c.h.b16 %v1999
        %v2228 = vunpack.c.l.b16 %v2000
        %v2229 = vunpack.c.h.b16 %v2000
        %v2230 = vunpack.c.l.b16 %v2001
        %v2231 = vunpack.c.h.b16 %v2001
        %v2232 = vunpack.c.l.b16 %v2002
        %v2233 = vunpack.c.h.b16 %v2002
        %v2234 = vunpack.c.l.b16 %v2003
        %v2235 = vunpack.c.h.b16 %v2003
        %v2236 = vunpack.c.l.b16 %v2004
        %v2237 = vunpack.c.h.b16 %v2004
        %v2238 = vunpack.c.l.b16 %v2005
        %v2239 = vunpack.c.h.b16 %v2005
        %v2240 = vunpack.c.l.b16 %v2006
        %v2241 = vunpack.c.h.b16 %v2006
        %v2242 = vunpack.c.l.b16 %v2007
        %v2243 = vunpack.c.h.b16 %v2007
        %v2244 = vunpack.c.l.b16 %v2008
        %v2245 = vunpack.c.h.b16 %v2008
        %v2246 = vunpack.c.l.b16 %v2009
        %v2247 = vunpack.c.h.b16 %v2009
        %v2248 = vunpack.c.l.b16 %v2010
        %v2249 = vunpack.c.h.b16 %v2010
        %v2250 = vunpack.c.l.b16 %v2011
        %v2251 = vunpack.c.h.b16 %v2011
        %v2252 = vunpack.c.l.b16 %v2012
        %v2253 = vunpack.c.h.b16 %v2012
        %v2254 = vunpack.c.l.b16 %v2013
        %v2255 = vunpack.c.h.b16 %v2013
        %v2256 = vunpack.c.l.b16 %v2014
        %v2257 = vunpack.c.h.b16 %v2014
        %v2258 = vunpack.c.l.b16 %v2015
        %v2259 = vunpack.c.h.b16 %v2015
        %v2260 = vunpack.c.l.b16 %v2016
        %v2261 = vunpack.c.h.b16 %v2016
        %v2262 = vunpack.c.l.b16 %v2017
        %v2263 = vunpack.c.h.b16 %v2017
        %v2264 = vunpack.c.l.b16 %v2018
        %v2265 = vunpack.c.h.b16 %v2018
        %v2266 = vunpack.c.l.b16 %v2019
        %v2267 = vunpack.c.h.b16 %v2019
        %v2268 = vunpack.c.l.b16 %v2020
        %v2269 = vunpack.c.h.b16 %v2020
        %v2270 = vunpack.c.l.b16 %v2021
        %v2271 = vunpack.c.h.b16 %v2021
        %v2272 = vunpack.c.l.b16 %v2022
        %v2273 = vunpack.c.h.b16 %v2022
        %v2274 = vunpack.c.l.b16 %v2023
        %v2275 = vunpack.c.h.b16 %v2023
        %v2276 = vunpack.c.l.b16 %v2024
        %v2277 = vunpack.c.h.b16 %v2024
        %v2278 = vunpack.c.l.b16 %v2025
        %v2279 = vunpack.c.h.b16 %v2025
        %v2280 = vunpack.c.l.b16 %v2026
        %v2281 = vunpack.c.h.b16 %v2026
        %v2282 = vunpack.c.l.b16 %v2027
        %v2283 = vunpack.c.h.b16 %v2027
        %v2284 = vunpack.c.l.b16 %v2028
        %v2285 = vunpack.c.h.b16 %v2028
        %v2286 = vunpack.c.l.b16 %v2029
        %v2287 = vunpack.c.h.b16 %v2029
        %v2288 = vunpack.c.l.b16 %v2030
        %v2289 = vunpack.c.h.b16 %v2030
        %v2290 = vunpack.c.l.b16 %v2031
        %v2291 = vunpack.c.h.b16 %v2031
        %v2292 = vunpack.c.l.b16 %v2032
        %v2293 = vunpack.c.h.b16 %v2032
        %v2294 = vunpack.c.l.b16 %v2033
        %v2295 = vunpack.c.h.b16 %v2033
        %v2296 = vunpack.c.l.b16 %v2034
        %v2297 = vunpack.c.h.b16 %v2034
        %v2298 = vunpack.c.l.b16 %v2035
        %v2299 = vunpack.c.h.b16 %v2035
        %v2300 = vunpack.c.l.b16 %v2036
        %v2301 = vunpack.c.h.b16 %v2036
        %v2302 = vunpack.c.l.b16 %v2037
        %v2303 = vunpack.c.h.b16 %v2037
        %v2304 = vunpack.c.l.b16 %v2038
        %v2305 = vunpack.c.h.b16 %v2038
        %v2306 = vunpack.c.l.b16 %v2039
        %v2307 = vunpack.c.h.b16 %v2039
        %v2308 = vunpack.c.l.b16 %v2040
        %v2309 = vunpack.c.h.b16 %v2040
        %v2310 = vunpack.c.l.b16 %v2041
        %v2311 = vunpack.c.h.b16 %v2041
        %v2312 = vunpack.c.l.b16 %v2042
        %v2313 = vunpack.c.h.b16 %v2042
        %v2314 = vunpack.c.l.b16 %v2043
        %v2315 = vunpack.c.h.b16 %v2043
        %v2316 = vunpack.c.l.b16 %v2044
        %v2317 = vunpack.c.h.b16 %v2044
        %v2318 = vunpack.c.l.b16 %v2045
        %v2319 = vunpack.c.h.b16 %v2045
        %v2320 = vunpack.c.l.b16 %v2046
        %v2321 = vunpack.c.h.b16 %v2046
        %v2322 = vunpack.c.l.b16 %v2047
        %v2323 = vunpack.c.h.b16 %v2047
        %v2324 = vunpack.c.l.b16 %v2048
        %v2325 = vunpack.c.h.b16 %v2048
        %v2326 = vunpack.c.l.b16 %v2049
        %v2327 = vunpack.c.h.b16 %v2049
        %v2328 = vunpack.c.l.b16 %v2050
        %v2329 = vunpack.c.h.b16 %v2050
        %v2330 = vunpack.c.l.b16 %v2051
        %v2331 = vunpack.c.h.b16 %v2051
        %v2332 = vunpack.c.l.b16 %v2052
        %v2333 = vunpack.c.h.b16 %v2052
        %v2334 = vunpack.c.l.b16 %v2053
        %v2335 = vunpack.c.h.b16 %v2053
        %v2336 = vunpack.c.l.b16 %v2054
        %v2337 = vunpack.c.h.b16 %v2054
        %v2338 = vunpack.c.l.b16 %v2055
        %v2339 = vunpack.c.h.b16 %v2055
        %v2340 = vunpack.c.l.b16 %v2056
        %v2341 = vunpack.c.h.b16 %v2056
        %v2342 = vunpack.c.l.b16 %v2057
        %v2343 = vunpack.c.h.b16 %v2057
        %v2344 = vunpack.c.l.b16 %v2058
        %v2345 = vunpack.c.h.b16 %v2058
        %v2346 = vunpack.c.l.b16 %v2059
        %v2347 = vunpack.c.h.b16 %v2059
        %v2348 = vpack.c.b16 %v2162, %v2156
        %v2349 = vpack.c.b16 %v2163, %v2157
        %v2350 = vpack.c.b16 %v2164, %v2158
        %v2351 = vpack.c.b16 %v2165, %v2159
        %v2352 = vpack.c.b16 %v2166, %v2160
        %v2353 = vpack.c.b16 %v2167, %v2161
        %v2354 = vpack.c.b16 %v2174, %v2168
        %v2355 = vpack.c.b16 %v2175, %v2169
        %v2356 = vpack.c.b16 %v2176, %v2170
        %v2357 = vpack.c.b16 %v2177, %v2171
        %v2358 = vpack.c.b16 %v2178, %v2172
        %v2359 = vpack.c.b16 %v2179, %v2173
        %v2360 = vpack.c.b16 %v2186, %v2180
        %v2361 = vpack.c.b16 %v2187, %v2181
        %v2362 = vpack.c.b16 %v2188, %v2182
        %v2363 = vpack.c.b16 %v2189, %v2183
        %v2364 = vpack.c.b16 %v2190, %v2184
        %v2365 = vpack.c.b16 %v2191, %v2185
        %v2366 = vpack.c.b16 %v2198, %v2192
        %v2367 = vpack.c.b16 %v2199, %v2193
        %v2368 = vpack.c.b16 %v2200, %v2194
        %v2369 = vpack.c.b16 %v2201, %v2195
        %v2370 = vpack.c.b16 %v2202, %v2196
        %v2371 = vpack.c.b16 %v2203, %v2197
        %v2372 = vpack.c.b16 %v2210, %v2204
        %v2373 = vpack.c.b16 %v2211, %v2205
        %v2374 = vpack.c.b16 %v2212, %v2206
        %v2375 = vpack.c.b16 %v2213, %v2207
        %v2376 = vpack.c.b16 %v2214, %v2208
        %v2377 = vpack.c.b16 %v2215, %v2209
        %v2378 = vpack.c.b16 %v2222, %v2216
        %v2379 = vpack.c.b16 %v2223, %v2217
        %v2380 = vpack.c.b16 %v2224, %v2218
        %v2381 = vpack.c.b16 %v2225, %v2219
        %v2382 = vpack.c.b16 %v2226, %v2220
        %v2383 = vpack.c.b16 %v2227, %v2221
        %v2384 = vpack.c.b16 %v2234, %v2228
        %v2385 = vpack.c.b16 %v2235, %v2229
        %v2386 = vpack.c.b16 %v2236, %v2230
        %v2387 = vpack.c.b16 %v2237, %v2231
        %v2388 = vpack.c.b16 %v2238, %v2232
        %v2389 = vpack.c.b16 %v2239, %v2233
        %v2390 = vpack.c.b16 %v2246, %v2240
        %v2391 = vpack.c.b16 %v2247, %v2241
        %v2392 = vpack.c.b16 %v2248, %v2242
        %v2393 = vpack.c.b16 %v2249, %v2243
        %v2394 = vpack.c.b16 %v2250, %v2244
        %v2395 = vpack.c.b16 %v2251, %v2245
        %v2396 = vpack.c.b16 %v2258, %v2252
        %v2397 = vpack.c.b16 %v2259, %v2253
        %v2398 = vpack.c.b16 %v2260, %v2254
        %v2399 = vpack.c.b16 %v2261, %v2255
        %v2400 = vpack.c.b16 %v2262, %v2256
        %v2401 = vpack.c.b16 %v2263, %v2257
        %v2402 = vpack.c.b16 %v2270, %v2264
        %v2403 = vpack.c.b16 %v2271, %v2265
        %v2404 = vpack.c.b16 %v2272, %v2266
        %v2405 = vpack.c.b16 %v2273, %v2267
        %v2406 = vpack.c.b16 %v2274, %v2268
        %v2407 = vpack.c.b16 %v2275, %v2269
        %v2408 = vpack.c.b16 %v2282, %v2276
        %v2409 = vpack.c.b16 %v2283, %v2277
        %v2410 = vpack.c.b16 %v2284, %v2278
        %v2411 = vpack.c.b16 %v2285, %v2279
        %v2412 = vpack.c.b16 %v2286, %v2280
        %v2413 = vpack.c.b16 %v2287, %v2281
        %v2414 = vpack.c.b16 %v2294, %v2288
        %v2415 = vpack.c.b16 %v2295, %v2289
        %v2416 = vpack.c.b16 %v2296, %v2290
        %v2417 = vpack.c.b16 %v2297, %v2291
        %v2418 = vpack.c.b16 %v2298, %v2292
        %v2419 = vpack.c.b16 %v2299, %v2293
        %v2420 = vpack.c.b16 %v2306, %v2300
        %v2421 = vpack.c.b16 %v2307, %v2301
        %v2422 = vpack.c.b16 %v2308, %v2302
        %v2423 = vpack.c.b16 %v2309, %v2303
        %v2424 = vpack.c.b16 %v2310, %v2304
        %v2425 = vpack.c.b16 %v2311, %v2305
        %v2426 = vpack.c.b16 %v2318, %v2312
        %v2427 = vpack.c.b16 %v2319, %v2313
        %v2428 = vpack.c.b16 %v2320, %v2314
        %v2429 = vpack.c.b16 %v2321, %v2315
        %v2430 = vpack.c.b16 %v2322, %v2316
        %v2431 = vpack.c.b16 %v2323, %v2317
        %v2432 = vpack.c.b16 %v2330, %v2324
        %v2433 = vpack.c.b16 %v2331, %v2325
        %v2434 = vpack.c.b16 %v2332, %v2326
        %v2435 = vpack.c.b16 %v2333, %v2327
        %v2436 = vpack.c.b16 %v2334, %v2328
        %v2437 = vpack.c.b16 %v2335, %v2329
        %v2438 = vpack.c.b16 %v2342, %v2336
        %v2439 = vpack.c.b16 %v2343, %v2337
        %v2440 = vpack.c.b16 %v2344, %v2338
        %v2441 = vpack.c.b16 %v2345, %v2339
        %v2442 = vpack.c.b16 %v2346, %v2340
        %v2443 = vpack.c.b16 %v2347, %v2341
        %2540 = vmatpush.bf16.msra.mxu0 %v2390
        %2541 = vmatpush.bf16.msra.mxu0 %v2384
        %2542 = vmatpush.bf16.msra.mxu0 %v2378
        %2543 = vmatpush.bf16.msra.mxu0 %v2372
        %2544 = vmatpush.bf16.msra.mxu0 %v2366
        %2545 = vmatpush.bf16.msra.mxu0 %v2360
        %2546 = vmatpush.bf16.msra.mxu0 %v2354
        %2547 = vmatpush.bf16.msra.mxu0 %v2348
        %2548 = vmatmul.bf16.gmra.mxu0 %v1962
        %v2549 = vpop.f32.mrf.mxu0
        %v2550 = vadd.f32 0.0, %v2549
        %v2551 = vpop.f32.mrf.mxu0
        %2552 = vdwg.mxu0
        %2553 = vmatpush.bf16.msra.mxu0 %v2438
        %2554 = vmatpush.bf16.msra.mxu0 %v2432
        %2555 = vmatpush.bf16.msra.mxu0 %v2426
        %2556 = vmatpush.bf16.msra.mxu0 %v2420
        %2557 = vmatpush.bf16.msra.mxu0 %v2414
        %2558 = vmatpush.bf16.msra.mxu0 %v2408
        %2559 = vmatpush.bf16.msra.mxu0 %v2402
        %2560 = vmatpush.bf16.msra.mxu0 %v2396
        %2561 = vmatmul.bf16.gmra.mxu0 %v1963
        %v2562 = vpop.f32.mrf.mxu0
        %v2563 = vadd.f32 %v2550, %v2562
        %v2564 = vpop.f32.mrf.mxu0
        %2565 = vdwg.mxu0
        %2566 = vmatpush.bf16.msra.mxu0 %v2391
        %2567 = vmatpush.bf16.msra.mxu0 %v2385
        %2568 = vmatpush.bf16.msra.mxu0 %v2379
        %2569 = vmatpush.bf16.msra.mxu0 %v2373
        %2570 = vmatpush.bf16.msra.mxu0 %v2367
        %2571 = vmatpush.bf16.msra.mxu0 %v2361
        %2572 = vmatpush.bf16.msra.mxu0 %v2355
        %2573 = vmatpush.bf16.msra.mxu0 %v2349
        %2574 = vmatmul.bf16.gmra.mxu0 %v1962
        %v2575 = vpop.f32.mrf.mxu0
        %v2576 = vadd.f32 0.0, %v2575
        %v2577 = vpop.f32.mrf.mxu0
        %2578 = vdwg.mxu0
        %2579 = vmatpush.bf16.msra.mxu0 %v2439
        %2580 = vmatpush.bf16.msra.mxu0 %v2433
        %2581 = vmatpush.bf16.msra.mxu0 %v2427
        %2582 = vmatpush.bf16.msra.mxu0 %v2421
        %2583 = vmatpush.bf16.msra.mxu0 %v2415
        %2584 = vmatpush.bf16.msra.mxu0 %v2409
        %2585 = vmatpush.bf16.msra.mxu0 %v2403
        %2586 = vmatpush.bf16.msra.mxu0 %v2397
        %2587 = vmatmul.bf16.gmra.mxu0 %v1963
        %v2588 = vpop.f32.mrf.mxu0
        %v2589 = vadd.f32 %v2576, %v2588
        %v2590 = vpop.f32.mrf.mxu0
        %2591 = vdwg.mxu0
        %2592 = vmatpush.bf16.msra.mxu0 %v2392
        %2593 = vmatpush.bf16.msra.mxu0 %v2386
        %2594 = vmatpush.bf16.msra.mxu0 %v2380
        %2595 = vmatpush.bf16.msra.mxu0 %v2374
        %2596 = vmatpush.bf16.msra.mxu0 %v2368
        %2597 = vmatpush.bf16.msra.mxu0 %v2362
        %2598 = vmatpush.bf16.msra.mxu0 %v2356
        %2599 = vmatpush.bf16.msra.mxu0 %v2350
        %2600 = vmatmul.bf16.gmra.mxu0 %v1962
        %v2601 = vpop.f32.mrf.mxu0
        %v2602 = vadd.f32 0.0, %v2601
        %v2603 = vpop.f32.mrf.mxu0
        %2604 = vdwg.mxu0
        %2605 = vmatpush.bf16.msra.mxu0 %v2440
        %2606 = vmatpush.bf16.msra.mxu0 %v2434
        %2607 = vmatpush.bf16.msra.mxu0 %v2428
        %2608 = vmatpush.bf16.msra.mxu0 %v2422
        %2609 = vmatpush.bf16.msra.mxu0 %v2416
        %2610 = vmatpush.bf16.msra.mxu0 %v2410
        %2611 = vmatpush.bf16.msra.mxu0 %v2404
        %2612 = vmatpush.bf16.msra.mxu0 %v2398
        %2613 = vmatmul.bf16.gmra.mxu0 %v1963
        %v2614 = vpop.f32.mrf.mxu0
        %v2615 = vadd.f32 %v2602, %v2614
        %v2616 = vpop.f32.mrf.mxu0
        %2617 = vdwg.mxu0
        %2618 = vmatpush.bf16.msra.mxu0 %v2393
        %2619 = vmatpush.bf16.msra.mxu0 %v2387
        %2620 = vmatpush.bf16.msra.mxu0 %v2381
        %2621 = vmatpush.bf16.msra.mxu0 %v2375
        %2622 = vmatpush.bf16.msra.mxu0 %v2369
        %2623 = vmatpush.bf16.msra.mxu0 %v2363
        %2624 = vmatpush.bf16.msra.mxu0 %v2357
        %2625 = vmatpush.bf16.msra.mxu0 %v2351
        %2626 = vmatmul.bf16.gmra.mxu0 %v1962
        %v2627 = vpop.f32.mrf.mxu0
        %v2628 = vadd.f32 0.0, %v2627
        %v2629 = vpop.f32.mrf.mxu0
        %2630 = vdwg.mxu0
        %2631 = vmatpush.bf16.msra.mxu0 %v2441
        %2632 = vmatpush.bf16.msra.mxu0 %v2435
        %2633 = vmatpush.bf16.msra.mxu0 %v2429
        %2634 = vmatpush.bf16.msra.mxu0 %v2423
        %2635 = vmatpush.bf16.msra.mxu0 %v2417
        %2636 = vmatpush.bf16.msra.mxu0 %v2411
        %2637 = vmatpush.bf16.msra.mxu0 %v2405
        %2638 = vmatpush.bf16.msra.mxu0 %v2399
        %2639 = vmatmul.bf16.gmra.mxu0 %v1963
        %v2640 = vpop.f32.mrf.mxu0
        %v2641 = vadd.f32 %v2628, %v2640
        %v2642 = vpop.f32.mrf.mxu0
        %2643 = vdwg.mxu0
        %2644 = vmatpush.bf16.msra.mxu0 %v2394
        %2645 = vmatpush.bf16.msra.mxu0 %v2388
        %2646 = vmatpush.bf16.msra.mxu0 %v2382
        %2647 = vmatpush.bf16.msra.mxu0 %v2376
        %2648 = vmatpush.bf16.msra.mxu0 %v2370
        %2649 = vmatpush.bf16.msra.mxu0 %v2364
        %2650 = vmatpush.bf16.msra.mxu0 %v2358
        %2651 = vmatpush.bf16.msra.mxu0 %v2352
        %2652 = vmatmul.bf16.gmra.mxu0 %v1962
        %v2653 = vpop.f32.mrf.mxu0
        %v2654 = vadd.f32 0.0, %v2653
        %v2655 = vpop.f32.mrf.mxu0
        %2656 = vdwg.mxu0
        %2657 = vmatpush.bf16.msra.mxu0 %v2442
        %2658 = vmatpush.bf16.msra.mxu0 %v2436
        %2659 = vmatpush.bf16.msra.mxu0 %v2430
        %2660 = vmatpush.bf16.msra.mxu0 %v2424
        %2661 = vmatpush.bf16.msra.mxu0 %v2418
        %2662 = vmatpush.bf16.msra.mxu0 %v2412
        %2663 = vmatpush.bf16.msra.mxu0 %v2406
        %2664 = vmatpush.bf16.msra.mxu0 %v2400
        %2665 = vmatmul.bf16.gmra.mxu0 %v1963
        %v2666 = vpop.f32.mrf.mxu0
        %v2667 = vadd.f32 %v2654, %v2666
        %v2668 = vpop.f32.mrf.mxu0
        %2669 = vdwg.mxu0
        %2670 = vmatpush.bf16.msra.mxu0 %v2395
        %2671 = vmatpush.bf16.msra.mxu0 %v2389
        %2672 = vmatpush.bf16.msra.mxu0 %v2383
        %2673 = vmatpush.bf16.msra.mxu0 %v2377
        %2674 = vmatpush.bf16.msra.mxu0 %v2371
        %2675 = vmatpush.bf16.msra.mxu0 %v2365
        %2676 = vmatpush.bf16.msra.mxu0 %v2359
        %2677 = vmatpush.bf16.msra.mxu0 %v2353
        %2678 = vmatmul.bf16.gmra.mxu0 %v1962
        %v2679 = vpop.f32.mrf.mxu0
        %v2680 = vadd.f32 0.0, %v2679
        %v2681 = vpop.f32.mrf.mxu0
        %2682 = vdwg.mxu0
        %2683 = vmatpush.bf16.msra.mxu0 %v2443
        %2684 = vmatpush.bf16.msra.mxu0 %v2437
        %2685 = vmatpush.bf16.msra.mxu0 %v2431
        %2686 = vmatpush.bf16.msra.mxu0 %v2425
        %2687 = vmatpush.bf16.msra.mxu0 %v2419
        %2688 = vmatpush.bf16.msra.mxu0 %v2413
        %2689 = vmatpush.bf16.msra.mxu0 %v2407
        %2690 = vmatpush.bf16.msra.mxu0 %v2401
        %2691 = vmatmul.bf16.gmra.mxu0 %v1963
        %v2692 = vpop.f32.mrf.mxu0
        %v2693 = vadd.f32 %v2680, %v2692
        %v2694 = vpop.f32.mrf.mxu0
        %2695 = vdwg.mxu0
        %v2696 = vld [vmem:[%s709] sm:$0xff]
        %v2697 = vld [vmem:[%s709 + $0x8] sm:$0xff]
        %v2698 = vld [vmem:[%s709 + $0x10] sm:$0xff]
        %v2699 = vld [vmem:[%s709 + $0x18] sm:$0xff]
        %v2700 = vld [vmem:[%s709 + $0x20] sm:$0xff]
        %v2701 = vld [vmem:[%s709 + $0x28] sm:$0xff]
        %v2702 = vld [vmem:[%s709 + $0x30] sm:$0xff]
        %v2703 = vld [vmem:[%s709 + $0x38] sm:$0xff]
        %v2704 = vld [vmem:[%s709 + $0x40] sm:$0xff]
        %v2705 = vld [vmem:[%s709 + $0x48] sm:$0xff]
        %v2706 = vld [vmem:[%s709 + $0x50] sm:$0xff]
        %v2707 = vld [vmem:[%s709 + $0x58] sm:$0xff]
        %v2708 = vld [vmem:[%s709 + $0x60] sm:$0xff]
        %v2709 = vld [vmem:[%s709 + $0x68] sm:$0xff]
        %v2710 = vld [vmem:[%s709 + $0x70] sm:$0xff]
        %v2711 = vld [vmem:[%s709 + $0x78] sm:$0xff]
        %v2712 = vld [vmem:[%s709 + $0x80] sm:$0xff]
        %v2713 = vld [vmem:[%s709 + $0x88] sm:$0xff]
        %v2714 = vld [vmem:[%s709 + $0x90] sm:$0xff]
        %v2715 = vld [vmem:[%s709 + $0x98] sm:$0xff]
        %v2716 = vld [vmem:[%s709 + $0xa0] sm:$0xff]
        %v2717 = vld [vmem:[%s709 + $0xa8] sm:$0xff]
        %v2718 = vld [vmem:[%s709 + $0xb0] sm:$0xff]
        %v2719 = vld [vmem:[%s709 + $0xb8] sm:$0xff]
        %v2720 = vld [vmem:[%s709 + $0xc0] sm:$0xff]
        %v2721 = vld [vmem:[%s709 + $0xc8] sm:$0xff]
        %v2722 = vld [vmem:[%s709 + $0xd0] sm:$0xff]
        %v2723 = vld [vmem:[%s709 + $0xd8] sm:$0xff]
        %v2724 = vld [vmem:[%s709 + $0xe0] sm:$0xff]
        %v2725 = vld [vmem:[%s709 + $0xe8] sm:$0xff]
        %v2726 = vld [vmem:[%s709 + $0xf0] sm:$0xff]
        %v2727 = vld [vmem:[%s709 + $0xf8] sm:$0xff]
        %v2728 = vld [vmem:[%s709 + $0x100] sm:$0xff]
        %v2729 = vld [vmem:[%s709 + $0x108] sm:$0xff]
        %v2730 = vld [vmem:[%s709 + $0x110] sm:$0xff]
        %v2731 = vld [vmem:[%s709 + $0x118] sm:$0xff]
        %v2732 = vld [vmem:[%s709 + $0x120] sm:$0xff]
        %v2733 = vld [vmem:[%s709 + $0x128] sm:$0xff]
        %v2734 = vld [vmem:[%s709 + $0x130] sm:$0xff]
        %v2735 = vld [vmem:[%s709 + $0x138] sm:$0xff]
        %v2736 = vld [vmem:[%s709 + $0x140] sm:$0xff]
        %v2737 = vld [vmem:[%s709 + $0x148] sm:$0xff]
        %v2738 = vld [vmem:[%s709 + $0x150] sm:$0xff]
        %v2739 = vld [vmem:[%s709 + $0x158] sm:$0xff]
        %v2740 = vld [vmem:[%s709 + $0x160] sm:$0xff]
        %v2741 = vld [vmem:[%s709 + $0x168] sm:$0xff]
        %v2742 = vld [vmem:[%s709 + $0x170] sm:$0xff]
        %v2743 = vld [vmem:[%s709 + $0x178] sm:$0xff]
        %v2744 = vld [vmem:[%s709 + $0x180] sm:$0xff]
        %v2745 = vld [vmem:[%s709 + $0x188] sm:$0xff]
        %v2746 = vld [vmem:[%s709 + $0x190] sm:$0xff]
        %v2747 = vld [vmem:[%s709 + $0x198] sm:$0xff]
        %v2748 = vld [vmem:[%s709 + $0x1a0] sm:$0xff]
        %v2749 = vld [vmem:[%s709 + $0x1a8] sm:$0xff]
        %v2750 = vld [vmem:[%s709 + $0x1b0] sm:$0xff]
        %v2751 = vld [vmem:[%s709 + $0x1b8] sm:$0xff]
        %v2752 = vld [vmem:[%s709 + $0x1c0] sm:$0xff]
        %v2753 = vld [vmem:[%s709 + $0x1c8] sm:$0xff]
        %v2754 = vld [vmem:[%s709 + $0x1d0] sm:$0xff]
        %v2755 = vld [vmem:[%s709 + $0x1d8] sm:$0xff]
        %v2756 = vld [vmem:[%s709 + $0x1e0] sm:$0xff]
        %v2757 = vld [vmem:[%s709 + $0x1e8] sm:$0xff]
        %v2758 = vld [vmem:[%s709 + $0x1f0] sm:$0xff]
        %v2759 = vld [vmem:[%s709 + $0x1f8] sm:$0xff]
        %v2760 = vld [vmem:[%s709 + $0x200] sm:$0xff]
        %v2761 = vld [vmem:[%s709 + $0x208] sm:$0xff]
        %v2762 = vld [vmem:[%s709 + $0x210] sm:$0xff]
        %v2763 = vld [vmem:[%s709 + $0x218] sm:$0xff]
        %v2764 = vld [vmem:[%s709 + $0x220] sm:$0xff]
        %v2765 = vld [vmem:[%s709 + $0x228] sm:$0xff]
        %v2766 = vld [vmem:[%s709 + $0x230] sm:$0xff]
        %v2767 = vld [vmem:[%s709 + $0x238] sm:$0xff]
        %v2768 = vld [vmem:[%s709 + $0x240] sm:$0xff]
        %v2769 = vld [vmem:[%s709 + $0x248] sm:$0xff]
        %v2770 = vld [vmem:[%s709 + $0x250] sm:$0xff]
        %v2771 = vld [vmem:[%s709 + $0x258] sm:$0xff]
        %v2772 = vld [vmem:[%s709 + $0x260] sm:$0xff]
        %v2773 = vld [vmem:[%s709 + $0x268] sm:$0xff]
        %v2774 = vld [vmem:[%s709 + $0x270] sm:$0xff]
        %v2775 = vld [vmem:[%s709 + $0x278] sm:$0xff]
        %v2776 = vld [vmem:[%s709 + $0x280] sm:$0xff]
        %v2777 = vld [vmem:[%s709 + $0x288] sm:$0xff]
        %v2778 = vld [vmem:[%s709 + $0x290] sm:$0xff]
        %v2779 = vld [vmem:[%s709 + $0x298] sm:$0xff]
        %v2780 = vld [vmem:[%s709 + $0x2a0] sm:$0xff]
        %v2781 = vld [vmem:[%s709 + $0x2a8] sm:$0xff]
        %v2782 = vld [vmem:[%s709 + $0x2b0] sm:$0xff]
        %v2783 = vld [vmem:[%s709 + $0x2b8] sm:$0xff]
        %v2784 = vld [vmem:[%s709 + $0x2c0] sm:$0xff]
        %v2785 = vld [vmem:[%s709 + $0x2c8] sm:$0xff]
        %v2786 = vld [vmem:[%s709 + $0x2d0] sm:$0xff]
        %v2787 = vld [vmem:[%s709 + $0x2d8] sm:$0xff]
        %v2788 = vld [vmem:[%s709 + $0x2e0] sm:$0xff]
        %v2789 = vld [vmem:[%s709 + $0x2e8] sm:$0xff]
        %v2790 = vld [vmem:[%s709 + $0x2f0] sm:$0xff]
        %v2791 = vld [vmem:[%s709 + $0x2f8] sm:$0xff]
        %v2888 = vunpack.c.l.b16 %v2696
        %v2889 = vunpack.c.h.b16 %v2696
        %v2890 = vunpack.c.l.b16 %v2697
        %v2891 = vunpack.c.h.b16 %v2697
        %v2892 = vunpack.c.l.b16 %v2698
        %v2893 = vunpack.c.h.b16 %v2698
        %v2894 = vunpack.c.l.b16 %v2699
        %v2895 = vunpack.c.h.b16 %v2699
        %v2896 = vunpack.c.l.b16 %v2700
        %v2897 = vunpack.c.h.b16 %v2700
        %v2898 = vunpack.c.l.b16 %v2701
        %v2899 = vunpack.c.h.b16 %v2701
        %v2900 = vunpack.c.l.b16 %v2702
        %v2901 = vunpack.c.h.b16 %v2702
        %v2902 = vunpack.c.l.b16 %v2703
        %v2903 = vunpack.c.h.b16 %v2703
        %v2904 = vunpack.c.l.b16 %v2704
        %v2905 = vunpack.c.h.b16 %v2704
        %v2906 = vunpack.c.l.b16 %v2705
        %v2907 = vunpack.c.h.b16 %v2705
        %v2908 = vunpack.c.l.b16 %v2706
        %v2909 = vunpack.c.h.b16 %v2706
        %v2910 = vunpack.c.l.b16 %v2707
        %v2911 = vunpack.c.h.b16 %v2707
        %v2912 = vunpack.c.l.b16 %v2708
        %v2913 = vunpack.c.h.b16 %v2708
        %v2914 = vunpack.c.l.b16 %v2709
        %v2915 = vunpack.c.h.b16 %v2709
        %v2916 = vunpack.c.l.b16 %v2710
        %v2917 = vunpack.c.h.b16 %v2710
        %v2918 = vunpack.c.l.b16 %v2711
        %v2919 = vunpack.c.h.b16 %v2711
        %v2920 = vunpack.c.l.b16 %v2712
        %v2921 = vunpack.c.h.b16 %v2712
        %v2922 = vunpack.c.l.b16 %v2713
        %v2923 = vunpack.c.h.b16 %v2713
        %v2924 = vunpack.c.l.b16 %v2714
        %v2925 = vunpack.c.h.b16 %v2714
        %v2926 = vunpack.c.l.b16 %v2715
        %v2927 = vunpack.c.h.b16 %v2715
        %v2928 = vunpack.c.l.b16 %v2716
        %v2929 = vunpack.c.h.b16 %v2716
        %v2930 = vunpack.c.l.b16 %v2717
        %v2931 = vunpack.c.h.b16 %v2717
        %v2932 = vunpack.c.l.b16 %v2718
        %v2933 = vunpack.c.h.b16 %v2718
        %v2934 = vunpack.c.l.b16 %v2719
        %v2935 = vunpack.c.h.b16 %v2719
        %v2936 = vunpack.c.l.b16 %v2720
        %v2937 = vunpack.c.h.b16 %v2720
        %v2938 = vunpack.c.l.b16 %v2721
        %v2939 = vunpack.c.h.b16 %v2721
        %v2940 = vunpack.c.l.b16 %v2722
        %v2941 = vunpack.c.h.b16 %v2722
        %v2942 = vunpack.c.l.b16 %v2723
        %v2943 = vunpack.c.h.b16 %v2723
        %v2944 = vunpack.c.l.b16 %v2724
        %v2945 = vunpack.c.h.b16 %v2724
        %v2946 = vunpack.c.l.b16 %v2725
        %v2947 = vunpack.c.h.b16 %v2725
        %v2948 = vunpack.c.l.b16 %v2726
        %v2949 = vunpack.c.h.b16 %v2726
        %v2950 = vunpack.c.l.b16 %v2727
        %v2951 = vunpack.c.h.b16 %v2727
        %v2952 = vunpack.c.l.b16 %v2728
        %v2953 = vunpack.c.h.b16 %v2728
        %v2954 = vunpack.c.l.b16 %v2729
        %v2955 = vunpack.c.h.b16 %v2729
        %v2956 = vunpack.c.l.b16 %v2730
        %v2957 = vunpack.c.h.b16 %v2730
        %v2958 = vunpack.c.l.b16 %v2731
        %v2959 = vunpack.c.h.b16 %v2731
        %v2960 = vunpack.c.l.b16 %v2732
        %v2961 = vunpack.c.h.b16 %v2732
        %v2962 = vunpack.c.l.b16 %v2733
        %v2963 = vunpack.c.h.b16 %v2733
        %v2964 = vunpack.c.l.b16 %v2734
        %v2965 = vunpack.c.h.b16 %v2734
        %v2966 = vunpack.c.l.b16 %v2735
        %v2967 = vunpack.c.h.b16 %v2735
        %v2968 = vunpack.c.l.b16 %v2736
        %v2969 = vunpack.c.h.b16 %v2736
        %v2970 = vunpack.c.l.b16 %v2737
        %v2971 = vunpack.c.h.b16 %v2737
        %v2972 = vunpack.c.l.b16 %v2738
        %v2973 = vunpack.c.h.b16 %v2738
        %v2974 = vunpack.c.l.b16 %v2739
        %v2975 = vunpack.c.h.b16 %v2739
        %v2976 = vunpack.c.l.b16 %v2740
        %v2977 = vunpack.c.h.b16 %v2740
        %v2978 = vunpack.c.l.b16 %v2741
        %v2979 = vunpack.c.h.b16 %v2741
        %v2980 = vunpack.c.l.b16 %v2742
        %v2981 = vunpack.c.h.b16 %v2742
        %v2982 = vunpack.c.l.b16 %v2743
        %v2983 = vunpack.c.h.b16 %v2743
        %v2984 = vunpack.c.l.b16 %v2744
        %v2985 = vunpack.c.h.b16 %v2744
        %v2986 = vunpack.c.l.b16 %v2745
        %v2987 = vunpack.c.h.b16 %v2745
        %v2988 = vunpack.c.l.b16 %v2746
        %v2989 = vunpack.c.h.b16 %v2746
        %v2990 = vunpack.c.l.b16 %v2747
        %v2991 = vunpack.c.h.b16 %v2747
        %v2992 = vunpack.c.l.b16 %v2748
        %v2993 = vunpack.c.h.b16 %v2748
        %v2994 = vunpack.c.l.b16 %v2749
        %v2995 = vunpack.c.h.b16 %v2749
        %v2996 = vunpack.c.l.b16 %v2750
        %v2997 = vunpack.c.h.b16 %v2750
        %v2998 = vunpack.c.l.b16 %v2751
        %v2999 = vunpack.c.h.b16 %v2751
        %v3000 = vunpack.c.l.b16 %v2752
        %v3001 = vunpack.c.h.b16 %v2752
        %v3002 = vunpack.c.l.b16 %v2753
        %v3003 = vunpack.c.h.b16 %v2753
        %v3004 = vunpack.c.l.b16 %v2754
        %v3005 = vunpack.c.h.b16 %v2754
        %v3006 = vunpack.c.l.b16 %v2755
        %v3007 = vunpack.c.h.b16 %v2755
        %v3008 = vunpack.c.l.b16 %v2756
        %v3009 = vunpack.c.h.b16 %v2756
        %v3010 = vunpack.c.l.b16 %v2757
        %v3011 = vunpack.c.h.b16 %v2757
        %v3012 = vunpack.c.l.b16 %v2758
        %v3013 = vunpack.c.h.b16 %v2758
        %v3014 = vunpack.c.l.b16 %v2759
        %v3015 = vunpack.c.h.b16 %v2759
        %v3016 = vunpack.c.l.b16 %v2760
        %v3017 = vunpack.c.h.b16 %v2760
        %v3018 = vunpack.c.l.b16 %v2761
        %v3019 = vunpack.c.h.b16 %v2761
        %v3020 = vunpack.c.l.b16 %v2762
        %v3021 = vunpack.c.h.b16 %v2762
        %v3022 = vunpack.c.l.b16 %v2763
        %v3023 = vunpack.c.h.b16 %v2763
        %v3024 = vunpack.c.l.b16 %v2764
        %v3025 = vunpack.c.h.b16 %v2764
        %v3026 = vunpack.c.l.b16 %v2765
        %v3027 = vunpack.c.h.b16 %v2765
        %v3028 = vunpack.c.l.b16 %v2766
        %v3029 = vunpack.c.h.b16 %v2766
        %v3030 = vunpack.c.l.b16 %v2767
        %v3031 = vunpack.c.h.b16 %v2767
        %v3032 = vunpack.c.l.b16 %v2768
        %v3033 = vunpack.c.h.b16 %v2768
        %v3034 = vunpack.c.l.b16 %v2769
        %v3035 = vunpack.c.h.b16 %v2769
        %v3036 = vunpack.c.l.b16 %v2770
        %v3037 = vunpack.c.h.b16 %v2770
        %v3038 = vunpack.c.l.b16 %v2771
        %v3039 = vunpack.c.h.b16 %v2771
        %v3040 = vunpack.c.l.b16 %v2772
        %v3041 = vunpack.c.h.b16 %v2772
        %v3042 = vunpack.c.l.b16 %v2773
        %v3043 = vunpack.c.h.b16 %v2773
        %v3044 = vunpack.c.l.b16 %v2774
        %v3045 = vunpack.c.h.b16 %v2774
        %v3046 = vunpack.c.l.b16 %v2775
        %v3047 = vunpack.c.h.b16 %v2775
        %v3048 = vunpack.c.l.b16 %v2776
        %v3049 = vunpack.c.h.b16 %v2776
        %v3050 = vunpack.c.l.b16 %v2777
        %v3051 = vunpack.c.h.b16 %v2777
        %v3052 = vunpack.c.l.b16 %v2778
        %v3053 = vunpack.c.h.b16 %v2778
        %v3054 = vunpack.c.l.b16 %v2779
        %v3055 = vunpack.c.h.b16 %v2779
        %v3056 = vunpack.c.l.b16 %v2780
        %v3057 = vunpack.c.h.b16 %v2780
        %v3058 = vunpack.c.l.b16 %v2781
        %v3059 = vunpack.c.h.b16 %v2781
        %v3060 = vunpack.c.l.b16 %v2782
        %v3061 = vunpack.c.h.b16 %v2782
        %v3062 = vunpack.c.l.b16 %v2783
        %v3063 = vunpack.c.h.b16 %v2783
        %v3064 = vunpack.c.l.b16 %v2784
        %v3065 = vunpack.c.h.b16 %v2784
        %v3066 = vunpack.c.l.b16 %v2785
        %v3067 = vunpack.c.h.b16 %v2785
        %v3068 = vunpack.c.l.b16 %v2786
        %v3069 = vunpack.c.h.b16 %v2786
        %v3070 = vunpack.c.l.b16 %v2787
        %v3071 = vunpack.c.h.b16 %v2787
        %v3072 = vunpack.c.l.b16 %v2788
        %v3073 = vunpack.c.h.b16 %v2788
        %v3074 = vunpack.c.l.b16 %v2789
        %v3075 = vunpack.c.h.b16 %v2789
        %v3076 = vunpack.c.l.b16 %v2790
        %v3077 = vunpack.c.h.b16 %v2790
        %v3078 = vunpack.c.l.b16 %v2791
        %v3079 = vunpack.c.h.b16 %v2791
        %v3080 = vpack.c.b16 %v2894, %v2888
        %v3081 = vpack.c.b16 %v2895, %v2889
        %v3082 = vpack.c.b16 %v2896, %v2890
        %v3083 = vpack.c.b16 %v2897, %v2891
        %v3084 = vpack.c.b16 %v2898, %v2892
        %v3085 = vpack.c.b16 %v2899, %v2893
        %v3086 = vpack.c.b16 %v2906, %v2900
        %v3087 = vpack.c.b16 %v2907, %v2901
        %v3088 = vpack.c.b16 %v2908, %v2902
        %v3089 = vpack.c.b16 %v2909, %v2903
        %v3090 = vpack.c.b16 %v2910, %v2904
        %v3091 = vpack.c.b16 %v2911, %v2905
        %v3092 = vpack.c.b16 %v2918, %v2912
        %v3093 = vpack.c.b16 %v2919, %v2913
        %v3094 = vpack.c.b16 %v2920, %v2914
        %v3095 = vpack.c.b16 %v2921, %v2915
        %v3096 = vpack.c.b16 %v2922, %v2916
        %v3097 = vpack.c.b16 %v2923, %v2917
        %v3098 = vpack.c.b16 %v2930, %v2924
        %v3099 = vpack.c.b16 %v2931, %v2925
        %v3100 = vpack.c.b16 %v2932, %v2926
        %v3101 = vpack.c.b16 %v2933, %v2927
        %v3102 = vpack.c.b16 %v2934, %v2928
        %v3103 = vpack.c.b16 %v2935, %v2929
        %v3104 = vpack.c.b16 %v2942, %v2936
        %v3105 = vpack.c.b16 %v2943, %v2937
        %v3106 = vpack.c.b16 %v2944, %v2938
        %v3107 = vpack.c.b16 %v2945, %v2939
        %v3108 = vpack.c.b16 %v2946, %v2940
        %v3109 = vpack.c.b16 %v2947, %v2941
        %v3110 = vpack.c.b16 %v2954, %v2948
        %v3111 = vpack.c.b16 %v2955, %v2949
        %v3112 = vpack.c.b16 %v2956, %v2950
        %v3113 = vpack.c.b16 %v2957, %v2951
        %v3114 = vpack.c.b16 %v2958, %v2952
        %v3115 = vpack.c.b16 %v2959, %v2953
        %v3116 = vpack.c.b16 %v2966, %v2960
        %v3117 = vpack.c.b16 %v2967, %v2961
        %v3118 = vpack.c.b16 %v2968, %v2962
        %v3119 = vpack.c.b16 %v2969, %v2963
        %v3120 = vpack.c.b16 %v2970, %v2964
        %v3121 = vpack.c.b16 %v2971, %v2965
        %v3122 = vpack.c.b16 %v2978, %v2972
        %v3123 = vpack.c.b16 %v2979, %v2973
        %v3124 = vpack.c.b16 %v2980, %v2974
        %v3125 = vpack.c.b16 %v2981, %v2975
        %v3126 = vpack.c.b16 %v2982, %v2976
        %v3127 = vpack.c.b16 %v2983, %v2977
        %v3128 = vpack.c.b16 %v2990, %v2984
        %v3129 = vpack.c.b16 %v2991, %v2985
        %v3130 = vpack.c.b16 %v2992, %v2986
        %v3131 = vpack.c.b16 %v2993, %v2987
        %v3132 = vpack.c.b16 %v2994, %v2988
        %v3133 = vpack.c.b16 %v2995, %v2989
        %v3134 = vpack.c.b16 %v3002, %v2996
        %v3135 = vpack.c.b16 %v3003, %v2997
        %v3136 = vpack.c.b16 %v3004, %v2998
        %v3137 = vpack.c.b16 %v3005, %v2999
        %v3138 = vpack.c.b16 %v3006, %v3000
        %v3139 = vpack.c.b16 %v3007, %v3001
        %v3140 = vpack.c.b16 %v3014, %v3008
        %v3141 = vpack.c.b16 %v3015, %v3009
        %v3142 = vpack.c.b16 %v3016, %v3010
        %v3143 = vpack.c.b16 %v3017, %v3011
        %v3144 = vpack.c.b16 %v3018, %v3012
        %v3145 = vpack.c.b16 %v3019, %v3013
        %v3146 = vpack.c.b16 %v3026, %v3020
        %v3147 = vpack.c.b16 %v3027, %v3021
        %v3148 = vpack.c.b16 %v3028, %v3022
        %v3149 = vpack.c.b16 %v3029, %v3023
        %v3150 = vpack.c.b16 %v3030, %v3024
        %v3151 = vpack.c.b16 %v3031, %v3025
        %v3152 = vpack.c.b16 %v3038, %v3032
        %v3153 = vpack.c.b16 %v3039, %v3033
        %v3154 = vpack.c.b16 %v3040, %v3034
        %v3155 = vpack.c.b16 %v3041, %v3035
        %v3156 = vpack.c.b16 %v3042, %v3036
        %v3157 = vpack.c.b16 %v3043, %v3037
        %v3158 = vpack.c.b16 %v3050, %v3044
        %v3159 = vpack.c.b16 %v3051, %v3045
        %v3160 = vpack.c.b16 %v3052, %v3046
        %v3161 = vpack.c.b16 %v3053, %v3047
        %v3162 = vpack.c.b16 %v3054, %v3048
        %v3163 = vpack.c.b16 %v3055, %v3049
        %v3164 = vpack.c.b16 %v3062, %v3056
        %v3165 = vpack.c.b16 %v3063, %v3057
        %v3166 = vpack.c.b16 %v3064, %v3058
        %v3167 = vpack.c.b16 %v3065, %v3059
        %v3168 = vpack.c.b16 %v3066, %v3060
        %v3169 = vpack.c.b16 %v3067, %v3061
        %v3170 = vpack.c.b16 %v3074, %v3068
        %v3171 = vpack.c.b16 %v3075, %v3069
        %v3172 = vpack.c.b16 %v3076, %v3070
        %v3173 = vpack.c.b16 %v3077, %v3071
        %v3174 = vpack.c.b16 %v3078, %v3072
        %v3175 = vpack.c.b16 %v3079, %v3073
        %3272 = vmatpush.bf16.msra.mxu0 %v3122
        %3273 = vmatpush.bf16.msra.mxu0 %v3116
        %3274 = vmatpush.bf16.msra.mxu0 %v3110
        %3275 = vmatpush.bf16.msra.mxu0 %v3104
        %3276 = vmatpush.bf16.msra.mxu0 %v3098
        %3277 = vmatpush.bf16.msra.mxu0 %v3092
        %3278 = vmatpush.bf16.msra.mxu0 %v3086
        %3279 = vmatpush.bf16.msra.mxu0 %v3080
        %3280 = vmatmul.bf16.gmra.mxu0 %v1962
        %v3281 = vpop.f32.mrf.mxu0
        %v3282 = vadd.f32 0.0, %v3281
        %v3283 = vpop.f32.mrf.mxu0
        %3284 = vdwg.mxu0
        %3285 = vmatpush.bf16.msra.mxu0 %v3170
        %3286 = vmatpush.bf16.msra.mxu0 %v3164
        %3287 = vmatpush.bf16.msra.mxu0 %v3158
        %3288 = vmatpush.bf16.msra.mxu0 %v3152
        %3289 = vmatpush.bf16.msra.mxu0 %v3146
        %3290 = vmatpush.bf16.msra.mxu0 %v3140
        %3291 = vmatpush.bf16.msra.mxu0 %v3134
        %3292 = vmatpush.bf16.msra.mxu0 %v3128
        %3293 = vmatmul.bf16.gmra.mxu0 %v1963
        %v3294 = vpop.f32.mrf.mxu0
        %v3295 = vadd.f32 %v3282, %v3294
        %v3296 = vpop.f32.mrf.mxu0
        %3297 = vdwg.mxu0
        %3298 = vmatpush.bf16.msra.mxu0 %v3123
        %3299 = vmatpush.bf16.msra.mxu0 %v3117
        %3300 = vmatpush.bf16.msra.mxu0 %v3111
        %3301 = vmatpush.bf16.msra.mxu0 %v3105
        %3302 = vmatpush.bf16.msra.mxu0 %v3099
        %3303 = vmatpush.bf16.msra.mxu0 %v3093
        %3304 = vmatpush.bf16.msra.mxu0 %v3087
        %3305 = vmatpush.bf16.msra.mxu0 %v3081
        %3306 = vmatmul.bf16.gmra.mxu0 %v1962
        %v3307 = vpop.f32.mrf.mxu0
        %v3308 = vadd.f32 0.0, %v3307
        %v3309 = vpop.f32.mrf.mxu0
        %3310 = vdwg.mxu0
        %3311 = vmatpush.bf16.msra.mxu0 %v3171
        %3312 = vmatpush.bf16.msra.mxu0 %v3165
        %3313 = vmatpush.bf16.msra.mxu0 %v3159
        %3314 = vmatpush.bf16.msra.mxu0 %v3153
        %3315 = vmatpush.bf16.msra.mxu0 %v3147
        %3316 = vmatpush.bf16.msra.mxu0 %v3141
        %3317 = vmatpush.bf16.msra.mxu0 %v3135
        %3318 = vmatpush.bf16.msra.mxu0 %v3129
        %3319 = vmatmul.bf16.gmra.mxu0 %v1963
        %v3320 = vpop.f32.mrf.mxu0
        %v3321 = vadd.f32 %v3308, %v3320
        %v3322 = vpop.f32.mrf.mxu0
        %3323 = vdwg.mxu0
        %3324 = vmatpush.bf16.msra.mxu0 %v3124
        %3325 = vmatpush.bf16.msra.mxu0 %v3118
        %3326 = vmatpush.bf16.msra.mxu0 %v3112
        %3327 = vmatpush.bf16.msra.mxu0 %v3106
        %3328 = vmatpush.bf16.msra.mxu0 %v3100
        %3329 = vmatpush.bf16.msra.mxu0 %v3094
        %3330 = vmatpush.bf16.msra.mxu0 %v3088
        %3331 = vmatpush.bf16.msra.mxu0 %v3082
        %3332 = vmatmul.bf16.gmra.mxu0 %v1962
        %v3333 = vpop.f32.mrf.mxu0
        %v3334 = vadd.f32 0.0, %v3333
        %v3335 = vpop.f32.mrf.mxu0
        %3336 = vdwg.mxu0
        %3337 = vmatpush.bf16.msra.mxu0 %v3172
        %3338 = vmatpush.bf16.msra.mxu0 %v3166
        %3339 = vmatpush.bf16.msra.mxu0 %v3160
        %3340 = vmatpush.bf16.msra.mxu0 %v3154
        %3341 = vmatpush.bf16.msra.mxu0 %v3148
        %3342 = vmatpush.bf16.msra.mxu0 %v3142
        %3343 = vmatpush.bf16.msra.mxu0 %v3136
        %3344 = vmatpush.bf16.msra.mxu0 %v3130
        %3345 = vmatmul.bf16.gmra.mxu0 %v1963
        %v3346 = vpop.f32.mrf.mxu0
        %v3347 = vadd.f32 %v3334, %v3346
        %v3348 = vpop.f32.mrf.mxu0
        %3349 = vdwg.mxu0
        %3350 = vmatpush.bf16.msra.mxu0 %v3125
        %3351 = vmatpush.bf16.msra.mxu0 %v3119
        %3352 = vmatpush.bf16.msra.mxu0 %v3113
        %3353 = vmatpush.bf16.msra.mxu0 %v3107
        %3354 = vmatpush.bf16.msra.mxu0 %v3101
        %3355 = vmatpush.bf16.msra.mxu0 %v3095
        %3356 = vmatpush.bf16.msra.mxu0 %v3089
        %3357 = vmatpush.bf16.msra.mxu0 %v3083
        %3358 = vmatmul.bf16.gmra.mxu0 %v1962
        %v3359 = vpop.f32.mrf.mxu0
        %v3360 = vadd.f32 0.0, %v3359
        %v3361 = vpop.f32.mrf.mxu0
        %3362 = vdwg.mxu0
        %3363 = vmatpush.bf16.msra.mxu0 %v3173
        %3364 = vmatpush.bf16.msra.mxu0 %v3167
        %3365 = vmatpush.bf16.msra.mxu0 %v3161
        %3366 = vmatpush.bf16.msra.mxu0 %v3155
        %3367 = vmatpush.bf16.msra.mxu0 %v3149
        %3368 = vmatpush.bf16.msra.mxu0 %v3143
        %3369 = vmatpush.bf16.msra.mxu0 %v3137
        %3370 = vmatpush.bf16.msra.mxu0 %v3131
        %3371 = vmatmul.bf16.gmra.mxu0 %v1963
        %v3372 = vpop.f32.mrf.mxu0
        %v3373 = vadd.f32 %v3360, %v3372
        %v3374 = vpop.f32.mrf.mxu0
        %3375 = vdwg.mxu0
        %3376 = vmatpush.bf16.msra.mxu0 %v3126
        %3377 = vmatpush.bf16.msra.mxu0 %v3120
        %3378 = vmatpush.bf16.msra.mxu0 %v3114
        %3379 = vmatpush.bf16.msra.mxu0 %v3108
        %3380 = vmatpush.bf16.msra.mxu0 %v3102
        %3381 = vmatpush.bf16.msra.mxu0 %v3096
        %3382 = vmatpush.bf16.msra.mxu0 %v3090
        %3383 = vmatpush.bf16.msra.mxu0 %v3084
        %3384 = vmatmul.bf16.gmra.mxu0 %v1962
        %v3385 = vpop.f32.mrf.mxu0
        %v3386 = vadd.f32 0.0, %v3385
        %v3387 = vpop.f32.mrf.mxu0
        %3388 = vdwg.mxu0
        %3389 = vmatpush.bf16.msra.mxu0 %v3174
        %3390 = vmatpush.bf16.msra.mxu0 %v3168
        %3391 = vmatpush.bf16.msra.mxu0 %v3162
        %3392 = vmatpush.bf16.msra.mxu0 %v3156
        %3393 = vmatpush.bf16.msra.mxu0 %v3150
        %3394 = vmatpush.bf16.msra.mxu0 %v3144
        %3395 = vmatpush.bf16.msra.mxu0 %v3138
        %3396 = vmatpush.bf16.msra.mxu0 %v3132
        %3397 = vmatmul.bf16.gmra.mxu0 %v1963
        %v3398 = vpop.f32.mrf.mxu0
        %v3399 = vadd.f32 %v3386, %v3398
        %v3400 = vpop.f32.mrf.mxu0
        %3401 = vdwg.mxu0
        %3402 = vmatpush.bf16.msra.mxu0 %v3127
        %3403 = vmatpush.bf16.msra.mxu0 %v3121
        %3404 = vmatpush.bf16.msra.mxu0 %v3115
        %3405 = vmatpush.bf16.msra.mxu0 %v3109
        %3406 = vmatpush.bf16.msra.mxu0 %v3103
        %3407 = vmatpush.bf16.msra.mxu0 %v3097
        %3408 = vmatpush.bf16.msra.mxu0 %v3091
        %3409 = vmatpush.bf16.msra.mxu0 %v3085
        %3410 = vmatmul.bf16.gmra.mxu0 %v1962
        %v3411 = vpop.f32.mrf.mxu0
        %v3412 = vadd.f32 0.0, %v3411
        %v3413 = vpop.f32.mrf.mxu0
        %3414 = vdwg.mxu0
        %3415 = vmatpush.bf16.msra.mxu0 %v3175
        %3416 = vmatpush.bf16.msra.mxu0 %v3169
        %3417 = vmatpush.bf16.msra.mxu0 %v3163
        %3418 = vmatpush.bf16.msra.mxu0 %v3157
        %3419 = vmatpush.bf16.msra.mxu0 %v3151
        %3420 = vmatpush.bf16.msra.mxu0 %v3145
        %3421 = vmatpush.bf16.msra.mxu0 %v3139
        %3422 = vmatpush.bf16.msra.mxu0 %v3133
        %3423 = vmatmul.bf16.gmra.mxu0 %v1963
        %v3424 = vpop.f32.mrf.mxu0
        %v3425 = vadd.f32 %v3412, %v3424
        %v3426 = vpop.f32.mrf.mxu0
        %3427 = vdwg.mxu0
        %v3428 = vsub.f32 0.0, %v2563
        %v3429 = vsub.f32 0.0, %v2589
        %v3430 = vsub.f32 0.0, %v2615
        %v3431 = vsub.f32 0.0, %v2641
        %v3432 = vsub.f32 0.0, %v2667
        %v3433 = vsub.f32 0.0, %v2693
        %v3434 = vmul.f32 %v3428, 1.442695
        %v3435 = vpow.pop %v3434
        %v3436 = vmul.f32 %v3429, 1.442695
        %v3437 = vpow.pop %v3436
        %v3438 = vmul.f32 %v3430, 1.442695
        %v3439 = vpow.pop %v3438
        %v3440 = vmul.f32 %v3431, 1.442695
        %v3441 = vpow.pop %v3440
        %v3442 = vmul.f32 %v3432, 1.442695
        %v3443 = vpow.pop %v3442
        %v3444 = vmul.f32 %v3433, 1.442695
        %v3445 = vpow.pop %v3444
        %v3446 = vadd.f32 %v3435, 1.0
        %v3447 = vadd.f32 %v3437, 1.0
        %v3448 = vadd.f32 %v3439, 1.0
        %v3449 = vadd.f32 %v3441, 1.0
        %v3450 = vadd.f32 %v3443, 1.0
        %v3451 = vadd.f32 %v3445, 1.0
        %v3452 = vrcp.pop %v3446
        %v3453 = vrcp.pop %v3447
        %v3454 = vrcp.pop %v3448
        %v3455 = vrcp.pop %v3449
        %v3456 = vrcp.pop %v3450
        %v3457 = vrcp.pop %v3451
        %v3458 = vmul.f32 %v2563, %v3452
        %v3459 = vmul.f32 %v2589, %v3453
        %v3460 = vmul.f32 %v2615, %v3454
        %v3461 = vmul.f32 %v2641, %v3455
        %v3462 = vmul.f32 %v2667, %v3456
        %v3463 = vmul.f32 %v2693, %v3457
        %v3464 = vmul.f32 %v3458, %v3295
        %v3465 = vmul.f32 %v3459, %v3321
        %v3466 = vmul.f32 %v3460, %v3347
        %v3467 = vmul.f32 %v3461, %v3373
        %v3468 = vmul.f32 %v3462, %v3399
        %v3469 = vmul.f32 %v3463, %v3425
        %v3470 = vpack.c.bf16 %v3464, %v3464
        %v3471 = vpack.c.bf16 %v3465, %v3465
        %v3472 = vpack.c.bf16 %v3466, %v3466
        %v3473 = vpack.c.bf16 %v3467, %v3467
        %v3474 = vpack.c.bf16 %v3468, %v3468
        %v3475 = vpack.c.bf16 %v3469, %v3469
        %v3476 = vld [vmem:[%s699] sm:$0xff]
        %v3477 = vld [vmem:[%s699 + $0x8] sm:$0xff]
        %v3478 = vld [vmem:[%s699 + $0x10] sm:$0xff]
        %v3479 = vld [vmem:[%s699 + $0x18] sm:$0xff]
        %v3480 = vld [vmem:[%s699 + $0x20] sm:$0xff]
        %v3481 = vld [vmem:[%s699 + $0x28] sm:$0xff]
        %v3482 = vld [vmem:[%s699 + $0x30] sm:$0xff]
        %v3483 = vld [vmem:[%s699 + $0x38] sm:$0xff]
        %v3484 = vld [vmem:[%s699 + $0x40] sm:$0xff]
        %v3485 = vld [vmem:[%s699 + $0x48] sm:$0xff]
        %v3486 = vld [vmem:[%s699 + $0x50] sm:$0xff]
        %v3487 = vld [vmem:[%s699 + $0x58] sm:$0xff]
        %v3488 = vld [vmem:[%s699 + $0x60] sm:$0xff]
        %v3489 = vld [vmem:[%s699 + $0x68] sm:$0xff]
        %v3490 = vld [vmem:[%s699 + $0x70] sm:$0xff]
        %v3491 = vld [vmem:[%s699 + $0x78] sm:$0xff]
        %v3492 = vld [vmem:[%s699 + $0x80] sm:$0xff]
        %v3493 = vld [vmem:[%s699 + $0x88] sm:$0xff]
        %v3494 = vld [vmem:[%s699 + $0x90] sm:$0xff]
        %v3495 = vld [vmem:[%s699 + $0x98] sm:$0xff]
        %v3496 = vld [vmem:[%s699 + $0xa0] sm:$0xff]
        %v3497 = vld [vmem:[%s699 + $0xa8] sm:$0xff]
        %v3498 = vld [vmem:[%s699 + $0xb0] sm:$0xff]
        %v3499 = vld [vmem:[%s699 + $0xb8] sm:$0xff]
        %v3500 = vld [vmem:[%s699 + $0xc0] sm:$0xff]
        %v3501 = vld [vmem:[%s699 + $0xc8] sm:$0xff]
        %v3502 = vld [vmem:[%s699 + $0xd0] sm:$0xff]
        %v3503 = vld [vmem:[%s699 + $0xd8] sm:$0xff]
        %v3504 = vld [vmem:[%s699 + $0xe0] sm:$0xff]
        %v3505 = vld [vmem:[%s699 + $0xe8] sm:$0xff]
        %v3506 = vld [vmem:[%s699 + $0xf0] sm:$0xff]
        %v3507 = vld [vmem:[%s699 + $0xf8] sm:$0xff]
        %v3508 = vld [vmem:[%s699 + $0x100] sm:$0xff]
        %v3509 = vld [vmem:[%s699 + $0x108] sm:$0xff]
        %v3510 = vld [vmem:[%s699 + $0x110] sm:$0xff]
        %v3511 = vld [vmem:[%s699 + $0x118] sm:$0xff]
        %v3512 = vld [vmem:[%s699 + $0x120] sm:$0xff]
        %v3513 = vld [vmem:[%s699 + $0x128] sm:$0xff]
        %v3514 = vld [vmem:[%s699 + $0x130] sm:$0xff]
        %v3515 = vld [vmem:[%s699 + $0x138] sm:$0xff]
        %v3516 = vld [vmem:[%s699 + $0x140] sm:$0xff]
        %v3517 = vld [vmem:[%s699 + $0x148] sm:$0xff]
        %v3518 = vld [vmem:[%s699 + $0x150] sm:$0xff]
        %v3519 = vld [vmem:[%s699 + $0x158] sm:$0xff]
        %v3520 = vld [vmem:[%s699 + $0x160] sm:$0xff]
        %v3521 = vld [vmem:[%s699 + $0x168] sm:$0xff]
        %v3522 = vld [vmem:[%s699 + $0x170] sm:$0xff]
        %v3523 = vld [vmem:[%s699 + $0x178] sm:$0xff]
        %v3524 = vld [vmem:[%s699 + $0x180] sm:$0xff]
        %v3525 = vld [vmem:[%s699 + $0x188] sm:$0xff]
        %v3526 = vld [vmem:[%s699 + $0x190] sm:$0xff]
        %v3527 = vld [vmem:[%s699 + $0x198] sm:$0xff]
        %v3528 = vld [vmem:[%s699 + $0x1a0] sm:$0xff]
        %v3529 = vld [vmem:[%s699 + $0x1a8] sm:$0xff]
        %v3530 = vld [vmem:[%s699 + $0x1b0] sm:$0xff]
        %v3531 = vld [vmem:[%s699 + $0x1b8] sm:$0xff]
        %v3532 = vld [vmem:[%s699 + $0x1c0] sm:$0xff]
        %v3533 = vld [vmem:[%s699 + $0x1c8] sm:$0xff]
        %v3534 = vld [vmem:[%s699 + $0x1d0] sm:$0xff]
        %v3535 = vld [vmem:[%s699 + $0x1d8] sm:$0xff]
        %v3536 = vld [vmem:[%s699 + $0x1e0] sm:$0xff]
        %v3537 = vld [vmem:[%s699 + $0x1e8] sm:$0xff]
        %v3538 = vld [vmem:[%s699 + $0x1f0] sm:$0xff]
        %v3539 = vld [vmem:[%s699 + $0x1f8] sm:$0xff]
        %v3540 = vld [vmem:[%s699 + $0x200] sm:$0xff]
        %v3541 = vld [vmem:[%s699 + $0x208] sm:$0xff]
        %v3542 = vld [vmem:[%s699 + $0x210] sm:$0xff]
        %v3543 = vld [vmem:[%s699 + $0x218] sm:$0xff]
        %v3544 = vld [vmem:[%s699 + $0x220] sm:$0xff]
        %v3545 = vld [vmem:[%s699 + $0x228] sm:$0xff]
        %v3546 = vld [vmem:[%s699 + $0x230] sm:$0xff]
        %v3547 = vld [vmem:[%s699 + $0x238] sm:$0xff]
        %v3548 = vld [vmem:[%s699 + $0x240] sm:$0xff]
        %v3549 = vld [vmem:[%s699 + $0x248] sm:$0xff]
        %v3550 = vld [vmem:[%s699 + $0x250] sm:$0xff]
        %v3551 = vld [vmem:[%s699 + $0x258] sm:$0xff]
        %v3552 = vld [vmem:[%s699 + $0x260] sm:$0xff]
        %v3553 = vld [vmem:[%s699 + $0x268] sm:$0xff]
        %v3554 = vld [vmem:[%s699 + $0x270] sm:$0xff]
        %v3555 = vld [vmem:[%s699 + $0x278] sm:$0xff]
        %v3556 = vld [vmem:[%s699 + $0x280] sm:$0xff]
        %v3557 = vld [vmem:[%s699 + $0x288] sm:$0xff]
        %v3558 = vld [vmem:[%s699 + $0x290] sm:$0xff]
        %v3559 = vld [vmem:[%s699 + $0x298] sm:$0xff]
        %v3560 = vld [vmem:[%s699 + $0x2a0] sm:$0xff]
        %v3561 = vld [vmem:[%s699 + $0x2a8] sm:$0xff]
        %v3562 = vld [vmem:[%s699 + $0x2b0] sm:$0xff]
        %v3563 = vld [vmem:[%s699 + $0x2b8] sm:$0xff]
        %v3564 = vld [vmem:[%s699 + $0x2c0] sm:$0xff]
        %v3565 = vld [vmem:[%s699 + $0x2c8] sm:$0xff]
        %v3566 = vld [vmem:[%s699 + $0x2d0] sm:$0xff]
        %v3567 = vld [vmem:[%s699 + $0x2d8] sm:$0xff]
        %v3568 = vld [vmem:[%s699 + $0x2e0] sm:$0xff]
        %v3569 = vld [vmem:[%s699 + $0x2e8] sm:$0xff]
        %v3570 = vld [vmem:[%s699 + $0x2f0] sm:$0xff]
        %v3571 = vld [vmem:[%s699 + $0x2f8] sm:$0xff]
        %v3668 = vunpack.c.l.b16 %v3476
        %v3669 = vunpack.c.h.b16 %v3476
        %v3670 = vunpack.c.l.b16 %v3477
        %v3671 = vunpack.c.h.b16 %v3477
        %v3672 = vunpack.c.l.b16 %v3478
        %v3673 = vunpack.c.h.b16 %v3478
        %v3674 = vunpack.c.l.b16 %v3479
        %v3675 = vunpack.c.h.b16 %v3479
        %v3676 = vunpack.c.l.b16 %v3480
        %v3677 = vunpack.c.h.b16 %v3480
        %v3678 = vunpack.c.l.b16 %v3481
        %v3679 = vunpack.c.h.b16 %v3481
        %v3680 = vunpack.c.l.b16 %v3482
        %v3681 = vunpack.c.h.b16 %v3482
        %v3682 = vunpack.c.l.b16 %v3483
        %v3683 = vunpack.c.h.b16 %v3483
        %v3684 = vunpack.c.l.b16 %v3484
        %v3685 = vunpack.c.h.b16 %v3484
        %v3686 = vunpack.c.l.b16 %v3485
        %v3687 = vunpack.c.h.b16 %v3485
        %v3688 = vunpack.c.l.b16 %v3486
        %v3689 = vunpack.c.h.b16 %v3486
        %v3690 = vunpack.c.l.b16 %v3487
        %v3691 = vunpack.c.h.b16 %v3487
        %v3692 = vunpack.c.l.b16 %v3488
        %v3693 = vunpack.c.h.b16 %v3488
        %v3694 = vunpack.c.l.b16 %v3489
        %v3695 = vunpack.c.h.b16 %v3489
        %v3696 = vunpack.c.l.b16 %v3490
        %v3697 = vunpack.c.h.b16 %v3490
        %v3698 = vunpack.c.l.b16 %v3491
        %v3699 = vunpack.c.h.b16 %v3491
        %v3700 = vunpack.c.l.b16 %v3492
        %v3701 = vunpack.c.h.b16 %v3492
        %v3702 = vunpack.c.l.b16 %v3493
        %v3703 = vunpack.c.h.b16 %v3493
        %v3704 = vunpack.c.l.b16 %v3494
        %v3705 = vunpack.c.h.b16 %v3494
        %v3706 = vunpack.c.l.b16 %v3495
        %v3707 = vunpack.c.h.b16 %v3495
        %v3708 = vunpack.c.l.b16 %v3496
        %v3709 = vunpack.c.h.b16 %v3496
        %v3710 = vunpack.c.l.b16 %v3497
        %v3711 = vunpack.c.h.b16 %v3497
        %v3712 = vunpack.c.l.b16 %v3498
        %v3713 = vunpack.c.h.b16 %v3498
        %v3714 = vunpack.c.l.b16 %v3499
        %v3715 = vunpack.c.h.b16 %v3499
        %v3716 = vunpack.c.l.b16 %v3500
        %v3717 = vunpack.c.h.b16 %v3500
        %v3718 = vunpack.c.l.b16 %v3501
        %v3719 = vunpack.c.h.b16 %v3501
        %v3720 = vunpack.c.l.b16 %v3502
        %v3721 = vunpack.c.h.b16 %v3502
        %v3722 = vunpack.c.l.b16 %v3503
        %v3723 = vunpack.c.h.b16 %v3503
        %v3724 = vunpack.c.l.b16 %v3504
        %v3725 = vunpack.c.h.b16 %v3504
        %v3726 = vunpack.c.l.b16 %v3505
        %v3727 = vunpack.c.h.b16 %v3505
        %v3728 = vunpack.c.l.b16 %v3506
        %v3729 = vunpack.c.h.b16 %v3506
        %v3730 = vunpack.c.l.b16 %v3507
        %v3731 = vunpack.c.h.b16 %v3507
        %v3732 = vunpack.c.l.b16 %v3508
        %v3733 = vunpack.c.h.b16 %v3508
        %v3734 = vunpack.c.l.b16 %v3509
        %v3735 = vunpack.c.h.b16 %v3509
        %v3736 = vunpack.c.l.b16 %v3510
        %v3737 = vunpack.c.h.b16 %v3510
        %v3738 = vunpack.c.l.b16 %v3511
        %v3739 = vunpack.c.h.b16 %v3511
        %v3740 = vunpack.c.l.b16 %v3512
        %v3741 = vunpack.c.h.b16 %v3512
        %v3742 = vunpack.c.l.b16 %v3513
        %v3743 = vunpack.c.h.b16 %v3513
        %v3744 = vunpack.c.l.b16 %v3514
        %v3745 = vunpack.c.h.b16 %v3514
        %v3746 = vunpack.c.l.b16 %v3515
        %v3747 = vunpack.c.h.b16 %v3515
        %v3748 = vunpack.c.l.b16 %v3516
        %v3749 = vunpack.c.h.b16 %v3516
        %v3750 = vunpack.c.l.b16 %v3517
        %v3751 = vunpack.c.h.b16 %v3517
        %v3752 = vunpack.c.l.b16 %v3518
        %v3753 = vunpack.c.h.b16 %v3518
        %v3754 = vunpack.c.l.b16 %v3519
        %v3755 = vunpack.c.h.b16 %v3519
        %v3756 = vunpack.c.l.b16 %v3520
        %v3757 = vunpack.c.h.b16 %v3520
        %v3758 = vunpack.c.l.b16 %v3521
        %v3759 = vunpack.c.h.b16 %v3521
        %v3760 = vunpack.c.l.b16 %v3522
        %v3761 = vunpack.c.h.b16 %v3522
        %v3762 = vunpack.c.l.b16 %v3523
        %v3763 = vunpack.c.h.b16 %v3523
        %v3764 = vunpack.c.l.b16 %v3524
        %v3765 = vunpack.c.h.b16 %v3524
        %v3766 = vunpack.c.l.b16 %v3525
        %v3767 = vunpack.c.h.b16 %v3525
        %v3768 = vunpack.c.l.b16 %v3526
        %v3769 = vunpack.c.h.b16 %v3526
        %v3770 = vunpack.c.l.b16 %v3527
        %v3771 = vunpack.c.h.b16 %v3527
        %v3772 = vunpack.c.l.b16 %v3528
        %v3773 = vunpack.c.h.b16 %v3528
        %v3774 = vunpack.c.l.b16 %v3529
        %v3775 = vunpack.c.h.b16 %v3529
        %v3776 = vunpack.c.l.b16 %v3530
        %v3777 = vunpack.c.h.b16 %v3530
        %v3778 = vunpack.c.l.b16 %v3531
        %v3779 = vunpack.c.h.b16 %v3531
        %v3780 = vunpack.c.l.b16 %v3532
        %v3781 = vunpack.c.h.b16 %v3532
        %v3782 = vunpack.c.l.b16 %v3533
        %v3783 = vunpack.c.h.b16 %v3533
        %v3784 = vunpack.c.l.b16 %v3534
        %v3785 = vunpack.c.h.b16 %v3534
        %v3786 = vunpack.c.l.b16 %v3535
        %v3787 = vunpack.c.h.b16 %v3535
        %v3788 = vunpack.c.l.b16 %v3536
        %v3789 = vunpack.c.h.b16 %v3536
        %v3790 = vunpack.c.l.b16 %v3537
        %v3791 = vunpack.c.h.b16 %v3537
        %v3792 = vunpack.c.l.b16 %v3538
        %v3793 = vunpack.c.h.b16 %v3538
        %v3794 = vunpack.c.l.b16 %v3539
        %v3795 = vunpack.c.h.b16 %v3539
        %v3796 = vunpack.c.l.b16 %v3540
        %v3797 = vunpack.c.h.b16 %v3540
        %v3798 = vunpack.c.l.b16 %v3541
        %v3799 = vunpack.c.h.b16 %v3541
        %v3800 = vunpack.c.l.b16 %v3542
        %v3801 = vunpack.c.h.b16 %v3542
        %v3802 = vunpack.c.l.b16 %v3543
        %v3803 = vunpack.c.h.b16 %v3543
        %v3804 = vunpack.c.l.b16 %v3544
        %v3805 = vunpack.c.h.b16 %v3544
        %v3806 = vunpack.c.l.b16 %v3545
        %v3807 = vunpack.c.h.b16 %v3545
        %v3808 = vunpack.c.l.b16 %v3546
        %v3809 = vunpack.c.h.b16 %v3546
        %v3810 = vunpack.c.l.b16 %v3547
        %v3811 = vunpack.c.h.b16 %v3547
        %v3812 = vunpack.c.l.b16 %v3548
        %v3813 = vunpack.c.h.b16 %v3548
        %v3814 = vunpack.c.l.b16 %v3549
        %v3815 = vunpack.c.h.b16 %v3549
        %v3816 = vunpack.c.l.b16 %v3550
        %v3817 = vunpack.c.h.b16 %v3550
        %v3818 = vunpack.c.l.b16 %v3551
        %v3819 = vunpack.c.h.b16 %v3551
        %v3820 = vunpack.c.l.b16 %v3552
        %v3821 = vunpack.c.h.b16 %v3552
        %v3822 = vunpack.c.l.b16 %v3553
        %v3823 = vunpack.c.h.b16 %v3553
        %v3824 = vunpack.c.l.b16 %v3554
        %v3825 = vunpack.c.h.b16 %v3554
        %v3826 = vunpack.c.l.b16 %v3555
        %v3827 = vunpack.c.h.b16 %v3555
        %v3828 = vunpack.c.l.b16 %v3556
        %v3829 = vunpack.c.h.b16 %v3556
        %v3830 = vunpack.c.l.b16 %v3557
        %v3831 = vunpack.c.h.b16 %v3557
        %v3832 = vunpack.c.l.b16 %v3558
        %v3833 = vunpack.c.h.b16 %v3558
        %v3834 = vunpack.c.l.b16 %v3559
        %v3835 = vunpack.c.h.b16 %v3559
        %v3836 = vunpack.c.l.b16 %v3560
        %v3837 = vunpack.c.h.b16 %v3560
        %v3838 = vunpack.c.l.b16 %v3561
        %v3839 = vunpack.c.h.b16 %v3561
        %v3840 = vunpack.c.l.b16 %v3562
        %v3841 = vunpack.c.h.b16 %v3562
        %v3842 = vunpack.c.l.b16 %v3563
        %v3843 = vunpack.c.h.b16 %v3563
        %v3844 = vunpack.c.l.b16 %v3564
        %v3845 = vunpack.c.h.b16 %v3564
        %v3846 = vunpack.c.l.b16 %v3565
        %v3847 = vunpack.c.h.b16 %v3565
        %v3848 = vunpack.c.l.b16 %v3566
        %v3849 = vunpack.c.h.b16 %v3566
        %v3850 = vunpack.c.l.b16 %v3567
        %v3851 = vunpack.c.h.b16 %v3567
        %v3852 = vunpack.c.l.b16 %v3568
        %v3853 = vunpack.c.h.b16 %v3568
        %v3854 = vunpack.c.l.b16 %v3569
        %v3855 = vunpack.c.h.b16 %v3569
        %v3856 = vunpack.c.l.b16 %v3570
        %v3857 = vunpack.c.h.b16 %v3570
        %v3858 = vunpack.c.l.b16 %v3571
        %v3859 = vunpack.c.h.b16 %v3571
        %v3860 = vpack.c.b16 %v3670, %v3668
        %v3861 = vpack.c.b16 %v3671, %v3669
        %v3862 = vpack.c.b16 %v3674, %v3672
        %v3863 = vpack.c.b16 %v3675, %v3673
        %v3864 = vpack.c.b16 %v3678, %v3676
        %v3865 = vpack.c.b16 %v3679, %v3677
        %v3866 = vpack.c.b16 %v3682, %v3680
        %v3867 = vpack.c.b16 %v3683, %v3681
        %v3868 = vpack.c.b16 %v3686, %v3684
        %v3869 = vpack.c.b16 %v3687, %v3685
        %v3870 = vpack.c.b16 %v3690, %v3688
        %v3871 = vpack.c.b16 %v3691, %v3689
        %v3872 = vpack.c.b16 %v3694, %v3692
        %v3873 = vpack.c.b16 %v3695, %v3693
        %v3874 = vpack.c.b16 %v3698, %v3696
        %v3875 = vpack.c.b16 %v3699, %v3697
        %v3876 = vpack.c.b16 %v3702, %v3700
        %v3877 = vpack.c.b16 %v3703, %v3701
        %v3878 = vpack.c.b16 %v3706, %v3704
        %v3879 = vpack.c.b16 %v3707, %v3705
        %v3880 = vpack.c.b16 %v3710, %v3708
        %v3881 = vpack.c.b16 %v3711, %v3709
        %v3882 = vpack.c.b16 %v3714, %v3712
        %v3883 = vpack.c.b16 %v3715, %v3713
        %v3884 = vpack.c.b16 %v3718, %v3716
        %v3885 = vpack.c.b16 %v3719, %v3717
        %v3886 = vpack.c.b16 %v3722, %v3720
        %v3887 = vpack.c.b16 %v3723, %v3721
        %v3888 = vpack.c.b16 %v3726, %v3724
        %v3889 = vpack.c.b16 %v3727, %v3725
        %v3890 = vpack.c.b16 %v3730, %v3728
        %v3891 = vpack.c.b16 %v3731, %v3729
        %v3892 = vpack.c.b16 %v3734, %v3732
        %v3893 = vpack.c.b16 %v3735, %v3733
        %v3894 = vpack.c.b16 %v3738, %v3736
        %v3895 = vpack.c.b16 %v3739, %v3737
        %v3896 = vpack.c.b16 %v3742, %v3740
        %v3897 = vpack.c.b16 %v3743, %v3741
        %v3898 = vpack.c.b16 %v3746, %v3744
        %v3899 = vpack.c.b16 %v3747, %v3745
        %v3900 = vpack.c.b16 %v3750, %v3748
        %v3901 = vpack.c.b16 %v3751, %v3749
        %v3902 = vpack.c.b16 %v3754, %v3752
        %v3903 = vpack.c.b16 %v3755, %v3753
        %v3904 = vpack.c.b16 %v3758, %v3756
        %v3905 = vpack.c.b16 %v3759, %v3757
        %v3906 = vpack.c.b16 %v3762, %v3760
        %v3907 = vpack.c.b16 %v3763, %v3761
        %v3908 = vpack.c.b16 %v3766, %v3764
        %v3909 = vpack.c.b16 %v3767, %v3765
        %v3910 = vpack.c.b16 %v3770, %v3768
        %v3911 = vpack.c.b16 %v3771, %v3769
        %v3912 = vpack.c.b16 %v3774, %v3772
        %v3913 = vpack.c.b16 %v3775, %v3773
        %v3914 = vpack.c.b16 %v3778, %v3776
        %v3915 = vpack.c.b16 %v3779, %v3777
        %v3916 = vpack.c.b16 %v3782, %v3780
        %v3917 = vpack.c.b16 %v3783, %v3781
        %v3918 = vpack.c.b16 %v3786, %v3784
        %v3919 = vpack.c.b16 %v3787, %v3785
        %v3920 = vpack.c.b16 %v3790, %v3788
        %v3921 = vpack.c.b16 %v3791, %v3789
        %v3922 = vpack.c.b16 %v3794, %v3792
        %v3923 = vpack.c.b16 %v3795, %v3793
        %v3924 = vpack.c.b16 %v3798, %v3796
        %v3925 = vpack.c.b16 %v3799, %v3797
        %v3926 = vpack.c.b16 %v3802, %v3800
        %v3927 = vpack.c.b16 %v3803, %v3801
        %v3928 = vpack.c.b16 %v3806, %v3804
        %v3929 = vpack.c.b16 %v3807, %v3805
        %v3930 = vpack.c.b16 %v3810, %v3808
        %v3931 = vpack.c.b16 %v3811, %v3809
        %v3932 = vpack.c.b16 %v3814, %v3812
        %v3933 = vpack.c.b16 %v3815, %v3813
        %v3934 = vpack.c.b16 %v3818, %v3816
        %v3935 = vpack.c.b16 %v3819, %v3817
        %v3936 = vpack.c.b16 %v3822, %v3820
        %v3937 = vpack.c.b16 %v3823, %v3821
        %v3938 = vpack.c.b16 %v3826, %v3824
        %v3939 = vpack.c.b16 %v3827, %v3825
        %v3940 = vpack.c.b16 %v3830, %v3828
        %v3941 = vpack.c.b16 %v3831, %v3829
        %v3942 = vpack.c.b16 %v3834, %v3832
        %v3943 = vpack.c.b16 %v3835, %v3833
        %v3944 = vpack.c.b16 %v3838, %v3836
        %v3945 = vpack.c.b16 %v3839, %v3837
        %v3946 = vpack.c.b16 %v3842, %v3840
        %v3947 = vpack.c.b16 %v3843, %v3841
        %v3948 = vpack.c.b16 %v3846, %v3844
        %v3949 = vpack.c.b16 %v3847, %v3845
        %v3950 = vpack.c.b16 %v3850, %v3848
        %v3951 = vpack.c.b16 %v3851, %v3849
        %v3952 = vpack.c.b16 %v3854, %v3852
        %v3953 = vpack.c.b16 %v3855, %v3853
        %v3954 = vpack.c.b16 %v3858, %v3856
        %v3955 = vpack.c.b16 %v3859, %v3857
        %4052 = vmatpush.bf16.msra.mxu0 %v3874
        %4053 = vmatpush.bf16.msra.mxu0 %v3872
        %4054 = vmatpush.bf16.msra.mxu0 %v3870
        %4055 = vmatpush.bf16.msra.mxu0 %v3868
        %4056 = vmatpush.bf16.msra.mxu0 %v3866
        %4057 = vmatpush.bf16.msra.mxu0 %v3864
        %4058 = vmatpush.bf16.msra.mxu0 %v3862
        %4059 = vmatpush.bf16.msra.mxu0 %v3860
        %4060 = vmatmul.bf16.gmra.mxu0 %v3470
        %v4061 = vpop.f32.mrf.mxu0
        %v4062 = vadd.f32 0.0, %v4061
        %v4063 = vpop.f32.mrf.mxu0
        %4064 = vdwg.mxu0
        %4065 = vmatpush.bf16.msra.mxu0 %v3890
        %4066 = vmatpush.bf16.msra.mxu0 %v3888
        %4067 = vmatpush.bf16.msra.mxu0 %v3886
        %4068 = vmatpush.bf16.msra.mxu0 %v3884
        %4069 = vmatpush.bf16.msra.mxu0 %v3882
        %4070 = vmatpush.bf16.msra.mxu0 %v3880
        %4071 = vmatpush.bf16.msra.mxu0 %v3878
        %4072 = vmatpush.bf16.msra.mxu0 %v3876
        %4073 = vmatmul.bf16.gmra.mxu0 %v3471
        %v4074 = vpop.f32.mrf.mxu0
        %v4075 = vadd.f32 %v4062, %v4074
        %v4076 = vpop.f32.mrf.mxu0
        %4077 = vdwg.mxu0
        %4078 = vmatpush.bf16.msra.mxu0 %v3906
        %4079 = vmatpush.bf16.msra.mxu0 %v3904
        %4080 = vmatpush.bf16.msra.mxu0 %v3902
        %4081 = vmatpush.bf16.msra.mxu0 %v3900
        %4082 = vmatpush.bf16.msra.mxu0 %v3898
        %4083 = vmatpush.bf16.msra.mxu0 %v3896
        %4084 = vmatpush.bf16.msra.mxu0 %v3894
        %4085 = vmatpush.bf16.msra.mxu0 %v3892
        %4086 = vmatmul.bf16.gmra.mxu0 %v3472
        %v4087 = vpop.f32.mrf.mxu0
        %v4088 = vadd.f32 %v4075, %v4087
        %v4089 = vpop.f32.mrf.mxu0
        %4090 = vdwg.mxu0
        %4091 = vmatpush.bf16.msra.mxu0 %v3922
        %4092 = vmatpush.bf16.msra.mxu0 %v3920
        %4093 = vmatpush.bf16.msra.mxu0 %v3918
        %4094 = vmatpush.bf16.msra.mxu0 %v3916
        %4095 = vmatpush.bf16.msra.mxu0 %v3914
        %4096 = vmatpush.bf16.msra.mxu0 %v3912
        %4097 = vmatpush.bf16.msra.mxu0 %v3910
        %4098 = vmatpush.bf16.msra.mxu0 %v3908
        %4099 = vmatmul.bf16.gmra.mxu0 %v3473
        %v4100 = vpop.f32.mrf.mxu0
        %v4101 = vadd.f32 %v4088, %v4100
        %v4102 = vpop.f32.mrf.mxu0
        %4103 = vdwg.mxu0
        %4104 = vmatpush.bf16.msra.mxu0 %v3938
        %4105 = vmatpush.bf16.msra.mxu0 %v3936
        %4106 = vmatpush.bf16.msra.mxu0 %v3934
        %4107 = vmatpush.bf16.msra.mxu0 %v3932
        %4108 = vmatpush.bf16.msra.mxu0 %v3930
        %4109 = vmatpush.bf16.msra.mxu0 %v3928
        %4110 = vmatpush.bf16.msra.mxu0 %v3926
        %4111 = vmatpush.bf16.msra.mxu0 %v3924
        %4112 = vmatmul.bf16.gmra.mxu0 %v3474
        %v4113 = vpop.f32.mrf.mxu0
        %v4114 = vadd.f32 %v4101, %v4113
        %v4115 = vpop.f32.mrf.mxu0
        %4116 = vdwg.mxu0
        %4117 = vmatpush.bf16.msra.mxu0 %v3954
        %4118 = vmatpush.bf16.msra.mxu0 %v3952
        %4119 = vmatpush.bf16.msra.mxu0 %v3950
        %4120 = vmatpush.bf16.msra.mxu0 %v3948
        %4121 = vmatpush.bf16.msra.mxu0 %v3946
        %4122 = vmatpush.bf16.msra.mxu0 %v3944
        %4123 = vmatpush.bf16.msra.mxu0 %v3942
        %4124 = vmatpush.bf16.msra.mxu0 %v3940
        %4125 = vmatmul.bf16.gmra.mxu0 %v3475
        %v4126 = vpop.f32.mrf.mxu0
        %v4127 = vadd.f32 %v4114, %v4126
        %v4128 = vpop.f32.mrf.mxu0
        %4129 = vdwg.mxu0
        %4130 = vmatpush.bf16.msra.mxu0 %v3875
        %4131 = vmatpush.bf16.msra.mxu0 %v3873
        %4132 = vmatpush.bf16.msra.mxu0 %v3871
        %4133 = vmatpush.bf16.msra.mxu0 %v3869
        %4134 = vmatpush.bf16.msra.mxu0 %v3867
        %4135 = vmatpush.bf16.msra.mxu0 %v3865
        %4136 = vmatpush.bf16.msra.mxu0 %v3863
        %4137 = vmatpush.bf16.msra.mxu0 %v3861
        %4138 = vmatmul.bf16.gmra.mxu0 %v3470
        %v4139 = vpop.f32.mrf.mxu0
        %v4140 = vadd.f32 0.0, %v4139
        %v4141 = vpop.f32.mrf.mxu0
        %4142 = vdwg.mxu0
        %4143 = vmatpush.bf16.msra.mxu0 %v3891
        %4144 = vmatpush.bf16.msra.mxu0 %v3889
        %4145 = vmatpush.bf16.msra.mxu0 %v3887
        %4146 = vmatpush.bf16.msra.mxu0 %v3885
        %4147 = vmatpush.bf16.msra.mxu0 %v3883
        %4148 = vmatpush.bf16.msra.mxu0 %v3881
        %4149 = vmatpush.bf16.msra.mxu0 %v3879
        %4150 = vmatpush.bf16.msra.mxu0 %v3877
        %4151 = vmatmul.bf16.gmra.mxu0 %v3471
        %v4152 = vpop.f32.mrf.mxu0
        %v4153 = vadd.f32 %v4140, %v4152
        %v4154 = vpop.f32.mrf.mxu0
        %4155 = vdwg.mxu0
        %4156 = vmatpush.bf16.msra.mxu0 %v3907
        %4157 = vmatpush.bf16.msra.mxu0 %v3905
        %4158 = vmatpush.bf16.msra.mxu0 %v3903
        %4159 = vmatpush.bf16.msra.mxu0 %v3901
        %4160 = vmatpush.bf16.msra.mxu0 %v3899
        %4161 = vmatpush.bf16.msra.mxu0 %v3897
        %4162 = vmatpush.bf16.msra.mxu0 %v3895
        %4163 = vmatpush.bf16.msra.mxu0 %v3893
        %4164 = vmatmul.bf16.gmra.mxu0 %v3472
        %v4165 = vpop.f32.mrf.mxu0
        %v4166 = vadd.f32 %v4153, %v4165
        %v4167 = vpop.f32.mrf.mxu0
        %4168 = vdwg.mxu0
        %4169 = vmatpush.bf16.msra.mxu0 %v3923
        %4170 = vmatpush.bf16.msra.mxu0 %v3921
        %4171 = vmatpush.bf16.msra.mxu0 %v3919
        %4172 = vmatpush.bf16.msra.mxu0 %v3917
        %4173 = vmatpush.bf16.msra.mxu0 %v3915
        %4174 = vmatpush.bf16.msra.mxu0 %v3913
        %4175 = vmatpush.bf16.msra.mxu0 %v3911
        %4176 = vmatpush.bf16.msra.mxu0 %v3909
        %4177 = vmatmul.bf16.gmra.mxu0 %v3473
        %v4178 = vpop.f32.mrf.mxu0
        %v4179 = vadd.f32 %v4166, %v4178
        %v4180 = vpop.f32.mrf.mxu0
        %4181 = vdwg.mxu0
        %4182 = vmatpush.bf16.msra.mxu0 %v3939
        %4183 = vmatpush.bf16.msra.mxu0 %v3937
        %4184 = vmatpush.bf16.msra.mxu0 %v3935
        %4185 = vmatpush.bf16.msra.mxu0 %v3933
        %4186 = vmatpush.bf16.msra.mxu0 %v3931
        %4187 = vmatpush.bf16.msra.mxu0 %v3929
        %4188 = vmatpush.bf16.msra.mxu0 %v3927
        %4189 = vmatpush.bf16.msra.mxu0 %v3925
        %4190 = vmatmul.bf16.gmra.mxu0 %v3474
        %v4191 = vpop.f32.mrf.mxu0
        %v4192 = vadd.f32 %v4179, %v4191
        %v4193 = vpop.f32.mrf.mxu0
        %4194 = vdwg.mxu0
        %4195 = vmatpush.bf16.msra.mxu0 %v3955
        %4196 = vmatpush.bf16.msra.mxu0 %v3953
        %4197 = vmatpush.bf16.msra.mxu0 %v3951
        %4198 = vmatpush.bf16.msra.mxu0 %v3949
        %4199 = vmatpush.bf16.msra.mxu0 %v3947
        %4200 = vmatpush.bf16.msra.mxu0 %v3945
        %4201 = vmatpush.bf16.msra.mxu0 %v3943
        %4202 = vmatpush.bf16.msra.mxu0 %v3941
        %4203 = vmatmul.bf16.gmra.mxu0 %v3475
        %v4204 = vpop.f32.mrf.mxu0
        %v4205 = vadd.f32 %v4192, %v4204
        %v4206 = vpop.f32.mrf.mxu0
        %4207 = vdwg.mxu0
        %v4210 = vrot.slane %v4205, 6
        %v4211 = vsel %vm849, %v4127, %v4210
        %v4213 = vadd.f32 %v1948, %v4211
        %4214 = vst [vmem:[#allocation2] sm:$0xf] %v4213
        %p4215 = scmp.eq.s32.totalorder %s46, 1
        // Predicated region
        $region141: #{tpu_custom_call.1} parent=79 // pred_check
          %p4216 = pneg %p4215
        $region142: #{tpu_custom_call.1} parent=79 // pred_check_branch
          %4218 = sbr.rel (%p4216) target = $region144
        $region143: #{tpu_custom_call.1} parent=79 // pred_region
          %v4219 = vld [vmem:[%s15] sm:$0x3]
          %v4220 = vmul.f32 %v4213, %v4213
          %4222 = vst [vmem:[#allocation1] ss:$4 sm:$0xff] %v4220
          %v4223 = vld.sshfl [vmem:[#allocation1] sm:$0xff pattern:$0x73625140]
          %v4224 = vld.sshfl [vmem:[#allocation1 + $0x8] sm:$0xff pattern:$0x73625140]
          %v4227 = vsel %vm849, %v4223, 0.0
          %v4228 = vsel %vm849, %v4224, 0.0
          %v4229 = vadd.f32 %v4227, %v4228
          %4230 = vadd.xlane.f32.xlu0 %v4229
          %v4231 = vpop.xlane.xlu0 %4230
          %v4232 = vmul.f32 %v4231, %v861
          %v4233 = vadd.f32 %v4232, 1e-05
          %v4234 = vrsqrt.pop %v4233
          %v4235 = vmul.f32 %v4234, %v4233
          %v4236 = vmul.f32 %v4235, %v4234
          %v4237 = vmul.f32 0.5, %v4236
          %v4238 = vsub.f32 1.5, %v4237
          %v4239 = vmul.f32 %v4234, %v4238
          %vm4240 = vweird.f32 %v4233
          %vm4241 = vweird.f32 %v4234
          %vm4242 = vmor %vm4240, %vm4241
          %v4243 = vsel %vm4242, %v4234, %v4239
          %v4246 = vunpack.c.l.s4 269488144
          %v4247 = vunpack.c.0.s8 %v4246
          %v4248 = vperm.slane %v4243, %v4247
          %v4250 = vmul.f32 %v4213, %v4248
          %v4252 = vperm.slane %v4219, 0
          %v4253 = vperm.slane %v4219, 1
          %4257 = vst [vmem:[#allocation1] ss:$4 sm:$0xff] %v4250
          %v4258 = vld.sshfl [vmem:[#allocation1] sm:$0xff pattern:$0x73625140]
          %v4259 = vld.sshfl [vmem:[#allocation1 + $0x8] sm:$0xff pattern:$0x73625140]
          %v4262 = vmul.f32 %v4252, %v4258
          %v4263 = vmul.f32 %v4253, %v4259
          %v4264 = vpack.c.bf16 %v4262, %v4262
          %v4265 = vpack.c.bf16 %v4263, %v4263
          %v4266 = vld [vmem:[#allocation20] sm:$0xff]
          %v4267 = vld [vmem:[#allocation20 + $0x8] sm:$0xff]
          %v4268 = vld [vmem:[#allocation20 + $0x10] sm:$0xff]
          %v4269 = vld [vmem:[#allocation20 + $0x18] sm:$0xff]
          %v4270 = vld [vmem:[#allocation20 + $0x20] sm:$0xff]
          %v4271 = vld [vmem:[#allocation20 + $0x28] sm:$0xff]
          %v4272 = vld [vmem:[#allocation20 + $0x30] sm:$0xff]
          %v4273 = vld [vmem:[#allocation20 + $0x38] sm:$0xff]
          %v4274 = vld [vmem:[#allocation20 + $0x40] sm:$0xff]
          %v4275 = vld [vmem:[#allocation20 + $0x48] sm:$0xff]
          %v4276 = vld [vmem:[#allocation20 + $0x50] sm:$0xff]
          %v4277 = vld [vmem:[#allocation20 + $0x58] sm:$0xff]
          %v4278 = vld [vmem:[#allocation20 + $0x60] sm:$0xff]
          %v4279 = vld [vmem:[#allocation20 + $0x68] sm:$0xff]
          %v4280 = vld [vmem:[#allocation20 + $0x70] sm:$0xff]
          %v4281 = vld [vmem:[#allocation20 + $0x78] sm:$0xff]
          %v4282 = vld [vmem:[#allocation20 + $0x80] sm:$0xff]
          %v4283 = vld [vmem:[#allocation20 + $0x88] sm:$0xff]
          %v4284 = vld [vmem:[#allocation20 + $0x90] sm:$0xff]
          %v4285 = vld [vmem:[#allocation20 + $0x98] sm:$0xff]
          %v4286 = vld [vmem:[#allocation20 + $0xa0] sm:$0xff]
          %v4287 = vld [vmem:[#allocation20 + $0xa8] sm:$0xff]
          %v4288 = vld [vmem:[#allocation20 + $0xb0] sm:$0xff]
          %v4289 = vld [vmem:[#allocation20 + $0xb8] sm:$0xff]
          %v4290 = vld [vmem:[#allocation20 + $0xc0] sm:$0xff]
          %v4291 = vld [vmem:[#allocation20 + $0xc8] sm:$0xff]
          %v4292 = vld [vmem:[#allocation20 + $0xd0] sm:$0xff]
          %v4293 = vld [vmem:[#allocation20 + $0xd8] sm:$0xff]
          %v4294 = vld [vmem:[#allocation20 + $0xe0] sm:$0xff]
          %v4295 = vld [vmem:[#allocation20 + $0xe8] sm:$0xff]
          %v4296 = vld [vmem:[#allocation20 + $0xf0] sm:$0xff]
          %v4297 = vld [vmem:[#allocation20 + $0xf8] sm:$0xff]
          %v4330 = vunpack.c.l.b16 %v4266
          %v4331 = vunpack.c.h.b16 %v4266
          %v4332 = vunpack.c.l.b16 %v4267
          %v4333 = vunpack.c.h.b16 %v4267
          %v4334 = vunpack.c.l.b16 %v4268
          %v4335 = vunpack.c.h.b16 %v4268
          %v4336 = vunpack.c.l.b16 %v4269
          %v4337 = vunpack.c.h.b16 %v4269
          %v4338 = vunpack.c.l.b16 %v4270
          %v4339 = vunpack.c.h.b16 %v4270
          %v4340 = vunpack.c.l.b16 %v4271
          %v4341 = vunpack.c.h.b16 %v4271
          %v4342 = vunpack.c.l.b16 %v4272
          %v4343 = vunpack.c.h.b16 %v4272
          %v4344 = vunpack.c.l.b16 %v4273
          %v4345 = vunpack.c.h.b16 %v4273
          %v4346 = vunpack.c.l.b16 %v4274
          %v4347 = vunpack.c.h.b16 %v4274
          %v4348 = vunpack.c.l.b16 %v4275
          %v4349 = vunpack.c.h.b16 %v4275
          %v4350 = vunpack.c.l.b16 %v4276
          %v4351 = vunpack.c.h.b16 %v4276
          %v4352 = vunpack.c.l.b16 %v4277
          %v4353 = vunpack.c.h.b16 %v4277
          %v4354 = vunpack.c.l.b16 %v4278
          %v4355 = vunpack.c.h.b16 %v4278
          %v4356 = vunpack.c.l.b16 %v4279
          %v4357 = vunpack.c.h.b16 %v4279
          %v4358 = vunpack.c.l.b16 %v4280
          %v4359 = vunpack.c.h.b16 %v4280
          %v4360 = vunpack.c.l.b16 %v4281
          %v4361 = vunpack.c.h.b16 %v4281
          %v4362 = vunpack.c.l.b16 %v4282
          %v4363 = vunpack.c.h.b16 %v4282
          %v4364 = vunpack.c.l.b16 %v4283
          %v4365 = vunpack.c.h.b16 %v4283
          %v4366 = vunpack.c.l.b16 %v4284
          %v4367 = vunpack.c.h.b16 %v4284
          %v4368 = vunpack.c.l.b16 %v4285
          %v4369 = vunpack.c.h.b16 %v4285
          %v4370 = vunpack.c.l.b16 %v4286
          %v4371 = vunpack.c.h.b16 %v4286
          %v4372 = vunpack.c.l.b16 %v4287
          %v4373 = vunpack.c.h.b16 %v4287
          %v4374 = vunpack.c.l.b16 %v4288
          %v4375 = vunpack.c.h.b16 %v4288
          %v4376 = vunpack.c.l.b16 %v4289
          %v4377 = vunpack.c.h.b16 %v4289
          %v4378 = vunpack.c.l.b16 %v4290
          %v4379 = vunpack.c.h.b16 %v4290
          %v4380 = vunpack.c.l.b16 %v4291
          %v4381 = vunpack.c.h.b16 %v4291
          %v4382 = vunpack.c.l.b16 %v4292
          %v4383 = vunpack.c.h.b16 %v4292
          %v4384 = vunpack.c.l.b16 %v4293
          %v4385 = vunpack.c.h.b16 %v4293
          %v4386 = vunpack.c.l.b16 %v4294
          %v4387 = vunpack.c.h.b16 %v4294
          %v4388 = vunpack.c.l.b16 %v4295
          %v4389 = vunpack.c.h.b16 %v4295
          %v4390 = vunpack.c.l.b16 %v4296
          %v4391 = vunpack.c.h.b16 %v4296
          %v4392 = vunpack.c.l.b16 %v4297
          %v4393 = vunpack.c.h.b16 %v4297
          %v4394 = vpack.c.b16 %v4332, %v4330
          %v4395 = vpack.c.b16 %v4333, %v4331
          %v4396 = vpack.c.b16 %v4336, %v4334
          %v4397 = vpack.c.b16 %v4337, %v4335
          %v4398 = vpack.c.b16 %v4340, %v4338
          %v4399 = vpack.c.b16 %v4341, %v4339
          %v4400 = vpack.c.b16 %v4344, %v4342
          %v4401 = vpack.c.b16 %v4345, %v4343
          %v4402 = vpack.c.b16 %v4348, %v4346
          %v4403 = vpack.c.b16 %v4349, %v4347
          %v4404 = vpack.c.b16 %v4352, %v4350
          %v4405 = vpack.c.b16 %v4353, %v4351
          %v4406 = vpack.c.b16 %v4356, %v4354
          %v4407 = vpack.c.b16 %v4357, %v4355
          %v4408 = vpack.c.b16 %v4360, %v4358
          %v4409 = vpack.c.b16 %v4361, %v4359
          %v4410 = vpack.c.b16 %v4364, %v4362
          %v4411 = vpack.c.b16 %v4365, %v4363
          %v4412 = vpack.c.b16 %v4368, %v4366
          %v4413 = vpack.c.b16 %v4369, %v4367
          %v4414 = vpack.c.b16 %v4372, %v4370
          %v4415 = vpack.c.b16 %v4373, %v4371
          %v4416 = vpack.c.b16 %v4376, %v4374
          %v4417 = vpack.c.b16 %v4377, %v4375
          %v4418 = vpack.c.b16 %v4380, %v4378
          %v4419 = vpack.c.b16 %v4381, %v4379
          %v4420 = vpack.c.b16 %v4384, %v4382
          %v4421 = vpack.c.b16 %v4385, %v4383
          %v4422 = vpack.c.b16 %v4388, %v4386
          %v4423 = vpack.c.b16 %v4389, %v4387
          %v4424 = vpack.c.b16 %v4392, %v4390
          %v4425 = vpack.c.b16 %v4393, %v4391
          %4458 = vmatpush.bf16.msra.mxu0 %v4408
          %4459 = vmatpush.bf16.msra.mxu0 %v4406
          %4460 = vmatpush.bf16.msra.mxu0 %v4404
          %4461 = vmatpush.bf16.msra.mxu0 %v4402
          %4462 = vmatpush.bf16.msra.mxu0 %v4400
          %4463 = vmatpush.bf16.msra.mxu0 %v4398
          %4464 = vmatpush.bf16.msra.mxu0 %v4396
          %4465 = vmatpush.bf16.msra.mxu0 %v4394
          %4466 = vmatmul.bf16.gmra.mxu0 %v4264
          %v4467 = vpop.f32.mrf.mxu0
          %v4468 = vadd.f32 0.0, %v4467
          %v4469 = vpop.f32.mrf.mxu0
          %4470 = vdwg.mxu0
          %4471 = vmatpush.bf16.msra.mxu0 %v4424
          %4472 = vmatpush.bf16.msra.mxu0 %v4422
          %4473 = vmatpush.bf16.msra.mxu0 %v4420
          %4474 = vmatpush.bf16.msra.mxu0 %v4418
          %4475 = vmatpush.bf16.msra.mxu0 %v4416
          %4476 = vmatpush.bf16.msra.mxu0 %v4414
          %4477 = vmatpush.bf16.msra.mxu0 %v4412
          %4478 = vmatpush.bf16.msra.mxu0 %v4410
          %4479 = vmatmul.bf16.gmra.mxu0 %v4265
          %v4480 = vpop.f32.mrf.mxu0
          %v4481 = vadd.f32 %v4468, %v4480
          %v4482 = vpop.f32.mrf.mxu0
          %4483 = vdwg.mxu0
          %4484 = vmatpush.bf16.msra.mxu0 %v4409
          %4485 = vmatpush.bf16.msra.mxu0 %v4407
          %4486 = vmatpush.bf16.msra.mxu0 %v4405
          %4487 = vmatpush.bf16.msra.mxu0 %v4403
          %4488 = vmatpush.bf16.msra.mxu0 %v4401
          %4489 = vmatpush.bf16.msra.mxu0 %v4399
          %4490 = vmatpush.bf16.msra.mxu0 %v4397
          %4491 = vmatpush.bf16.msra.mxu0 %v4395
          %4492 = vmatmul.bf16.gmra.mxu0 %v4264
          %v4493 = vpop.f32.mrf.mxu0
          %v4494 = vadd.f32 0.0, %v4493
          %v4495 = vpop.f32.mrf.mxu0
          %4496 = vdwg.mxu0
          %4497 = vmatpush.bf16.msra.mxu0 %v4425
          %4498 = vmatpush.bf16.msra.mxu0 %v4423
          %4499 = vmatpush.bf16.msra.mxu0 %v4421
          %4500 = vmatpush.bf16.msra.mxu0 %v4419
          %4501 = vmatpush.bf16.msra.mxu0 %v4417
          %4502 = vmatpush.bf16.msra.mxu0 %v4415
          %4503 = vmatpush.bf16.msra.mxu0 %v4413
          %4504 = vmatpush.bf16.msra.mxu0 %v4411
          %4505 = vmatmul.bf16.gmra.mxu0 %v4265
          %v4506 = vpop.f32.mrf.mxu0
          %v4507 = vadd.f32 %v4494, %v4506
          %v4508 = vpop.f32.mrf.mxu0
          %4509 = vdwg.mxu0
          %v4512 = vrot.slane %v4507, 6
          %v4513 = vsel %vm849, %v4481, %v4512
          %4515 = vst [vmem:[#allocation22] sm:$0xf] %v4513
        $region144: #{tpu_custom_call.1} parent=79 // pred_fallthru
          _
        %s4516 = smul.u32 1, 1
        %s4517 = sshll.u32 %s4516, 4
        %4518 = dma.done [#allocation6], %s4517
        %s4519 = sshll.u32 %s4516, 4
        %4520 = dma.done %s1498, %s4519
        %s4521 = sshll.u32 %s4516, 4
        %4522 = dma.done %s1519, %s4521
        %s4523 = sshll.u32 %s4516, 4
        %4524 = dma.done %s1534, %s4523
        // Predicated region
        $region145: #{tpu_custom_call.1} parent=79 // pred_check
          %p4525 = pneg %p419
        $region146: #{tpu_custom_call.1} parent=79 // pred_check_branch
          %4527 = sbr.rel (%p4525) target = $region148
        $region147: #{tpu_custom_call.1} parent=79 // pred_region
          %4529 = vsyncadd [#allocation10], 0
          %s4531 = sshll.u32 [#allocation22], 4
          %s4532 = int_to_ptr.vmem [resolvable:$true] %s4531
          %s4533 = sshll.u32 %s17, 4
          %s4534 = int_to_ptr.hbm [resolvable:$true] %s4533
          %4536 = dma.vmem_to_hbm [thread:$0]  %s4532, 64, %s4534, [#allocation10]
        $region148: #{tpu_custom_call.1} parent=79 // pred_fallthru
          _
        // Predicated region
        $region149: #{tpu_custom_call.1} parent=79 // pred_check
          %p4537 = pneg %p419
        $region150: #{tpu_custom_call.1} parent=79 // pred_check_branch
          %4539 = sbr.rel (%p4537) target = $region152
        $region151: #{tpu_custom_call.1} parent=79 // pred_region
          %4541 = dma.done [#allocation10], 64
        $region152: #{tpu_custom_call.1} parent=79 // pred_fallthru
          _
      $region80: #{tpu_custom_call.1} parent=5 // pred_fallthru
        _
      %p4542 = scmp.le.s32.totalorder 2, %s41
      // Predicated region
      $region153: #{tpu_custom_call.1} parent=5 // pred_check
        %p4543 = pneg %p4542
      $region154: #{tpu_custom_call.1} parent=5 // pred_check_branch
        %4545 = sbr.rel (%p4543) target = $region156
      $region155: #{tpu_custom_call.1} parent=5 // pred_region
        %s4546 = ssub.s32 %s41, 2
      $region156: #{tpu_custom_call.1} parent=5 // pred_fallthru
        _
    $region6: #{tpu_custom_call.1} parent=1 // loop_footer
      %s45 = sadd.s32 1, %s41
    $region7: #{tpu_custom_call.1} parent=1 // loop_footer_branch
      %40 = sbr.rel target = $region3
    $region8: #{tpu_custom_call.1} parent=1 // loop_exit
      _
    %4547 = vsyncpa [#allocation9], 1
    %s4548 = scalar_lea.sflag [#allocation9], 1
    %4549 = vsyncpa %s4548, 1
    %4550 = vsyncpa [#allocation12], 1
    %s4551 = scalar_lea.sflag [#allocation12], 1
    %4552 = vsyncpa %s4551, 1
    %4553 = vsyncpa [#allocation15], 1
    %s4554 = scalar_lea.sflag [#allocation15], 1
    %4555 = vsyncpa %s4554, 1
    %4556 = vsyncpa [#allocation18], 1
    %s4557 = scalar_lea.sflag [#allocation18], 1
    %4558 = vsyncpa %s4557, 1
    %4559 = vsyncpa [#allocation21], 1
    %4560 = vsyncpa [#allocation10], 1
    %s4561 = scalar_lea.sflag [#allocation10], 1
    %4562 = vsyncpa %s4561, 1
  %4563 = vsyncmov [#allocation5]
  %s4564 = vpop.sfrf %4563
  %p4565 = scmp.eq.s32.totalorder %s4564, 0
  %p4566 = pneg %p4565
  %4568 = shalt.err (%p4566)
  %s4569 = scalar_lea.sflag [#allocation5], 1
  %4570 = vsyncmov %s4569
  %s4571 = vpop.sfrf %4570
  %p4572 = scmp.eq.s32.totalorder %s4571, 0
  %p4573 = pneg %p4572
  %4575 = shalt.err (%p4573)
  %4576 = vsyncmov [#allocation6]
  %s4577 = vpop.sfrf %4576
  %p4578 = scmp.eq.s32.totalorder %s4577, 0
  %p4579 = pneg %p4578
  %4581 = shalt.err (%p4579)
  %s4582 = scalar_lea.sflag [#allocation6], 1
  %4583 = vsyncmov %s4582
  %s4584 = vpop.sfrf %4583
  %p4585 = scmp.eq.s32.totalorder %s4584, 0
  %p4586 = pneg %p4585
  %4588 = shalt.err (%p4586)
  %s4589 = scalar_lea.sflag [#allocation6], 2
  %4590 = vsyncmov %s4589
  %s4591 = vpop.sfrf %4590
  %p4592 = scmp.eq.s32.totalorder %s4591, 0
  %p4593 = pneg %p4592
  %4595 = shalt.err (%p4593)
  %s4596 = scalar_lea.sflag [#allocation6], 3
  %4597 = vsyncmov %s4596
  %s4598 = vpop.sfrf %4597
  %p4599 = scmp.eq.s32.totalorder %s4598, 0
  %p4600 = pneg %p4599
  %4602 = shalt.err (%p4600)

</llo_original>
